<compile_context>
chip_gen: v7x
topology: tpu7x:2x2x1
jax: 0.10.0
libtpu: 0.0.40
codegen_flags: <defaults>
</compile_context>

<pallas_src>
import functools
import math

import jax
import jax.numpy as jnp
from jax.experimental import pallas as pl
from jax.experimental.pallas import tpu as pltpu


def _rup(x, t):
    return ((x + t - 1) // t) * t


def _pair(v):
    return (v, v) if isinstance(v, int) else tuple(v)


# --------------------------------------------------------------------------
# Pallas matmul with fused BatchNorm(scale/shift) + ReLU epilogue
# --------------------------------------------------------------------------
def _mm_bn_kernel(a_ref, b_ref, s_ref, t_ref, o_ref, *, relu):
    acc = jnp.dot(a_ref[...], b_ref[...], preferred_element_type=jnp.float32)
    y = acc * s_ref[...] + t_ref[...]
    if relu:
        y = jnp.maximum(y, 0.0)
    o_ref[...] = y.astype(o_ref.dtype)


def matmul_bn_act(a, b, scale, shift, relu=True):
    """maybe_relu((a @ b) * scale + shift); bf16 MXU operands, f32 accumulate/epilogue."""
    M, K = a.shape
    K2, N = b.shape
    assert K == K2
    # Tile sizes: whole K per call (nk == 1), adaptive M/N tiles.
    TM = 256 if M >= 512 else 128
    TM = min(TM, _rup(M, 8))
    if N % 256 == 0 and N >= 512:
        TN = 256
    elif N % 128 == 0:
        TN = 128
    else:
        TN = N  # full-extent lane block (e.g. 64 / 96)

    s = scale.astype(jnp.float32).reshape(1, N)
    t = shift.astype(jnp.float32).reshape(1, N)
    grid = (pl.cdiv(M, TM), pl.cdiv(N, TN))

    return pl.pallas_call(
        functools.partial(_mm_bn_kernel, relu=relu),
        out_shape=jax.ShapeDtypeStruct((M, N), jnp.float32),
        grid_spec=pltpu.PrefetchScalarGridSpec(
            num_scalar_prefetch=0,
            grid=grid,
            in_specs=[
                pl.BlockSpec((TM, K), lambda i, j: (i, 0)),
                pl.BlockSpec((K, TN), lambda i, j: (0, j)),
                pl.BlockSpec((1, TN), lambda i, j: (0, j)),
                pl.BlockSpec((1, TN), lambda i, j: (0, j)),
            ],
            out_specs=pl.BlockSpec((TM, TN), lambda i, j: (i, j)),
        ),
        compiler_params=pltpu.CompilerParams(
            dimension_semantics=("parallel", "parallel"),
            vmem_limit_bytes=32 * 1024 * 1024,
        ),
    )(a.astype(jnp.bfloat16), b.astype(jnp.bfloat16), s, t)


# --------------------------------------------------------------------------
# Convolution = im2col (bf16, plain-JAX glue) + fused Pallas matmul
# --------------------------------------------------------------------------
def _im2col(x, kh, kw, stride, pad):
    N, H, W, C = x.shape
    ph, pw = pad
    if ph or pw:
        x = jnp.pad(x, ((0, 0), (ph, ph), (pw, pw), (0, 0)))
    Ho = (H + 2 * ph - kh) // stride + 1
    Wo = (W + 2 * pw - kw) // stride + 1
    if kh == 1 and kw == 1 and stride == 1:
        return x.reshape(N * Ho * Wo, C), (N, Ho, Wo)
    cols = []
    for di in range(kh):
        for dj in range(kw):
            cols.append(
                x[:, di:di + (Ho - 1) * stride + 1:stride,
                  dj:dj + (Wo - 1) * stride + 1:stride, :])
    patches = jnp.concatenate(cols, axis=-1).reshape(N * Ho * Wo, kh * kw * C)
    return patches, (N, Ho, Wo)


def basic_conv(x, p, stride=1, pad=(0, 0)):
    """BasicConv: Conv2d(bias=False) + BatchNorm2d(eps=1e-3, inference fold) + ReLU."""
    cout, cin, kh, kw = p["w"].shape
    patches, (N, Ho, Wo) = _im2col(x.astype(jnp.bfloat16), kh, kw, stride, _pair(pad))
    wmat = jnp.transpose(p["w"], (2, 3, 1, 0)).reshape(kh * kw * cin, cout)
    out = matmul_bn_act(patches, wmat, p["scale"], p["shift"], relu=True)
    return out.reshape(N, Ho, Wo, cout)


# --------------------------------------------------------------------------
# MaxPool2d(kernel_size=3, stride=2), no padding — in-kernel window reduction
# --------------------------------------------------------------------------
def _maxpool3x3s2_kernel(ee_ref, eo_ref, oe_ref, oo_ref, o_ref):
    ee = ee_ref[0]          # (Ho+1, Wo+1, C) even rows, even cols
    eo = eo_ref[0]          # (Ho+1, Wo,   C) even rows, odd  cols
    oe = oe_ref[0]          # (Ho,   Wo+1, C) odd  rows, even cols
    oo = oo_ref[0]          # (Ho,   Wo,   C) odd  rows, odd  cols
    ho, wo = oo.shape[0], oo.shape[1]
    m = jnp.maximum(oo, eo[:ho])
    m = jnp.maximum(m, eo[1:ho + 1])
    m = jnp.maximum(m, oe[:, :wo])
    m = jnp.maximum(m, oe[:, 1:wo + 1])
    m = jnp.maximum(m, ee[:ho, :wo])
    m = jnp.maximum(m, ee[:ho, 1:wo + 1])
    m = jnp.maximum(m, ee[1:ho + 1, :wo])
    m = jnp.maximum(m, ee[1:ho + 1, 1:wo + 1])
    o_ref[0] = m


def maxpool_3x3_s2(x):
    """MaxPool2d(kernel_size=3, stride=2), padding=0 (as in nn.MaxPool2d)."""
    N, H, W, C = x.shape
    Ho = (H - 3) // 2 + 1
    Wo = (W - 3) // 2 + 1
    # Parity-split once (wrapper-side layout plumbing): window (2i..2i+2, 2j..2j+2)
    # touches even/odd rows and columns in a fixed pattern, so the kernel only needs
    # contiguous unit-stride slices + max.
    ee = x[:, 0:2 * Ho + 1:2, 0:2 * Wo + 1:2, :]
    eo = x[:, 0:2 * Ho + 1:2, 1:2 * Wo:2, :]
    oe = x[:, 1:2 * Ho:2, 0:2 * Wo + 1:2, :]
    oo = x[:, 1:2 * Ho:2, 1:2 * Wo:2, :]
    return pl.pallas_call(
        _maxpool3x3s2_kernel,
        out_shape=jax.ShapeDtypeStruct((N, Ho, Wo, C), x.dtype),
        grid_spec=pltpu.PrefetchScalarGridSpec(
            num_scalar_prefetch=0,
            grid=(N,),
            in_specs=[
                pl.BlockSpec((1, Ho + 1, Wo + 1, C), lambda n: (n, 0, 0, 0)),
                pl.BlockSpec((1, Ho + 1, Wo, C), lambda n: (n, 0, 0, 0)),
                pl.BlockSpec((1, Ho, Wo + 1, C), lambda n: (n, 0, 0, 0)),
                pl.BlockSpec((1, Ho, Wo, C), lambda n: (n, 0, 0, 0)),
            ],
            out_specs=pl.BlockSpec((1, Ho, Wo, C), lambda n: (n, 0, 0, 0)),
        ),
        compiler_params=pltpu.CompilerParams(
            dimension_semantics=("parallel",),
            vmem_limit_bytes=32 * 1024 * 1024,
        ),
    )(ee, eo, oe, oo)


# --------------------------------------------------------------------------
# Deterministic parameter construction (BN folded to inference scale/shift)
# --------------------------------------------------------------------------
class KeyGen:
    def __init__(self, seed):
        self._key = jax.random.PRNGKey(seed)

    def __call__(self):
        self._key, sub = jax.random.split(self._key)
        return sub


def init_basic_conv(kg, cin, cout, k):
    kh, kw = _pair(k)
    fan_in = cin * kh * kw
    w = jax.random.normal(kg(), (cout, cin, kh, kw), jnp.float32) * math.sqrt(2.0 / fan_in)
    gamma = 1.0 + 0.1 * jax.random.normal(kg(), (cout,), jnp.float32)
    beta = 0.05 * jax.random.normal(kg(), (cout,), jnp.float32)
    rmean = 0.05 * jax.random.normal(kg(), (cout,), jnp.float32)
    rvar = 1.0 + 0.1 * jax.random.uniform(kg(), (cout,), jnp.float32)
    scale = gamma / jnp.sqrt(rvar + 1e-3)      # BatchNorm2d eps = 0.001
    shift = beta - rmean * scale
    return dict(w=w, scale=scale, shift=shift)


def init_inception_b(kg, cin):
    return dict(
        b1=init_basic_conv(kg, cin, 384, 3),     # 3x3 stride 2
        b2_1=init_basic_conv(kg, cin, 64, 1),    # 1x1
        b2_2=init_basic_conv(kg, 64, 96, 3),     # 3x3 pad 1
        b2_3=init_basic_conv(kg, 96, 96, 3),     # 3x3 stride 2
    )


# --------------------------------------------------------------------------
# InceptionB forward (matches the PyTorch module: NCHW in, NCHW out)
# --------------------------------------------------------------------------
def inception_b_forward(params, x_nchw):
    x = jnp.transpose(x_nchw, (0, 2, 3, 1))                 # NCHW -> NHWC
    out1 = basic_conv(x, params["b1"], stride=2)            # branch1
    out2 = basic_conv(x, params["b2_1"])                    # branch2
    out2 = basic_conv(out2, params["b2_2"], pad=(1, 1))
    out2 = basic_conv(out2, params["b2_3"], stride=2)
    out3 = maxpool_3x3_s2(x)                                # branch3
    out = jnp.concatenate([out1, out2, out3], axis=-1)      # torch.cat(dim=1) in NCHW
    return jnp.transpose(out, (0, 3, 1, 2))                 # NHWC -> NCHW


if __name__ == "__main__":
    batch, cin, H, W = 2, 32, 17, 17
    params = init_inception_b(KeyGen(42), cin)
    x = jax.random.normal(jax.random.PRNGKey(0), (batch, cin, H, W), jnp.float32)
    fwd = jax.jit(inception_b_forward)
    out = fwd(params, x)
    jax.block_until_ready(out)
    Ho = (H - 3) // 2 + 1
    Wo = (W - 3) // 2 + 1
    assert out.shape == (batch, 384 + 96 + cin, Ho, Wo), out.shape
    assert bool(jnp.all(jnp.isfinite(out)))
    print("KERNEL_OK")
</pallas_src>

<mosaic_0001>
module attributes {stable_mosaic.version = 11 : i64} {
  func.func @_mm_bn_kernel(%arg0: i32, %arg1: i32, %arg2: memref<256x32xbf16, #tpu.memory_space<vmem>>, %arg3: memref<32x64xbf16, #tpu.memory_space<vmem>>, %arg4: memref<1x64xf32, #tpu.memory_space<vmem>>, %arg5: memref<1x64xf32, #tpu.memory_space<vmem>>, %arg6: memref<256x64xf32, #tpu.memory_space<vmem>>) attributes {dimension_semantics = [#tpu.dimension_semantics<parallel>, #tpu.dimension_semantics<parallel>], iteration_bounds = array<i64: 3, 1>, scalar_prefetch = 0 : i64, scratch_operands = 0 : i64, tpu.core_type = #tpu.core_type<tc>, window_params = [{transform_indices = @transform_0, window_bounds = array<i64: 256, 32>}, {transform_indices = @transform_1, window_bounds = array<i64: 32, 64>}, {transform_indices = @transform_2, window_bounds = array<i64: 1, 64>}, {transform_indices = @transform_3, window_bounds = array<i64: 1, 64>}, {transform_indices = @transform_4, window_bounds = array<i64: 256, 64>}]} {
    %c0 = arith.constant 0 : index
    %c0_0 = arith.constant 0 : index
    %0 = vector.load %arg2[%c0, %c0_0] : memref<256x32xbf16, #tpu.memory_space<vmem>>, vector<256x32xbf16>
    %c0_1 = arith.constant 0 : index
    %c0_2 = arith.constant 0 : index
    %1 = vector.load %arg3[%c0_1, %c0_2] : memref<32x64xbf16, #tpu.memory_space<vmem>>, vector<32x64xbf16>
    %cst = arith.constant dense<0.000000e+00> : vector<256x64xf32>
    %2 = tpu.matmul %0, %1, %cst {dimension_numbers = #tpu.dot_dimension_numbers<[1], [0], [0], [1], [0, 0, 1, 1], [], []>} : vector<256x32xbf16>, vector<32x64xbf16>, vector<256x64xf32> -> vector<256x64xf32>
    %c0_3 = arith.constant 0 : index
    %c0_4 = arith.constant 0 : index
    %3 = vector.load %arg4[%c0_3, %c0_4] : memref<1x64xf32, #tpu.memory_space<vmem>>, vector<1x64xf32>
    %4 = vector.broadcast %3 : vector<1x64xf32> to vector<256x64xf32>
    %5 = arith.mulf %2, %4 : vector<256x64xf32>
    %c0_5 = arith.constant 0 : index
    %c0_6 = arith.constant 0 : index
    %6 = vector.load %arg5[%c0_5, %c0_6] : memref<1x64xf32, #tpu.memory_space<vmem>>, vector<1x64xf32>
    %7 = vector.broadcast %6 : vector<1x64xf32> to vector<256x64xf32>
    %8 = arith.addf %5, %7 : vector<256x64xf32>
    %cst_7 = arith.constant 0.000000e+00 : f32
    %9 = vector.broadcast %cst_7 : f32 to vector<256x64xf32>
    %10 = arith.maximumf %8, %9 : vector<256x64xf32>
    %c0_8 = arith.constant 0 : index
    %c0_9 = arith.constant 0 : index
    %11 = vector.load %arg6[%c0_8, %c0_9] : memref<256x64xf32, #tpu.memory_space<vmem>>, vector<256x64xf32>
    tpu.vector_store %arg6[%c0_8, %c0_9], %10 {strides = array<i32>} : memref<256x64xf32, #tpu.memory_space<vmem>>, vector<256x64xf32>,
    return
  }
  func.func @transform_0(%arg0: i32, %arg1: i32) -> (i32, i32) {
    %c0_i32 = arith.constant 0 : i32
    %c0_i32_0 = arith.constant 0 : i32
    return %arg0, %c0_i32 : i32, i32
  }
  func.func @transform_1(%arg0: i32, %arg1: i32) -> (i32, i32) {
    %c0_i32 = arith.constant 0 : i32
    %c0_i32_0 = arith.constant 0 : i32
    return %c0_i32, %arg1 : i32, i32
  }
  func.func @transform_2(%arg0: i32, %arg1: i32) -> (i32, i32) {
    %c0_i32 = arith.constant 0 : i32
    %c0_i32_0 = arith.constant 0 : i32
    return %c0_i32, %arg1 : i32, i32
  }
  func.func @transform_3(%arg0: i32, %arg1: i32) -> (i32, i32) {
    %c0_i32 = arith.constant 0 : i32
    %c0_i32_0 = arith.constant 0 : i32
    return %c0_i32, %arg1 : i32, i32
  }
  func.func @transform_4(%arg0: i32, %arg1: i32) -> (i32, i32) {
    %c0_i32 = arith.constant 0 : i32
    return %arg0, %arg1 : i32, i32
  }
}

module attributes {stable_mosaic.version = 11 : i64} {
  func.func @_mm_bn_kernel(%arg0: i32, %arg1: i32, %arg2: memref<256x576xbf16, #tpu.memory_space<vmem>>, %arg3: memref<576x96xbf16, #tpu.memory_space<vmem>>, %arg4: memref<1x96xf32, #tpu.memory_space<vmem>>, %arg5: memref<1x96xf32, #tpu.memory_space<vmem>>, %arg6: memref<256x96xf32, #tpu.memory_space<vmem>>) attributes {dimension_semantics = [#tpu.dimension_semantics<parallel>, #tpu.dimension_semantics<parallel>], iteration_bounds = array<i64: 3, 1>, scalar_prefetch = 0 : i64, scratch_operands = 0 : i64, tpu.core_type = #tpu.core_type<tc>, window_params = [{transform_indices = @transform_0, window_bounds = array<i64: 256, 576>}, {transform_indices = @transform_1, window_bounds = array<i64: 576, 96>}, {transform_indices = @transform_2, window_bounds = array<i64: 1, 96>}, {transform_indices = @transform_3, window_bounds = array<i64: 1, 96>}, {transform_indices = @transform_4, window_bounds = array<i64: 256, 96>}]} {
    %c0 = arith.constant 0 : index
    %c0_0 = arith.constant 0 : index
    %0 = vector.load %arg2[%c0, %c0_0] : memref<256x576xbf16, #tpu.memory_space<vmem>>, vector<256x576xbf16>
    %c0_1 = arith.constant 0 : index
    %c0_2 = arith.constant 0 : index
    %1 = vector.load %arg3[%c0_1, %c0_2] : memref<576x96xbf16, #tpu.memory_space<vmem>>, vector<576x96xbf16>
    %cst = arith.constant dense<0.000000e+00> : vector<256x96xf32>
    %2 = tpu.matmul %0, %1, %cst {dimension_numbers = #tpu.dot_dimension_numbers<[1], [0], [0], [1], [0, 0, 1, 1], [], []>} : vector<256x576xbf16>, vector<576x96xbf16>, vector<256x96xf32> -> vector<256x96xf32>
    %c0_3 = arith.constant 0 : index
    %c0_4 = arith.constant 0 : index
    %3 = vector.load %arg4[%c0_3, %c0_4] : memref<1x96xf32, #tpu.memory_space<vmem>>, vector<1x96xf32>
    %4 = vector.broadcast %3 : vector<1x96xf32> to vector<256x96xf32>
    %5 = arith.mulf %2, %4 : vector<256x96xf32>
    %c0_5 = arith.constant 0 : index
    %c0_6 = arith.constant 0 : index
    %6 = vector.load %arg5[%c0_5, %c0_6] : memref<1x96xf32, #tpu.memory_space<vmem>>, vector<1x96xf32>
    %7 = vector.broadcast %6 : vector<1x96xf32> to vector<256x96xf32>
    %8 = arith.addf %5, %7 : vector<256x96xf32>
    %cst_7 = arith.constant 0.000000e+00 : f32
    %9 = vector.broadcast %cst_7 : f32 to vector<256x96xf32>
    %10 = arith.maximumf %8, %9 : vector<256x96xf32>
    %c0_8 = arith.constant 0 : index
    %c0_9 = arith.constant 0 : index
    %11 = vector.load %arg6[%c0_8, %c0_9] : memref<256x96xf32, #tpu.memory_space<vmem>>, vector<256x96xf32>
    tpu.vector_store %arg6[%c0_8, %c0_9], %10 {strides = array<i32>} : memref<256x96xf32, #tpu.memory_space<vmem>>, vector<256x96xf32>,
    return
  }
  func.func @transform_0(%arg0: i32, %arg1: i32) -> (i32, i32) {
    %c0_i32 = arith.constant 0 : i32
    %c0_i32_0 = arith.constant 0 : i32
    return %arg0, %c0_i32 : i32, i32
  }
  func.func @transform_1(%arg0: i32, %arg1: i32) -> (i32, i32) {
    %c0_i32 = arith.constant 0 : i32
    %c0_i32_0 = arith.constant 0 : i32
    return %c0_i32, %arg1 : i32, i32
  }
  func.func @transform_2(%arg0: i32, %arg1: i32) -> (i32, i32) {
    %c0_i32 = arith.constant 0 : i32
    %c0_i32_0 = arith.constant 0 : i32
    return %c0_i32, %arg1 : i32, i32
  }
  func.func @transform_3(%arg0: i32, %arg1: i32) -> (i32, i32) {
    %c0_i32 = arith.constant 0 : i32
    %c0_i32_0 = arith.constant 0 : i32
    return %c0_i32, %arg1 : i32, i32
  }
  func.func @transform_4(%arg0: i32, %arg1: i32) -> (i32, i32) {
    %c0_i32 = arith.constant 0 : i32
    return %arg0, %arg1 : i32, i32
  }
}

module attributes {stable_mosaic.version = 11 : i64} {
  func.func @_mm_bn_kernel(%arg0: i32, %arg1: i32, %arg2: memref<128x864xbf16, #tpu.memory_space<vmem>>, %arg3: memref<864x96xbf16, #tpu.memory_space<vmem>>, %arg4: memref<1x96xf32, #tpu.memory_space<vmem>>, %arg5: memref<1x96xf32, #tpu.memory_space<vmem>>, %arg6: memref<128x96xf32, #tpu.memory_space<vmem>>) attributes {dimension_semantics = [#tpu.dimension_semantics<parallel>, #tpu.dimension_semantics<parallel>], iteration_bounds = array<i64: 1, 1>, scalar_prefetch = 0 : i64, scratch_operands = 0 : i64, tpu.core_type = #tpu.core_type<tc>, window_params = [{transform_indices = @transform_0, window_bounds = array<i64: 128, 864>}, {transform_indices = @transform_1, window_bounds = array<i64: 864, 96>}, {transform_indices = @transform_2, window_bounds = array<i64: 1, 96>}, {transform_indices = @transform_3, window_bounds = array<i64: 1, 96>}, {transform_indices = @transform_4, window_bounds = array<i64: 128, 96>}]} {
    %c0 = arith.constant 0 : index
    %c0_0 = arith.constant 0 : index
    %0 = vector.load %arg2[%c0, %c0_0] : memref<128x864xbf16, #tpu.memory_space<vmem>>, vector<128x864xbf16>
    %c0_1 = arith.constant 0 : index
    %c0_2 = arith.constant 0 : index
    %1 = vector.load %arg3[%c0_1, %c0_2] : memref<864x96xbf16, #tpu.memory_space<vmem>>, vector<864x96xbf16>
    %cst = arith.constant dense<0.000000e+00> : vector<128x96xf32>
    %2 = tpu.matmul %0, %1, %cst {dimension_numbers = #tpu.dot_dimension_numbers<[1], [0], [0], [1], [0, 0, 1, 1], [], []>} : vector<128x864xbf16>, vector<864x96xbf16>, vector<128x96xf32> -> vector<128x96xf32>
    %c0_3 = arith.constant 0 : index
    %c0_4 = arith.constant 0 : index
    %3 = vector.load %arg4[%c0_3, %c0_4] : memref<1x96xf32, #tpu.memory_space<vmem>>, vector<1x96xf32>
    %4 = vector.broadcast %3 : vector<1x96xf32> to vector<128x96xf32>
    %5 = arith.mulf %2, %4 : vector<128x96xf32>
    %c0_5 = arith.constant 0 : index
    %c0_6 = arith.constant 0 : index
    %6 = vector.load %arg5[%c0_5, %c0_6] : memref<1x96xf32, #tpu.memory_space<vmem>>, vector<1x96xf32>
    %7 = vector.broadcast %6 : vector<1x96xf32> to vector<128x96xf32>
    %8 = arith.addf %5, %7 : vector<128x96xf32>
    %cst_7 = arith.constant 0.000000e+00 : f32
    %9 = vector.broadcast %cst_7 : f32 to vector<128x96xf32>
    %10 = arith.maximumf %8, %9 : vector<128x96xf32>
    %c0_8 = arith.constant 0 : index
    %c0_9 = arith.constant 0 : index
    %11 = vector.load %arg6[%c0_8, %c0_9] : memref<128x96xf32, #tpu.memory_space<vmem>>, vector<128x96xf32>
    tpu.vector_store %arg6[%c0_8, %c0_9], %10 {strides = array<i32>} : memref<128x96xf32, #tpu.memory_space<vmem>>, vector<128x96xf32>,
    return
  }
  func.func @transform_0(%arg0: i32, %arg1: i32) -> (i32, i32) {
    %c0_i32 = arith.constant 0 : i32
    %c0_i32_0 = arith.constant 0 : i32
    return %arg0, %c0_i32 : i32, i32
  }
  func.func @transform_1(%arg0: i32, %arg1: i32) -> (i32, i32) {
    %c0_i32 = arith.constant 0 : i32
    %c0_i32_0 = arith.constant 0 : i32
    return %c0_i32, %arg1 : i32, i32
  }
  func.func @transform_2(%arg0: i32, %arg1: i32) -> (i32, i32) {
    %c0_i32 = arith.constant 0 : i32
    %c0_i32_0 = arith.constant 0 : i32
    return %c0_i32, %arg1 : i32, i32
  }
  func.func @transform_3(%arg0: i32, %arg1: i32) -> (i32, i32) {
    %c0_i32 = arith.constant 0 : i32
    %c0_i32_0 = arith.constant 0 : i32
    return %c0_i32, %arg1 : i32, i32
  }
  func.func @transform_4(%arg0: i32, %arg1: i32) -> (i32, i32) {
    %c0_i32 = arith.constant 0 : i32
    return %arg0, %arg1 : i32, i32
  }
}

module attributes {stable_mosaic.version = 11 : i64} {
  func.func @_mm_bn_kernel(%arg0: i32, %arg1: i32, %arg2: memref<128x288xbf16, #tpu.memory_space<vmem>>, %arg3: memref<288x128xbf16, #tpu.memory_space<vmem>>, %arg4: memref<1x128xf32, #tpu.memory_space<vmem>>, %arg5: memref<1x128xf32, #tpu.memory_space<vmem>>, %arg6: memref<128x128xf32, #tpu.memory_space<vmem>>) attributes {dimension_semantics = [#tpu.dimension_semantics<parallel>, #tpu.dimension_semantics<parallel>], iteration_bounds = array<i64: 1, 3>, scalar_prefetch = 0 : i64, scratch_operands = 0 : i64, tpu.core_type = #tpu.core_type<tc>, window_params = [{transform_indices = @transform_0, window_bounds = array<i64: 128, 288>}, {transform_indices = @transform_1, window_bounds = array<i64: 288, 128>}, {transform_indices = @transform_2, window_bounds = array<i64: 1, 128>}, {transform_indices = @transform_3, window_bounds = array<i64: 1, 128>}, {transform_indices = @transform_4, window_bounds = array<i64: 128, 128>}]} {
    %c0 = arith.constant 0 : index
    %c0_0 = arith.constant 0 : index
    %0 = vector.load %arg2[%c0, %c0_0] : memref<128x288xbf16, #tpu.memory_space<vmem>>, vector<128x288xbf16>
    %c0_1 = arith.constant 0 : index
    %c0_2 = arith.constant 0 : index
    %1 = vector.load %arg3[%c0_1, %c0_2] : memref<288x128xbf16, #tpu.memory_space<vmem>>, vector<288x128xbf16>
    %cst = arith.constant dense<0.000000e+00> : vector<128x128xf32>
    %2 = tpu.matmul %0, %1, %cst {dimension_numbers = #tpu.dot_dimension_numbers<[1], [0], [0], [1], [0, 0, 1, 1], [], []>} : vector<128x288xbf16>, vector<288x128xbf16>, vector<128x128xf32> -> vector<128x128xf32>
    %c0_3 = arith.constant 0 : index
    %c0_4 = arith.constant 0 : index
    %3 = vector.load %arg4[%c0_3, %c0_4] : memref<1x128xf32, #tpu.memory_space<vmem>>, vector<1x128xf32>
    %4 = vector.broadcast %3 : vector<1x128xf32> to vector<128x128xf32>
    %5 = arith.mulf %2, %4 : vector<128x128xf32>
    %c0_5 = arith.constant 0 : index
    %c0_6 = arith.constant 0 : index
    %6 = vector.load %arg5[%c0_5, %c0_6] : memref<1x128xf32, #tpu.memory_space<vmem>>, vector<1x128xf32>
    %7 = vector.broadcast %6 : vector<1x128xf32> to vector<128x128xf32>
    %8 = arith.addf %5, %7 : vector<128x128xf32>
    %cst_7 = arith.constant 0.000000e+00 : f32
    %9 = vector.broadcast %cst_7 : f32 to vector<128x128xf32>
    %10 = arith.maximumf %8, %9 : vector<128x128xf32>
    %c0_8 = arith.constant 0 : index
    %c0_9 = arith.constant 0 : index
    %11 = vector.load %arg6[%c0_8, %c0_9] : memref<128x128xf32, #tpu.memory_space<vmem>>, vector<128x128xf32>
    tpu.vector_store %arg6[%c0_8, %c0_9], %10 {strides = array<i32>} : memref<128x128xf32, #tpu.memory_space<vmem>>, vector<128x128xf32>,
    return
  }
  func.func @transform_0(%arg0: i32, %arg1: i32) -> (i32, i32) {
    %c0_i32 = arith.constant 0 : i32
    %c0_i32_0 = arith.constant 0 : i32
    return %arg0, %c0_i32 : i32, i32
  }
  func.func @transform_1(%arg0: i32, %arg1: i32) -> (i32, i32) {
    %c0_i32 = arith.constant 0 : i32
    %c0_i32_0 = arith.constant 0 : i32
    return %c0_i32, %arg1 : i32, i32
  }
  func.func @transform_2(%arg0: i32, %arg1: i32) -> (i32, i32) {
    %c0_i32 = arith.constant 0 : i32
    %c0_i32_0 = arith.constant 0 : i32
    return %c0_i32, %arg1 : i32, i32
  }
  func.func @transform_3(%arg0: i32, %arg1: i32) -> (i32, i32) {
    %c0_i32 = arith.constant 0 : i32
    %c0_i32_0 = arith.constant 0 : i32
    return %c0_i32, %arg1 : i32, i32
  }
  func.func @transform_4(%arg0: i32, %arg1: i32) -> (i32, i32) {
    %c0_i32 = arith.constant 0 : i32
    return %arg0, %arg1 : i32, i32
  }
}

module attributes {stable_mosaic.version = 11 : i64} {
  func.func @_maxpool3x3s2_kernel(%arg0: i32, %arg1: memref<1x9x9x32xf32, #tpu.memory_space<vmem>>, %arg2: memref<1x9x8x32xf32, #tpu.memory_space<vmem>>, %arg3: memref<1x8x9x32xf32, #tpu.memory_space<vmem>>, %arg4: memref<1x8x8x32xf32, #tpu.memory_space<vmem>>, %arg5: memref<1x8x8x32xf32, #tpu.memory_space<vmem>>) attributes {dimension_semantics = [#tpu.dimension_semantics<parallel>], iteration_bounds = array<i64: 2>, scalar_prefetch = 0 : i64, scratch_operands = 0 : i64, tpu.core_type = #tpu.core_type<tc>, window_params = [{transform_indices = @transform_0, window_bounds = array<i64: 1, 9, 9, 32>}, {transform_indices = @transform_1, window_bounds = array<i64: 1, 9, 8, 32>}, {transform_indices = @transform_2, window_bounds = array<i64: 1, 8, 9, 32>}, {transform_indices = @transform_3, window_bounds = array<i64: 1, 8, 8, 32>}, {transform_indices = @transform_4, window_bounds = array<i64: 1, 8, 8, 32>}]} {
    %c0 = arith.constant 0 : index
    %c0_0 = arith.constant 0 : index
    %c0_1 = arith.constant 0 : index
    %c0_2 = arith.constant 0 : index
    %0 = vector.load %arg1[%c0, %c0_0, %c0_1, %c0_2] : memref<1x9x9x32xf32, #tpu.memory_space<vmem>>, vector<1x9x9x32xf32>
    %1 = vector.shape_cast %0 : vector<1x9x9x32xf32> to vector<9x9x32xf32>
    %c0_3 = arith.constant 0 : index
    %c0_4 = arith.constant 0 : index
    %c0_5 = arith.constant 0 : index
    %c0_6 = arith.constant 0 : index
    %2 = vector.load %arg2[%c0_3, %c0_4, %c0_5, %c0_6] : memref<1x9x8x32xf32, #tpu.memory_space<vmem>>, vector<1x9x8x32xf32>
    %3 = vector.shape_cast %2 : vector<1x9x8x32xf32> to vector<9x8x32xf32>
    %c0_7 = arith.constant 0 : index
    %c0_8 = arith.constant 0 : index
    %c0_9 = arith.constant 0 : index
    %c0_10 = arith.constant 0 : index
    %4 = vector.load %arg3[%c0_7, %c0_8, %c0_9, %c0_10] : memref<1x8x9x32xf32, #tpu.memory_space<vmem>>, vector<1x8x9x32xf32>
    %5 = vector.shape_cast %4 : vector<1x8x9x32xf32> to vector<8x9x32xf32>
    %c0_11 = arith.constant 0 : index
    %c0_12 = arith.constant 0 : index
    %c0_13 = arith.constant 0 : index
    %c0_14 = arith.constant 0 : index
    %6 = vector.load %arg4[%c0_11, %c0_12, %c0_13, %c0_14] : memref<1x8x8x32xf32, #tpu.memory_space<vmem>>, vector<1x8x8x32xf32>
    %7 = vector.shape_cast %6 : vector<1x8x8x32xf32> to vector<8x8x32xf32>
    %8 = vector.extract_strided_slice %3 {offsets = [0, 0, 0], sizes = [8, 8, 32], strides = [1, 1, 1]} : vector<9x8x32xf32> to vector<8x8x32xf32>
    %9 = arith.maximumf %7, %8 : vector<8x8x32xf32>
    %10 = vector.extract_strided_slice %3 {offsets = [1, 0, 0], sizes = [8, 8, 32], strides = [1, 1, 1]} : vector<9x8x32xf32> to vector<8x8x32xf32>
    %11 = arith.maximumf %9, %10 : vector<8x8x32xf32>
    %12 = vector.extract_strided_slice %5 {offsets = [0, 0, 0], sizes = [8, 8, 32], strides = [1, 1, 1]} : vector<8x9x32xf32> to vector<8x8x32xf32>
    %13 = arith.maximumf %11, %12 : vector<8x8x32xf32>
    %14 = vector.extract_strided_slice %5 {offsets = [0, 1, 0], sizes = [8, 8, 32], strides = [1, 1, 1]} : vector<8x9x32xf32> to vector<8x8x32xf32>
    %15 = arith.maximumf %13, %14 : vector<8x8x32xf32>
    %16 = vector.extract_strided_slice %1 {offsets = [0, 0, 0], sizes = [8, 8, 32], strides = [1, 1, 1]} : vector<9x9x32xf32> to vector<8x8x32xf32>
    %17 = arith.maximumf %15, %16 : vector<8x8x32xf32>
    %18 = vector.extract_strided_slice %1 {offsets = [0, 1, 0], sizes = [8, 8, 32], strides = [1, 1, 1]} : vector<9x9x32xf32> to vector<8x8x32xf32>
    %19 = arith.maximumf %17, %18 : vector<8x8x32xf32>
    %20 = vector.extract_strided_slice %1 {offsets = [1, 0, 0], sizes = [8, 8, 32], strides = [1, 1, 1]} : vector<9x9x32xf32> to vector<8x8x32xf32>
    %21 = arith.maximumf %19, %20 : vector<8x8x32xf32>
    %22 = vector.extract_strided_slice %1 {offsets = [1, 1, 0], sizes = [8, 8, 32], strides = [1, 1, 1]} : vector<9x9x32xf32> to vector<8x8x32xf32>
    %23 = arith.maximumf %21, %22 : vector<8x8x32xf32>
    %c0_15 = arith.constant 0 : index
    %c0_16 = arith.constant 0 : index
    %c0_17 = arith.constant 0 : index
    %c0_18 = arith.constant 0 : index
    %24 = vector.load %arg5[%c0_15, %c0_16, %c0_17, %c0_18] : memref<1x8x8x32xf32, #tpu.memory_space<vmem>>, vector<1x8x8x32xf32>
    %25 = vector.shape_cast %24 : vector<1x8x8x32xf32> to vector<8x8x32xf32>
    %26 = vector.shape_cast %23 : vector<8x8x32xf32> to vector<1x8x8x32xf32>
    tpu.vector_store %arg5[%c0_15, %c0_16, %c0_17, %c0_18], %26 {strides = array<i32>} : memref<1x8x8x32xf32, #tpu.memory_space<vmem>>, vector<1x8x8x32xf32>,
    return
  }
  func.func @transform_0(%arg0: i32) -> (i32, i32, i32, i32) {
    %c0_i32 = arith.constant 0 : i32
    %c0_i32_0 = arith.constant 0 : i32
    %c0_i32_1 = arith.constant 0 : i32
    %c0_i32_2 = arith.constant 0 : i32
    return %arg0, %c0_i32, %c0_i32_0, %c0_i32_1 : i32, i32, i32, i32
  }
  func.func @transform_1(%arg0: i32) -> (i32, i32, i32, i32) {
    %c0_i32 = arith.constant 0 : i32
    %c0_i32_0 = arith.constant 0 : i32
    %c0_i32_1 = arith.constant 0 : i32
    %c0_i32_2 = arith.constant 0 : i32
    return %arg0, %c0_i32, %c0_i32_0, %c0_i32_1 : i32, i32, i32, i32
  }
  func.func @transform_2(%arg0: i32) -> (i32, i32, i32, i32) {
    %c0_i32 = arith.constant 0 : i32
    %c0_i32_0 = arith.constant 0 : i32
    %c0_i32_1 = arith.constant 0 : i32
    %c0_i32_2 = arith.constant 0 : i32
    return %arg0, %c0_i32, %c0_i32_0, %c0_i32_1 : i32, i32, i32, i32
  }
  func.func @transform_3(%arg0: i32) -> (i32, i32, i32, i32) {
    %c0_i32 = arith.constant 0 : i32
    %c0_i32_0 = arith.constant 0 : i32
    %c0_i32_1 = arith.constant 0 : i32
    %c0_i32_2 = arith.constant 0 : i32
    return %arg0, %c0_i32, %c0_i32_0, %c0_i32_1 : i32, i32, i32, i32
  }
  func.func @transform_4(%arg0: i32) -> (i32, i32, i32, i32) {
    %c0_i32 = arith.constant 0 : i32
    %c0_i32_0 = arith.constant 0 : i32
    %c0_i32_1 = arith.constant 0 : i32
    %c0_i32_2 = arith.constant 0 : i32
    return %arg0, %c0_i32, %c0_i32_0, %c0_i32_1 : i32, i32, i32, i32
  }
}

</mosaic_0001>

<llo_original>
// kernel: inception_b_forward.6
$region0: #{inception_b_forward.6}
  #allocation0 [shape = 'u32[]', space=smem, size = 0x4, offset = 0x4, fixed_abs, tag = 'smem constant byte address 0x4 - core index']
  #allocation1 [shape = 'u32[144,128]{1,0:T(1,128)}', space=vmem, size = 0x12000, scoped, tag = 'internal scratch']
  %s0 = inlined_call_operand.vmem [shape: bf16[578,32], index: 0, kind: input, shape index: {}]
  %s1 = inlined_call_operand.vmem [shape: bf16[32,64], index: 1, kind: input, shape index: {}]
  %s2 = inlined_call_operand.vmem [shape: f32[1,64], index: 2, kind: input, shape index: {}]
  %s3 = inlined_call_operand.vmem [shape: f32[1,64], index: 3, kind: input, shape index: {}]
  %s4 = inlined_call_operand.vmem [shape: f32[578,64], index: 4, kind: output, shape index: {}]
  %s5 = sld [smem:[#allocation0]]
  $region97: #{inception_b_forward.6} parent=0
    _
  %s7 = ssub.s32 1, %s5
  %s8 = scalar_select 0, %s7, %s5
  $region1: #{inception_b_forward.6} parent=0
    #allocation2 [shape = 'u8[262144]{0}', space=vmem, size = 0x40000, scoped, tag = 'output window, operand 0']
    loop: start=0, step=1, limit=5
    $region2: #{inception_b_forward.6} parent=1 // loop_pre_header
      _
    $region3: #{inception_b_forward.6} parent=1 // loop_header
      %s10 = sphi 0, %s14
      %p11 = scmp.ge.s32.totalorder %s10, 5
      %s17 = sphi 0, %s29
      %s18 = sphi 0, %s25
      %s19 = sphi 0, %s17
      %s20 = sphi 0, %s18
      %s21 = sphi 0, %s19
      %s22 = sphi 0, %s20
      %s32 = sphi 0, %s34
      %s35 = sphi 0, %s32
      %s36 = sphi 0, %s35
      %s52 = sphi 0, %s36
      %s58 = sphi 0, %s60
      %s61 = sphi 0, %s58
      %s62 = sphi 0, %s61
      %s78 = sphi 0, %s62
      %s84 = sphi 0, %s86
      %s87 = sphi 0, %s84
      %s88 = sphi 0, %s87
      %s104 = sphi 0, %s88
      %s110 = sphi 0, %s112
      %s113 = sphi 0, %s110
      %s114 = sphi 0, %s113
      %s130 = sphi 0, %s114
      %s138 = sphi 0, %s140
      %s141 = sphi 0, %s138
      %s142 = sphi 0, %s141
      %s158 = sphi 0, %s142
    $region4: #{inception_b_forward.6} parent=1 // loop_header_branch
      %13 = sbr.rel (%p11) target = $region8
    $region5: #{inception_b_forward.6} parent=1 // loop_body
      %s15 = ssub.s32 %s10, 1
      %s16 = ssub.s32 %s10, 2
      %s23 = sadd.s32 1, %s18
      %p24 = scmp.ge.s32.totalorder %s23, 1
      %s25 = scalar_select %p24, 0, %s23
      %s26 = sadd.s32 1, %s17
      %s27 = scalar_select %p24, %s26, %s17
      %p28 = scmp.ge.s32.totalorder %s27, 3
      %s29 = scalar_select %p28, 0, %s27
      %s30 = ssub.s32 %s17, %s29
      %p31 = scmp.eq.s32.totalorder %s30, 0
      %s33 = sadd.s32 %s32, 1
      %s34 = scalar_select %p31, %s32, %s33
      %p37 = pneg %p31
      %p38 = scmp.eq.s32.totalorder %s10, 2
      %p39 = por %p37, %p38
      %p40 = scmp.ne.s32.totalorder %s32, %s35
      %p41 = scmp.eq.s32.totalorder %s10, 0
      %p42 = por %p40, %p41
      %p43 = scmp.ne.s32.totalorder %s32, %s35
      %p44 = scmp.eq.s32.totalorder %s15, 2
      %p45 = por %p43, %p44
      %p46 = scmp.ne.s32.totalorder %s35, %s36
      %p47 = scmp.eq.s32.totalorder %s15, 0
      %p48 = por %p46, %p47
      %p49 = scmp.ne.s32.totalorder %s35, %s36
      %p50 = scmp.eq.s32.totalorder %s16, 2
      %p51 = por %p49, %p50
      %p53 = scmp.ne.s32.totalorder %s36, %s52
      %p54 = scmp.eq.s32.totalorder %s16, 0
      %p55 = por %p53, %p54
      %s56 = ssub.s32 %s18, %s25
      %p57 = scmp.eq.s32.totalorder %s56, 0
      %s59 = sadd.s32 %s58, 1
      %s60 = scalar_select %p57, %s58, %s59
      %p63 = pneg %p57
      %p64 = scmp.eq.s32.totalorder %s10, 2
      %p65 = por %p63, %p64
      %p66 = scmp.ne.s32.totalorder %s58, %s61
      %p67 = scmp.eq.s32.totalorder %s10, 0
      %p68 = por %p66, %p67
      %p69 = scmp.ne.s32.totalorder %s58, %s61
      %p70 = scmp.eq.s32.totalorder %s15, 2
      %p71 = por %p69, %p70
      %p72 = scmp.ne.s32.totalorder %s61, %s62
      %p73 = scmp.eq.s32.totalorder %s15, 0
      %p74 = por %p72, %p73
      %p75 = scmp.ne.s32.totalorder %s61, %s62
      %p76 = scmp.eq.s32.totalorder %s16, 2
      %p77 = por %p75, %p76
      %p79 = scmp.ne.s32.totalorder %s62, %s78
      %p80 = scmp.eq.s32.totalorder %s16, 0
      %p81 = por %p79, %p80
      %s82 = ssub.s32 %s18, %s25
      %p83 = scmp.eq.s32.totalorder %s82, 0
      %s85 = sadd.s32 %s84, 1
      %s86 = scalar_select %p83, %s84, %s85
      %p89 = pneg %p83
      %p90 = scmp.eq.s32.totalorder %s10, 2
      %p91 = por %p89, %p90
      %p92 = scmp.ne.s32.totalorder %s84, %s87
      %p93 = scmp.eq.s32.totalorder %s10, 0
      %p94 = por %p92, %p93
      %p95 = scmp.ne.s32.totalorder %s84, %s87
      %p96 = scmp.eq.s32.totalorder %s15, 2
      %p97 = por %p95, %p96
      %p98 = scmp.ne.s32.totalorder %s87, %s88
      %p99 = scmp.eq.s32.totalorder %s15, 0
      %p100 = por %p98, %p99
      %p101 = scmp.ne.s32.totalorder %s87, %s88
      %p102 = scmp.eq.s32.totalorder %s16, 2
      %p103 = por %p101, %p102
      %p105 = scmp.ne.s32.totalorder %s88, %s104
      %p106 = scmp.eq.s32.totalorder %s16, 0
      %p107 = por %p105, %p106
      %s108 = ssub.s32 %s18, %s25
      %p109 = scmp.eq.s32.totalorder %s108, 0
      %s111 = sadd.s32 %s110, 1
      %s112 = scalar_select %p109, %s110, %s111
      %p115 = pneg %p109
      %p116 = scmp.eq.s32.totalorder %s10, 2
      %p117 = por %p115, %p116
      %p118 = scmp.ne.s32.totalorder %s110, %s113
      %p119 = scmp.eq.s32.totalorder %s10, 0
      %p120 = por %p118, %p119
      %p121 = scmp.ne.s32.totalorder %s110, %s113
      %p122 = scmp.eq.s32.totalorder %s15, 2
      %p123 = por %p121, %p122
      %p124 = scmp.ne.s32.totalorder %s113, %s114
      %p125 = scmp.eq.s32.totalorder %s15, 0
      %p126 = por %p124, %p125
      %p127 = scmp.ne.s32.totalorder %s113, %s114
      %p128 = scmp.eq.s32.totalorder %s16, 2
      %p129 = por %p127, %p128
      %p131 = scmp.ne.s32.totalorder %s114, %s130
      %p132 = scmp.eq.s32.totalorder %s16, 0
      %p133 = por %p131, %p132
      %s134 = ssub.s32 %s17, %s29
      %s135 = ssub.s32 %s18, %s25
      %s136 = sor.u32 %s134, %s135
      %p137 = scmp.eq.s32.totalorder %s136, 0
      %s139 = sadd.s32 %s138, 1
      %s140 = scalar_select %p137, %s138, %s139
      %p143 = pneg %p137
      %p144 = scmp.eq.s32.totalorder %s10, 2
      %p145 = por %p143, %p144
      %p146 = scmp.ne.s32.totalorder %s138, %s141
      %p147 = scmp.eq.s32.totalorder %s10, 0
      %p148 = por %p146, %p147
      %p149 = scmp.ne.s32.totalorder %s138, %s141
      %p150 = scmp.eq.s32.totalorder %s15, 2
      %p151 = por %p149, %p150
      %p152 = scmp.ne.s32.totalorder %s141, %s142
      %p153 = scmp.eq.s32.totalorder %s15, 0
      %p154 = por %p152, %p153
      %p155 = scmp.ne.s32.totalorder %s141, %s142
      %p156 = scmp.eq.s32.totalorder %s16, 2
      %p157 = por %p155, %p156
      %p159 = scmp.ne.s32.totalorder %s142, %s158
      %p160 = scmp.eq.s32.totalorder %s16, 0
      %p161 = por %p159, %p160
      %p162 = scmp.le.s32.totalorder 1, %s10
      %p163 = scmp.lt.s32.totalorder %s10, 4
      %p164 = pnand %p162, %p163
      %p165 = pneg %p164
      // Predicated region
      $region9: #{inception_b_forward.6} parent=5 // pred_check
        _
      $region10: #{inception_b_forward.6} parent=5 // pred_check_branch
        %167 = sbr.rel (%p164) target = $region12
      $region11: #{inception_b_forward.6} parent=5 // pred_region
        %s168 = ssub.s32 %s10, 1
        // Predicated region
        $region13: #{inception_b_forward.6} parent=11 // pred_check
          %p169 = pneg %p74
        $region14: #{inception_b_forward.6} parent=11 // pred_check_branch
          %171 = sbr.rel (%p169) target = $region16
        $region15: #{inception_b_forward.6} parent=11 // pred_region
          %p172 = scmp.lt.s32.totalorder %s20, 0
          %s173 = scalar_select %p172, %s20, 0
          %s174 = smul.addr %s173, 4
          %s175 = scalar_lea.vmem %s1, %s174
        $region16: #{inception_b_forward.6} parent=11 // pred_fallthru
          _
        // Predicated region
        $region17: #{inception_b_forward.6} parent=11 // pred_check
          %p176 = pneg %p100
        $region18: #{inception_b_forward.6} parent=11 // pred_check_branch
          %178 = sbr.rel (%p176) target = $region20
        $region19: #{inception_b_forward.6} parent=11 // pred_region
          %p179 = scmp.lt.s32.totalorder %s20, 0
          %s180 = scalar_select %p179, %s20, 0
          %s181 = scalar_lea.vmem %s2, %s180
        $region20: #{inception_b_forward.6} parent=11 // pred_fallthru
          _
        // Predicated region
        $region21: #{inception_b_forward.6} parent=11 // pred_check
          %p182 = pneg %p126
        $region22: #{inception_b_forward.6} parent=11 // pred_check_branch
          %184 = sbr.rel (%p182) target = $region24
        $region23: #{inception_b_forward.6} parent=11 // pred_region
          %p185 = scmp.lt.s32.totalorder %s20, 0
          %s186 = scalar_select %p185, %s20, 0
          %s187 = scalar_lea.vmem %s3, %s186
        $region24: #{inception_b_forward.6} parent=11 // pred_fallthru
          _
      $region12: #{inception_b_forward.6} parent=5 // pred_fallthru
        _
      %p188 = scmp.lt.s32.totalorder %s10, 3
      // Predicated region
      $region25: #{inception_b_forward.6} parent=5 // pred_check
        %p189 = pneg %p188
      $region26: #{inception_b_forward.6} parent=5 // pred_check_branch
        %191 = sbr.rel (%p189) target = $region28
      $region27: #{inception_b_forward.6} parent=5 // pred_region
        // Predicated region
        $region29: #{inception_b_forward.6} parent=27 // pred_check
          %p192 = pneg %p42
        $region30: #{inception_b_forward.6} parent=27 // pred_check_branch
          %194 = sbr.rel (%p192) target = $region32
        $region31: #{inception_b_forward.6} parent=27 // pred_region
          %s195 = smul.u32 32, %s17
          %s196 = ssub.s32 73, %s195
          %p197 = scmp.lt.s32.totalorder %s196, 32
          %s198 = scalar_select %p197, %s196, 32
          %s199 = smul.u32 64, %s198
          %p200 = scmp.lt.s32.totalorder %s195, 72
          %s201 = scalar_select %p200, %s195, 72
          %s202 = smul.addr %s201, 4
          %s203 = scalar_lea.vmem %s0, %s202
          %s204 = smul.u32 32, %s17
          %s205 = ssub.s32 73, %s204
          %p206 = scmp.lt.s32.totalorder %s205, 32
          %s207 = scalar_select %p206, %s205, 32
          %s208 = smul.u32 64, %s207
        $region32: #{inception_b_forward.6} parent=27 // pred_fallthru
          _
      $region28: #{inception_b_forward.6} parent=5 // pred_fallthru
        _
      %p209 = scmp.le.s32.totalorder 1, %s10
      %p210 = scmp.lt.s32.totalorder %s10, 4
      %p211 = pnand %p209, %p210
      %p212 = pneg %p211
      // Predicated region
      $region33: #{inception_b_forward.6} parent=5 // pred_check
        _
      $region34: #{inception_b_forward.6} parent=5 // pred_check_branch
        %214 = sbr.rel (%p211) target = $region36
      $region35: #{inception_b_forward.6} parent=5 // pred_region
        %s215 = ssub.s32 %s10, 1
        %s216 = smul.u32 32, %s19
        %s217 = ssub.s32 73, %s216
        %p218 = scmp.lt.s32.totalorder %s217, 32
        %s219 = scalar_select %p218, %s217, 32
        %s220 = smul.u32 64, %s219
        %p221 = scmp.lt.s32.totalorder %s216, 72
        %s222 = scalar_select %p221, %s216, 72
        %s223 = smul.addr %s222, 4
        %s224 = scalar_lea.vmem %s0, %s223
        %p225 = pneg %p48
        %p226 = pneg %p45
        %p227 = scmp.lt.s32.totalorder %s20, 0
        %s228 = scalar_select %p227, %s20, 0
        %s229 = smul.addr %s228, 4
        %s230 = scalar_lea.vmem %s1, %s229
        %p231 = pneg %p74
        %p232 = pneg %p71
        %p233 = scmp.lt.s32.totalorder %s20, 0
        %s234 = scalar_select %p233, %s20, 0
        %s235 = scalar_lea.vmem %s2, %s234
        %p236 = pneg %p100
        %p237 = pneg %p97
        %p238 = scmp.lt.s32.totalorder %s20, 0
        %s239 = scalar_select %p238, %s20, 0
        %s240 = scalar_lea.vmem %s3, %s239
        %p241 = pneg %p126
        %p242 = pneg %p123
        %p243 = pneg %p154
        %p244 = pneg %p151
        %s245 = sand.u32 %s141, 1
        %s246 = sand.u32 %s141, 1
        %s247 = smul.addr %s246, 256
        %s248 = scalar_lea.vmem [#allocation2], %s247
        %s249 = smul.u32 32, %s19
        %s250 = ssub.s32 73, %s249
        %p251 = scmp.lt.s32.totalorder %s250, 32
        %s252 = scalar_select %p251, %s250, 32
        %s253 = smul.u32 64, %s252
        %p254 = scmp.lt.s32.totalorder %s249, 72
        %s255 = scalar_select %p254, %s249, 72
        %s256 = smul.addr %s255, 4
        %s257 = scalar_lea.vmem %s0, %s256
        %s258 = smul.u32 32, %s19
        %s259 = ssub.s32 73, %s258
        %p260 = scmp.lt.s32.totalorder %s259, 32
        %s261 = scalar_select %p260, %s259, 32
        %s262 = smul.u32 64, %s261
        %p263 = scmp.lt.s32.totalorder %s20, 0
        %s264 = scalar_select %p263, %s20, 0
        %s265 = smul.addr %s264, 4
        %s266 = scalar_lea.vmem %s1, %s265
        %p267 = scmp.lt.s32.totalorder %s20, 0
        %s268 = scalar_select %p267, %s20, 0
        %s269 = scalar_lea.vmem %s2, %s268
        %p270 = scmp.lt.s32.totalorder %s20, 0
        %s271 = scalar_select %p270, %s20, 0
        %s272 = scalar_lea.vmem %s3, %s271
        %s273 = smul.u32 32, %s19
        %s274 = ssub.s32 73, %s273
        %p275 = scmp.lt.s32.totalorder %s274, 32
        %s276 = scalar_select %p275, %s274, 32
        %s277 = smul.u32 128, %s276
        %v279 = vld [vmem:[%s257] sm:$0xf]
        %v280 = vld [vmem:[%s257 + $0x4] sm:$0xf]
        %v281 = vld [vmem:[%s257 + $0x8] sm:$0xf]
        %v282 = vld [vmem:[%s257 + $0xc] sm:$0xf]
        %v283 = vld [vmem:[%s257 + $0x10] sm:$0xf]
        %v284 = vld [vmem:[%s257 + $0x14] sm:$0xf]
        %v285 = vld [vmem:[%s257 + $0x18] sm:$0xf]
        %v286 = vld [vmem:[%s257 + $0x1c] sm:$0xf]
        %v287 = vld [vmem:[%s257 + $0x20] sm:$0xf]
        %v288 = vld [vmem:[%s257 + $0x24] sm:$0xf]
        %v289 = vld [vmem:[%s257 + $0x28] sm:$0xf]
        %v290 = vld [vmem:[%s257 + $0x2c] sm:$0xf]
        %v291 = vld [vmem:[%s257 + $0x30] sm:$0xf]
        %v292 = vld [vmem:[%s257 + $0x34] sm:$0xf]
        %v293 = vld [vmem:[%s257 + $0x38] sm:$0xf]
        %v294 = vld [vmem:[%s257 + $0x3c] sm:$0xf]
        %v295 = vld [vmem:[%s257 + $0x40] sm:$0xf]
        %v296 = vld [vmem:[%s257 + $0x44] sm:$0xf]
        %v297 = vld [vmem:[%s257 + $0x48] sm:$0xf]
        %v298 = vld [vmem:[%s257 + $0x4c] sm:$0xf]
        %v299 = vld [vmem:[%s257 + $0x50] sm:$0xf]
        %v300 = vld [vmem:[%s257 + $0x54] sm:$0xf]
        %v301 = vld [vmem:[%s257 + $0x58] sm:$0xf]
        %v302 = vld [vmem:[%s257 + $0x5c] sm:$0xf]
        %v303 = vld [vmem:[%s257 + $0x60] sm:$0xf]
        %v304 = vld [vmem:[%s257 + $0x64] sm:$0xf]
        %v305 = vld [vmem:[%s257 + $0x68] sm:$0xf]
        %v306 = vld [vmem:[%s257 + $0x6c] sm:$0xf]
        %v307 = vld [vmem:[%s257 + $0x70] sm:$0xf]
        %v308 = vld [vmem:[%s257 + $0x74] sm:$0xf]
        %v309 = vld [vmem:[%s257 + $0x78] sm:$0xf]
        %v310 = vld [vmem:[%s257 + $0x7c] sm:$0xf]
        %v311 = vld [vmem:[%s266] sm:$0xf]
        %v312 = vld [vmem:[%s266 + $0x4] sm:$0xf]
        %v313 = vld [vmem:[%s266 + $0x8] sm:$0xf]
        %v314 = vld [vmem:[%s266 + $0xc] sm:$0xf]
        %v347 = vunpack.c.l.b16 %v279
        %v348 = vunpack.c.l.b16 %v280
        %v349 = vunpack.c.l.b16 %v281
        %v350 = vunpack.c.l.b16 %v282
        %v351 = vunpack.c.l.b16 %v283
        %v352 = vunpack.c.l.b16 %v284
        %v353 = vunpack.c.l.b16 %v285
        %v354 = vunpack.c.l.b16 %v286
        %v355 = vunpack.c.l.b16 %v287
        %v356 = vunpack.c.l.b16 %v288
        %v357 = vunpack.c.l.b16 %v289
        %v358 = vunpack.c.l.b16 %v290
        %v359 = vunpack.c.l.b16 %v291
        %v360 = vunpack.c.l.b16 %v292
        %v361 = vunpack.c.l.b16 %v293
        %v362 = vunpack.c.l.b16 %v294
        %v363 = vunpack.c.l.b16 %v295
        %v364 = vunpack.c.l.b16 %v296
        %v365 = vunpack.c.l.b16 %v297
        %v366 = vunpack.c.l.b16 %v298
        %v367 = vunpack.c.l.b16 %v299
        %v368 = vunpack.c.l.b16 %v300
        %v369 = vunpack.c.l.b16 %v301
        %v370 = vunpack.c.l.b16 %v302
        %v371 = vunpack.c.l.b16 %v303
        %v372 = vunpack.c.l.b16 %v304
        %v373 = vunpack.c.l.b16 %v305
        %v374 = vunpack.c.l.b16 %v306
        %v375 = vunpack.c.l.b16 %v307
        %v376 = vunpack.c.l.b16 %v308
        %v377 = vunpack.c.l.b16 %v309
        %v378 = vunpack.c.l.b16 %v310
        %v379 = vpack.c.b16 %v348, %v347
        %v380 = vpack.c.b16 %v350, %v349
        %v381 = vpack.c.b16 %v352, %v351
        %v382 = vpack.c.b16 %v354, %v353
        %v383 = vpack.c.b16 %v356, %v355
        %v384 = vpack.c.b16 %v358, %v357
        %v385 = vpack.c.b16 %v360, %v359
        %v386 = vpack.c.b16 %v362, %v361
        %v387 = vpack.c.b16 %v364, %v363
        %v388 = vpack.c.b16 %v366, %v365
        %v389 = vpack.c.b16 %v368, %v367
        %v390 = vpack.c.b16 %v370, %v369
        %v391 = vpack.c.b16 %v372, %v371
        %v392 = vpack.c.b16 %v374, %v373
        %v393 = vpack.c.b16 %v376, %v375
        %v394 = vpack.c.b16 %v378, %v377
        %v399 = vunpack.c.l.b16 %v311
        %v400 = vunpack.c.l.b16 %v312
        %v401 = vunpack.c.l.b16 %v313
        %v402 = vunpack.c.l.b16 %v314
        %v403 = vpack.c.b16 %v400, %v399
        %v404 = vpack.c.b16 %v402, %v401
        %vm407 = vcmask 261120
        %v409 = vsel %vm407, %v379, 0
        %v412 = vsel %vm407, %v380, 0
        %v415 = vsel %vm407, %v381, 0
        %v418 = vsel %vm407, %v382, 0
        %v421 = vsel %vm407, %v383, 0
        %v424 = vsel %vm407, %v384, 0
        %v427 = vsel %vm407, %v385, 0
        %v430 = vsel %vm407, %v386, 0
        %v433 = vsel %vm407, %v387, 0
        %v436 = vsel %vm407, %v388, 0
        %v439 = vsel %vm407, %v389, 0
        %v442 = vsel %vm407, %v390, 0
        %v445 = vsel %vm407, %v391, 0
        %v448 = vsel %vm407, %v392, 0
        %v451 = vsel %vm407, %v393, 0
        %v454 = vsel %vm407, %v394, 0
        %456 = vmatprep.subr.bf16.mxu0 0
        %457 = vmatpush1.bf16.msra.mxu0 %v403
        %458 = vmatprep.subr.bf16.mxu0 0
        %459 = vmatpush1.bf16.msra.mxu0 %v404
        %460 = vmatprep.subr.bf16.mxu0 0
        %461 = vmatpush1.bf16.msra.mxu0 0
        %462 = vmatprep.subr.bf16.mxu0 0
        %463 = vmatpush1.bf16.msra.mxu0 0
        %464 = vmatprep.subr.bf16.mxu0 0
        %465 = vmatpush1.bf16.msra.mxu0 0
        %466 = vmatprep.subr.bf16.mxu0 0
        %467 = vmatpush1.bf16.msra.mxu0 0
        %468 = vmatprep.subr.bf16.mxu0 0
        %469 = vmatpush1.bf16.msra.mxu0 0
        %470 = vmatprep.subr.bf16.mxu0 0
        %471 = vmatpush1.bf16.msra.mxu0 0
        %472 = vmatprep.subr.bf16.mxu0 0
        %473 = vmatpush1.bf16.msra.mxu0 0
        %474 = vmatprep.subr.bf16.mxu0 0
        %475 = vmatpush1.bf16.msra.mxu0 0
        %476 = vmatprep.subr.bf16.mxu0 0
        %477 = vmatpush1.bf16.msra.mxu0 0
        %478 = vmatprep.subr.bf16.mxu0 0
        %479 = vmatpush1.bf16.msra.mxu0 0
        %480 = vmatprep.subr.bf16.mxu0 0
        %481 = vmatpush1.bf16.msra.mxu0 0
        %482 = vmatprep.subr.bf16.mxu0 0
        %483 = vmatpush1.bf16.msra.mxu0 0
        %484 = vmatprep.subr.bf16.mxu0 0
        %485 = vmatpush1.bf16.msra.mxu0 0
        %486 = vmatprep.subr.bf16.mxu0 0
        %487 = vmatpush1.bf16.msra.mxu0 0
        %488 = vmatprep.mubr.bf16.mxu0 0
        %489 = vmatmul.mubr.bf16.gmra.mrb[0].mxu0 %v409
        %v490 = vpop.f32.mrb[0].mxu0
        %v491 = vadd.f32 0.0, %v490
        %v492 = vpop.f32.mrb[0].mxu0
        %v493 = vpop.f32.mrb[0].mxu0
        %v494 = vadd.f32 0.0, %v493
        %v495 = vpop.f32.mrb[0].mxu0
        %496 = vmatprep.mubr.bf16.mxu0 0
        %497 = vmatmul.mubr.bf16.gmra.mrb[0].mxu0 %v412
        %v498 = vpop.f32.mrb[0].mxu0
        %v499 = vadd.f32 0.0, %v498
        %v500 = vpop.f32.mrb[0].mxu0
        %v501 = vpop.f32.mrb[0].mxu0
        %v502 = vadd.f32 0.0, %v501
        %v503 = vpop.f32.mrb[0].mxu0
        %504 = vmatprep.mubr.bf16.mxu0 0
        %505 = vmatmul.mubr.bf16.gmra.mrb[0].mxu0 %v415
        %v506 = vpop.f32.mrb[0].mxu0
        %v507 = vadd.f32 0.0, %v506
        %v508 = vpop.f32.mrb[0].mxu0
        %v509 = vpop.f32.mrb[0].mxu0
        %v510 = vadd.f32 0.0, %v509
        %v511 = vpop.f32.mrb[0].mxu0
        %512 = vmatprep.mubr.bf16.mxu0 0
        %513 = vmatmul.mubr.bf16.gmra.mrb[0].mxu0 %v418
        %v514 = vpop.f32.mrb[0].mxu0
        %v515 = vadd.f32 0.0, %v514
        %v516 = vpop.f32.mrb[0].mxu0
        %v517 = vpop.f32.mrb[0].mxu0
        %v518 = vadd.f32 0.0, %v517
        %v519 = vpop.f32.mrb[0].mxu0
        %520 = vmatprep.mubr.bf16.mxu0 0
        %521 = vmatmul.mubr.bf16.gmra.mrb[0].mxu0 %v421
        %v522 = vpop.f32.mrb[0].mxu0
        %v523 = vadd.f32 0.0, %v522
        %v524 = vpop.f32.mrb[0].mxu0
        %v525 = vpop.f32.mrb[0].mxu0
        %v526 = vadd.f32 0.0, %v525
        %v527 = vpop.f32.mrb[0].mxu0
        %528 = vmatprep.mubr.bf16.mxu0 0
        %529 = vmatmul.mubr.bf16.gmra.mrb[0].mxu0 %v424
        %v530 = vpop.f32.mrb[0].mxu0
        %v531 = vadd.f32 0.0, %v530
        %v532 = vpop.f32.mrb[0].mxu0
        %v533 = vpop.f32.mrb[0].mxu0
        %v534 = vadd.f32 0.0, %v533
        %v535 = vpop.f32.mrb[0].mxu0
        %536 = vmatprep.mubr.bf16.mxu0 0
        %537 = vmatmul.mubr.bf16.gmra.mrb[0].mxu0 %v427
        %v538 = vpop.f32.mrb[0].mxu0
        %v539 = vadd.f32 0.0, %v538
        %v540 = vpop.f32.mrb[0].mxu0
        %v541 = vpop.f32.mrb[0].mxu0
        %v542 = vadd.f32 0.0, %v541
        %v543 = vpop.f32.mrb[0].mxu0
        %544 = vmatprep.mubr.bf16.mxu0 0
        %545 = vmatmul.mubr.bf16.gmra.mrb[0].mxu0 %v430
        %v546 = vpop.f32.mrb[0].mxu0
        %v547 = vadd.f32 0.0, %v546
        %v548 = vpop.f32.mrb[0].mxu0
        %v549 = vpop.f32.mrb[0].mxu0
        %v550 = vadd.f32 0.0, %v549
        %v551 = vpop.f32.mrb[0].mxu0
        %552 = vmatprep.mubr.bf16.mxu0 0
        %553 = vmatmul.mubr.bf16.gmra.mrb[0].mxu0 %v433
        %v554 = vpop.f32.mrb[0].mxu0
        %v555 = vadd.f32 0.0, %v554
        %v556 = vpop.f32.mrb[0].mxu0
        %v557 = vpop.f32.mrb[0].mxu0
        %v558 = vadd.f32 0.0, %v557
        %v559 = vpop.f32.mrb[0].mxu0
        %560 = vmatprep.mubr.bf16.mxu0 0
        %561 = vmatmul.mubr.bf16.gmra.mrb[0].mxu0 %v436
        %v562 = vpop.f32.mrb[0].mxu0
        %v563 = vadd.f32 0.0, %v562
        %v564 = vpop.f32.mrb[0].mxu0
        %v565 = vpop.f32.mrb[0].mxu0
        %v566 = vadd.f32 0.0, %v565
        %v567 = vpop.f32.mrb[0].mxu0
        %568 = vmatprep.mubr.bf16.mxu0 0
        %569 = vmatmul.mubr.bf16.gmra.mrb[0].mxu0 %v439
        %v570 = vpop.f32.mrb[0].mxu0
        %v571 = vadd.f32 0.0, %v570
        %v572 = vpop.f32.mrb[0].mxu0
        %v573 = vpop.f32.mrb[0].mxu0
        %v574 = vadd.f32 0.0, %v573
        %v575 = vpop.f32.mrb[0].mxu0
        %576 = vmatprep.mubr.bf16.mxu0 0
        %577 = vmatmul.mubr.bf16.gmra.mrb[0].mxu0 %v442
        %v578 = vpop.f32.mrb[0].mxu0
        %v579 = vadd.f32 0.0, %v578
        %v580 = vpop.f32.mrb[0].mxu0
        %v581 = vpop.f32.mrb[0].mxu0
        %v582 = vadd.f32 0.0, %v581
        %v583 = vpop.f32.mrb[0].mxu0
        %584 = vmatprep.mubr.bf16.mxu0 0
        %585 = vmatmul.mubr.bf16.gmra.mrb[0].mxu0 %v445
        %v586 = vpop.f32.mrb[0].mxu0
        %v587 = vadd.f32 0.0, %v586
        %v588 = vpop.f32.mrb[0].mxu0
        %v589 = vpop.f32.mrb[0].mxu0
        %v590 = vadd.f32 0.0, %v589
        %v591 = vpop.f32.mrb[0].mxu0
        %592 = vmatprep.mubr.bf16.mxu0 0
        %593 = vmatmul.mubr.bf16.gmra.mrb[0].mxu0 %v448
        %v594 = vpop.f32.mrb[0].mxu0
        %v595 = vadd.f32 0.0, %v594
        %v596 = vpop.f32.mrb[0].mxu0
        %v597 = vpop.f32.mrb[0].mxu0
        %v598 = vadd.f32 0.0, %v597
        %v599 = vpop.f32.mrb[0].mxu0
        %600 = vmatprep.mubr.bf16.mxu0 0
        %601 = vmatmul.mubr.bf16.gmra.mrb[0].mxu0 %v451
        %v602 = vpop.f32.mrb[0].mxu0
        %v603 = vadd.f32 0.0, %v602
        %v604 = vpop.f32.mrb[0].mxu0
        %v605 = vpop.f32.mrb[0].mxu0
        %v606 = vadd.f32 0.0, %v605
        %v607 = vpop.f32.mrb[0].mxu0
        %608 = vmatprep.mubr.bf16.mxu0 0
        %609 = vmatmul.mubr.bf16.gmra.mrb[0].mxu0 %v454
        %v610 = vpop.f32.mrb[0].mxu0
        %v611 = vadd.f32 0.0, %v610
        %v612 = vpop.f32.mrb[0].mxu0
        %v613 = vpop.f32.mrb[0].mxu0
        %v614 = vadd.f32 0.0, %v613
        %v615 = vpop.f32.mrb[0].mxu0
        %616 = vdwg.mxu0
        %v617 = vld [vmem:[%s269] sm:$0x1]
        %v619 = vlaneseq
        %v620 = vshrl.u32 %v619, 7
        %v621 = vsub.s32 0, %v620
        %v622 = vrot.slane %v617, %v621
        %v624 = vmul.f32 %v491, %v622
        %v625 = vmul.f32 %v494, %v622
        %v626 = vmul.f32 %v499, %v622
        %v627 = vmul.f32 %v502, %v622
        %v628 = vmul.f32 %v507, %v622
        %v629 = vmul.f32 %v510, %v622
        %v630 = vmul.f32 %v515, %v622
        %v631 = vmul.f32 %v518, %v622
        %v632 = vmul.f32 %v523, %v622
        %v633 = vmul.f32 %v526, %v622
        %v634 = vmul.f32 %v531, %v622
        %v635 = vmul.f32 %v534, %v622
        %v636 = vmul.f32 %v539, %v622
        %v637 = vmul.f32 %v542, %v622
        %v638 = vmul.f32 %v547, %v622
        %v639 = vmul.f32 %v550, %v622
        %v640 = vmul.f32 %v555, %v622
        %v641 = vmul.f32 %v558, %v622
        %v642 = vmul.f32 %v563, %v622
        %v643 = vmul.f32 %v566, %v622
        %v644 = vmul.f32 %v571, %v622
        %v645 = vmul.f32 %v574, %v622
        %v646 = vmul.f32 %v579, %v622
        %v647 = vmul.f32 %v582, %v622
        %v648 = vmul.f32 %v587, %v622
        %v649 = vmul.f32 %v590, %v622
        %v650 = vmul.f32 %v595, %v622
        %v651 = vmul.f32 %v598, %v622
        %v652 = vmul.f32 %v603, %v622
        %v653 = vmul.f32 %v606, %v622
        %v654 = vmul.f32 %v611, %v622
        %v655 = vmul.f32 %v614, %v622
        %v656 = vld [vmem:[%s272] sm:$0x1]
        %v658 = vlaneseq
        %v659 = vshrl.u32 %v658, 7
        %v660 = vsub.s32 0, %v659
        %v661 = vrot.slane %v656, %v660
        %v663 = vadd.f32 %v624, %v661
        %v664 = vadd.f32 %v625, %v661
        %v665 = vadd.f32 %v626, %v661
        %v666 = vadd.f32 %v627, %v661
        %v667 = vadd.f32 %v628, %v661
        %v668 = vadd.f32 %v629, %v661
        %v669 = vadd.f32 %v630, %v661
        %v670 = vadd.f32 %v631, %v661
        %v671 = vadd.f32 %v632, %v661
        %v672 = vadd.f32 %v633, %v661
        %v673 = vadd.f32 %v634, %v661
        %v674 = vadd.f32 %v635, %v661
        %v675 = vadd.f32 %v636, %v661
        %v676 = vadd.f32 %v637, %v661
        %v677 = vadd.f32 %v638, %v661
        %v678 = vadd.f32 %v639, %v661
        %v679 = vadd.f32 %v640, %v661
        %v680 = vadd.f32 %v641, %v661
        %v681 = vadd.f32 %v642, %v661
        %v682 = vadd.f32 %v643, %v661
        %v683 = vadd.f32 %v644, %v661
        %v684 = vadd.f32 %v645, %v661
        %v685 = vadd.f32 %v646, %v661
        %v686 = vadd.f32 %v647, %v661
        %v687 = vadd.f32 %v648, %v661
        %v688 = vadd.f32 %v649, %v661
        %v689 = vadd.f32 %v650, %v661
        %v690 = vadd.f32 %v651, %v661
        %v691 = vadd.f32 %v652, %v661
        %v692 = vadd.f32 %v653, %v661
        %v693 = vadd.f32 %v654, %v661
        %v694 = vadd.f32 %v655, %v661
        %v695 = vmax.f32 %v663, 0.0
        %v696 = vmax.f32 %v664, 0.0
        %v697 = vmax.f32 %v665, 0.0
        %v698 = vmax.f32 %v666, 0.0
        %v699 = vmax.f32 %v667, 0.0
        %v700 = vmax.f32 %v668, 0.0
        %v701 = vmax.f32 %v669, 0.0
        %v702 = vmax.f32 %v670, 0.0
        %v703 = vmax.f32 %v671, 0.0
        %v704 = vmax.f32 %v672, 0.0
        %v705 = vmax.f32 %v673, 0.0
        %v706 = vmax.f32 %v674, 0.0
        %v707 = vmax.f32 %v675, 0.0
        %v708 = vmax.f32 %v676, 0.0
        %v709 = vmax.f32 %v677, 0.0
        %v710 = vmax.f32 %v678, 0.0
        %v711 = vmax.f32 %v679, 0.0
        %v712 = vmax.f32 %v680, 0.0
        %v713 = vmax.f32 %v681, 0.0
        %v714 = vmax.f32 %v682, 0.0
        %v715 = vmax.f32 %v683, 0.0
        %v716 = vmax.f32 %v684, 0.0
        %v717 = vmax.f32 %v685, 0.0
        %v718 = vmax.f32 %v686, 0.0
        %v719 = vmax.f32 %v687, 0.0
        %v720 = vmax.f32 %v688, 0.0
        %v721 = vmax.f32 %v689, 0.0
        %v722 = vmax.f32 %v690, 0.0
        %v723 = vmax.f32 %v691, 0.0
        %v724 = vmax.f32 %v692, 0.0
        %v725 = vmax.f32 %v693, 0.0
        %v726 = vmax.f32 %v694, 0.0
        %vm727 = vcmask 523264
        %728 = vst.msk [vmem:[%s248] sm:$0xff] %vm727, %v695
        %729 = vst.msk [vmem:[%s248 + $0x8] sm:$0xff] %vm727, %v696
        %730 = vst.msk [vmem:[%s248 + $0x10] sm:$0xff] %vm727, %v697
        %731 = vst.msk [vmem:[%s248 + $0x18] sm:$0xff] %vm727, %v698
        %732 = vst.msk [vmem:[%s248 + $0x20] sm:$0xff] %vm727, %v699
        %733 = vst.msk [vmem:[%s248 + $0x28] sm:$0xff] %vm727, %v700
        %734 = vst.msk [vmem:[%s248 + $0x30] sm:$0xff] %vm727, %v701
        %735 = vst.msk [vmem:[%s248 + $0x38] sm:$0xff] %vm727, %v702
        %736 = vst.msk [vmem:[%s248 + $0x40] sm:$0xff] %vm727, %v703
        %737 = vst.msk [vmem:[%s248 + $0x48] sm:$0xff] %vm727, %v704
        %738 = vst.msk [vmem:[%s248 + $0x50] sm:$0xff] %vm727, %v705
        %739 = vst.msk [vmem:[%s248 + $0x58] sm:$0xff] %vm727, %v706
        %740 = vst.msk [vmem:[%s248 + $0x60] sm:$0xff] %vm727, %v707
        %741 = vst.msk [vmem:[%s248 + $0x68] sm:$0xff] %vm727, %v708
        %742 = vst.msk [vmem:[%s248 + $0x70] sm:$0xff] %vm727, %v709
        %743 = vst.msk [vmem:[%s248 + $0x78] sm:$0xff] %vm727, %v710
        %744 = vst.msk [vmem:[%s248 + $0x80] sm:$0xff] %vm727, %v711
        %745 = vst.msk [vmem:[%s248 + $0x88] sm:$0xff] %vm727, %v712
        %746 = vst.msk [vmem:[%s248 + $0x90] sm:$0xff] %vm727, %v713
        %747 = vst.msk [vmem:[%s248 + $0x98] sm:$0xff] %vm727, %v714
        %748 = vst.msk [vmem:[%s248 + $0xa0] sm:$0xff] %vm727, %v715
        %749 = vst.msk [vmem:[%s248 + $0xa8] sm:$0xff] %vm727, %v716
        %750 = vst.msk [vmem:[%s248 + $0xb0] sm:$0xff] %vm727, %v717
        %751 = vst.msk [vmem:[%s248 + $0xb8] sm:$0xff] %vm727, %v718
        %752 = vst.msk [vmem:[%s248 + $0xc0] sm:$0xff] %vm727, %v719
        %753 = vst.msk [vmem:[%s248 + $0xc8] sm:$0xff] %vm727, %v720
        %754 = vst.msk [vmem:[%s248 + $0xd0] sm:$0xff] %vm727, %v721
        %755 = vst.msk [vmem:[%s248 + $0xd8] sm:$0xff] %vm727, %v722
        %756 = vst.msk [vmem:[%s248 + $0xe0] sm:$0xff] %vm727, %v723
        %757 = vst.msk [vmem:[%s248 + $0xe8] sm:$0xff] %vm727, %v724
        %758 = vst.msk [vmem:[%s248 + $0xf0] sm:$0xff] %vm727, %v725
        %759 = vst.msk [vmem:[%s248 + $0xf8] sm:$0xff] %vm727, %v726
        %s760 = sand.u32 %s141, 1
        %s761 = sand.u32 %s141, 1
        %s762 = smul.addr %s761, 256
        %s763 = scalar_lea.vmem [#allocation2], %s762
        // Predicated region
        $region37: #{inception_b_forward.6} parent=35 // pred_check
          %p764 = pneg %p151
        $region38: #{inception_b_forward.6} parent=35 // pred_check_branch
          %766 = sbr.rel (%p764) target = $region40
        $region39: #{inception_b_forward.6} parent=35 // pred_region
          %s767 = smul.u32 32, %s19
          %s768 = ssub.s32 73, %s767
          %p769 = scmp.lt.s32.totalorder %s768, 32
          %s770 = scalar_select %p769, %s768, 32
          %s771 = smul.u32 128, %s770
          %p772 = scmp.ne.s32.totalorder 0, %s771
          %s773 = sadd.s32 %s20, %s767
          %s774 = smul.addr %s773, 8
          %s775 = scalar_lea.vmem %s4, %s774
          // Predicated region
          $region41: #{inception_b_forward.6} parent=39 // pred_check
            %p776 = pneg %p772
          $region42: #{inception_b_forward.6} parent=39 // pred_check_branch
            %778 = sbr.rel (%p776) target = $region44
          $region43: #{inception_b_forward.6} parent=39 // pred_region
            // Predicated region
            $region45: #{inception_b_forward.6} parent=43 // pred_check
              _
            $region46: #{inception_b_forward.6} parent=43 // pred_check_branch
              %780 = sbr.rel (0) target = $region48
            $region47: #{inception_b_forward.6} parent=43 // pred_region
              // Predicated region
              $region67: #{inception_b_forward.6} parent=47 // pred_check
                _
              $region68: #{inception_b_forward.6} parent=47 // pred_check_branch
                %891 = sbr.rel (0) target = $region70
              $region69: #{inception_b_forward.6} parent=47 // pred_region
                %s892 = sshrl.u32 %s770, 5
                // While loop
                $region71: #{inception_b_forward.6} parent=69 // loop_pre_header
                  _
                $region72: #{inception_b_forward.6} parent=69 // loop_header
                  %s894 = sphi 0, %s896
                  %p895 = scmp.ge.s32.totalorder %s894, %s892
                  %s899 = sphi 0, %s968
                  %s900 = sphi %s763, %s971
                  %s901 = sphi %s775, %s972
                $region73: #{inception_b_forward.6} parent=69 // loop_header_branch
                  %898 = sbr.rel (%p895) target = $region77
                $region74: #{inception_b_forward.6} parent=69 // loop_body
                  %v902 = vld [vmem:[%s900] sm:$0xff]
                  %903 = vst [vmem:[%s901] sm:$0xff] %v902
                  %v904 = vld [vmem:[%s900 + $0x8] sm:$0xff]
                  %905 = vst [vmem:[%s901 + $0x8] sm:$0xff] %v904
                  %v906 = vld [vmem:[%s900 + $0x10] sm:$0xff]
                  %907 = vst [vmem:[%s901 + $0x10] sm:$0xff] %v906
                  %v908 = vld [vmem:[%s900 + $0x18] sm:$0xff]
                  %909 = vst [vmem:[%s901 + $0x18] sm:$0xff] %v908
                  %v910 = vld [vmem:[%s900 + $0x20] sm:$0xff]
                  %911 = vst [vmem:[%s901 + $0x20] sm:$0xff] %v910
                  %v912 = vld [vmem:[%s900 + $0x28] sm:$0xff]
                  %913 = vst [vmem:[%s901 + $0x28] sm:$0xff] %v912
                  %v914 = vld [vmem:[%s900 + $0x30] sm:$0xff]
                  %915 = vst [vmem:[%s901 + $0x30] sm:$0xff] %v914
                  %v916 = vld [vmem:[%s900 + $0x38] sm:$0xff]
                  %917 = vst [vmem:[%s901 + $0x38] sm:$0xff] %v916
                  %v918 = vld [vmem:[%s900 + $0x40] sm:$0xff]
                  %919 = vst [vmem:[%s901 + $0x40] sm:$0xff] %v918
                  %v920 = vld [vmem:[%s900 + $0x48] sm:$0xff]
                  %921 = vst [vmem:[%s901 + $0x48] sm:$0xff] %v920
                  %v922 = vld [vmem:[%s900 + $0x50] sm:$0xff]
                  %923 = vst [vmem:[%s901 + $0x50] sm:$0xff] %v922
                  %v924 = vld [vmem:[%s900 + $0x58] sm:$0xff]
                  %925 = vst [vmem:[%s901 + $0x58] sm:$0xff] %v924
                  %v926 = vld [vmem:[%s900 + $0x60] sm:$0xff]
                  %927 = vst [vmem:[%s901 + $0x60] sm:$0xff] %v926
                  %v928 = vld [vmem:[%s900 + $0x68] sm:$0xff]
                  %929 = vst [vmem:[%s901 + $0x68] sm:$0xff] %v928
                  %v930 = vld [vmem:[%s900 + $0x70] sm:$0xff]
                  %931 = vst [vmem:[%s901 + $0x70] sm:$0xff] %v930
                  %v932 = vld [vmem:[%s900 + $0x78] sm:$0xff]
                  %933 = vst [vmem:[%s901 + $0x78] sm:$0xff] %v932
                  %v934 = vld [vmem:[%s900 + $0x80] sm:$0xff]
                  %935 = vst [vmem:[%s901 + $0x80] sm:$0xff] %v934
                  %v936 = vld [vmem:[%s900 + $0x88] sm:$0xff]
                  %937 = vst [vmem:[%s901 + $0x88] sm:$0xff] %v936
                  %v938 = vld [vmem:[%s900 + $0x90] sm:$0xff]
                  %939 = vst [vmem:[%s901 + $0x90] sm:$0xff] %v938
                  %v940 = vld [vmem:[%s900 + $0x98] sm:$0xff]
                  %941 = vst [vmem:[%s901 + $0x98] sm:$0xff] %v940
                  %v942 = vld [vmem:[%s900 + $0xa0] sm:$0xff]
                  %943 = vst [vmem:[%s901 + $0xa0] sm:$0xff] %v942
                  %v944 = vld [vmem:[%s900 + $0xa8] sm:$0xff]
                  %945 = vst [vmem:[%s901 + $0xa8] sm:$0xff] %v944
                  %v946 = vld [vmem:[%s900 + $0xb0] sm:$0xff]
                  %947 = vst [vmem:[%s901 + $0xb0] sm:$0xff] %v946
                  %v948 = vld [vmem:[%s900 + $0xb8] sm:$0xff]
                  %949 = vst [vmem:[%s901 + $0xb8] sm:$0xff] %v948
                  %v950 = vld [vmem:[%s900 + $0xc0] sm:$0xff]
                  %951 = vst [vmem:[%s901 + $0xc0] sm:$0xff] %v950
                  %v952 = vld [vmem:[%s900 + $0xc8] sm:$0xff]
                  %953 = vst [vmem:[%s901 + $0xc8] sm:$0xff] %v952
                  %v954 = vld [vmem:[%s900 + $0xd0] sm:$0xff]
                  %955 = vst [vmem:[%s901 + $0xd0] sm:$0xff] %v954
                  %v956 = vld [vmem:[%s900 + $0xd8] sm:$0xff]
                  %957 = vst [vmem:[%s901 + $0xd8] sm:$0xff] %v956
                  %v958 = vld [vmem:[%s900 + $0xe0] sm:$0xff]
                  %959 = vst [vmem:[%s901 + $0xe0] sm:$0xff] %v958
                  %v960 = vld [vmem:[%s900 + $0xe8] sm:$0xff]
                  %961 = vst [vmem:[%s901 + $0xe8] sm:$0xff] %v960
                  %v962 = vld [vmem:[%s900 + $0xf0] sm:$0xff]
                  %963 = vst [vmem:[%s901 + $0xf0] sm:$0xff] %v962
                  %v964 = vld [vmem:[%s900 + $0xf8] sm:$0xff]
                  %965 = vst [vmem:[%s901 + $0xf8] sm:$0xff] %v964
                  %s966 = sadd.s32 1, %s899
                  %p967 = scmp.ge.s32.totalorder %s966, %s892
                  %s968 = scalar_select %p967, 0, %s966
                  %s969 = smul.u32 %s968, 256
                  %s970 = smul.u32 %s968, 256
                  %s971 = scalar_lea.vmem %s763, %s969 [#allocation2]
                  %s972 = scalar_lea.vmem %s775, %s970
                $region75: #{inception_b_forward.6} parent=69 // loop_footer
                  %s896 = sadd.s32 %s894, 1
                $region76: #{inception_b_forward.6} parent=69 // loop_footer_branch
                  %893 = sbr.rel target = $region72
                $region77: #{inception_b_forward.6} parent=69 // loop_exit
                  _
                %s973 = sshrl.u32 %s770, 5
                %s974 = sand.u32 %s770, 31
                %s975 = smul.u32 %s973, 32
                %s976 = smul.u32 8, %s975
                %s977 = scalar_lea.vmem %s763, %s976 [#allocation2]
                %s978 = smul.u32 8, %s975
                %s979 = scalar_lea.vmem %s775, %s978
                // While loop
                $region78: #{inception_b_forward.6} parent=69 // loop_pre_header
                  _
                $region79: #{inception_b_forward.6} parent=69 // loop_header
                  %s981 = sphi 0, %s983
                  %p982 = scmp.ge.s32.totalorder %s981, %s974
                  %s986 = sphi 0, %s993
                  %s987 = sphi %s977, %s996
                  %s988 = sphi %s979, %s997
                $region80: #{inception_b_forward.6} parent=69 // loop_header_branch
                  %985 = sbr.rel (%p982) target = $region84
                $region81: #{inception_b_forward.6} parent=69 // loop_body
                  %v989 = vld [vmem:[%s987] sm:$0xff]
                  %990 = vst [vmem:[%s988] sm:$0xff] %v989
                  %s991 = sadd.s32 1, %s986
                  %p992 = scmp.ge.s32.totalorder %s991, %s974
                  %s993 = scalar_select %p992, 0, %s991
                  %s994 = smul.u32 %s993, 8
                  %s995 = smul.u32 %s993, 8
                  %s996 = scalar_lea.vmem %s977, %s994 [#allocation2]
                  %s997 = scalar_lea.vmem %s979, %s995
                $region82: #{inception_b_forward.6} parent=69 // loop_footer
                  %s983 = sadd.s32 %s981, 1
                $region83: #{inception_b_forward.6} parent=69 // loop_footer_branch
                  %980 = sbr.rel target = $region79
                $region84: #{inception_b_forward.6} parent=69 // loop_exit
                  _
              $region70: #{inception_b_forward.6} parent=47 // pred_fallthru
                _
              // Predicated region
              $region85: #{inception_b_forward.6} parent=47 // pred_check
                _
              $region86: #{inception_b_forward.6} parent=47 // pred_check_branch
                %999 = sbr.rel target = $region88
              $region87: #{inception_b_forward.6} parent=47 // pred_region
                _
              $region88: #{inception_b_forward.6} parent=47 // pred_fallthru
                _
            $region48: #{inception_b_forward.6} parent=43 // pred_fallthru
              _
            // Predicated region
            $region49: #{inception_b_forward.6} parent=43 // pred_check
              _
            $region50: #{inception_b_forward.6} parent=43 // pred_check_branch
              %782 = sbr.rel target = $region52
            $region51: #{inception_b_forward.6} parent=43 // pred_region
              %s784 = sshrl.u32 %s770, 5
              // While loop
              $region53: #{inception_b_forward.6} parent=51 // loop_pre_header
                _
              $region54: #{inception_b_forward.6} parent=51 // loop_header
                %s786 = sphi 0, %s788
                %p787 = scmp.ge.s32.totalorder %s786, %s784
                %s791 = sphi 0, %s860
                %s792 = sphi %s763, %s863
                %s793 = sphi %s775, %s864
              $region55: #{inception_b_forward.6} parent=51 // loop_header_branch
                %790 = sbr.rel (%p787) target = $region59
              $region56: #{inception_b_forward.6} parent=51 // loop_body
                %v794 = vld [vmem:[%s792] sm:$0xff]
                %795 = vst [vmem:[%s793] sm:$0xff] %v794
                %v796 = vld [vmem:[%s792 + $0x8] sm:$0xff]
                %797 = vst [vmem:[%s793 + $0x8] sm:$0xff] %v796
                %v798 = vld [vmem:[%s792 + $0x10] sm:$0xff]
                %799 = vst [vmem:[%s793 + $0x10] sm:$0xff] %v798
                %v800 = vld [vmem:[%s792 + $0x18] sm:$0xff]
                %801 = vst [vmem:[%s793 + $0x18] sm:$0xff] %v800
                %v802 = vld [vmem:[%s792 + $0x20] sm:$0xff]
                %803 = vst [vmem:[%s793 + $0x20] sm:$0xff] %v802
                %v804 = vld [vmem:[%s792 + $0x28] sm:$0xff]
                %805 = vst [vmem:[%s793 + $0x28] sm:$0xff] %v804
                %v806 = vld [vmem:[%s792 + $0x30] sm:$0xff]
                %807 = vst [vmem:[%s793 + $0x30] sm:$0xff] %v806
                %v808 = vld [vmem:[%s792 + $0x38] sm:$0xff]
                %809 = vst [vmem:[%s793 + $0x38] sm:$0xff] %v808
                %v810 = vld [vmem:[%s792 + $0x40] sm:$0xff]
                %811 = vst [vmem:[%s793 + $0x40] sm:$0xff] %v810
                %v812 = vld [vmem:[%s792 + $0x48] sm:$0xff]
                %813 = vst [vmem:[%s793 + $0x48] sm:$0xff] %v812
                %v814 = vld [vmem:[%s792 + $0x50] sm:$0xff]
                %815 = vst [vmem:[%s793 + $0x50] sm:$0xff] %v814
                %v816 = vld [vmem:[%s792 + $0x58] sm:$0xff]
                %817 = vst [vmem:[%s793 + $0x58] sm:$0xff] %v816
                %v818 = vld [vmem:[%s792 + $0x60] sm:$0xff]
                %819 = vst [vmem:[%s793 + $0x60] sm:$0xff] %v818
                %v820 = vld [vmem:[%s792 + $0x68] sm:$0xff]
                %821 = vst [vmem:[%s793 + $0x68] sm:$0xff] %v820
                %v822 = vld [vmem:[%s792 + $0x70] sm:$0xff]
                %823 = vst [vmem:[%s793 + $0x70] sm:$0xff] %v822
                %v824 = vld [vmem:[%s792 + $0x78] sm:$0xff]
                %825 = vst [vmem:[%s793 + $0x78] sm:$0xff] %v824
                %v826 = vld [vmem:[%s792 + $0x80] sm:$0xff]
                %827 = vst [vmem:[%s793 + $0x80] sm:$0xff] %v826
                %v828 = vld [vmem:[%s792 + $0x88] sm:$0xff]
                %829 = vst [vmem:[%s793 + $0x88] sm:$0xff] %v828
                %v830 = vld [vmem:[%s792 + $0x90] sm:$0xff]
                %831 = vst [vmem:[%s793 + $0x90] sm:$0xff] %v830
                %v832 = vld [vmem:[%s792 + $0x98] sm:$0xff]
                %833 = vst [vmem:[%s793 + $0x98] sm:$0xff] %v832
                %v834 = vld [vmem:[%s792 + $0xa0] sm:$0xff]
                %835 = vst [vmem:[%s793 + $0xa0] sm:$0xff] %v834
                %v836 = vld [vmem:[%s792 + $0xa8] sm:$0xff]
                %837 = vst [vmem:[%s793 + $0xa8] sm:$0xff] %v836
                %v838 = vld [vmem:[%s792 + $0xb0] sm:$0xff]
                %839 = vst [vmem:[%s793 + $0xb0] sm:$0xff] %v838
                %v840 = vld [vmem:[%s792 + $0xb8] sm:$0xff]
                %841 = vst [vmem:[%s793 + $0xb8] sm:$0xff] %v840
                %v842 = vld [vmem:[%s792 + $0xc0] sm:$0xff]
                %843 = vst [vmem:[%s793 + $0xc0] sm:$0xff] %v842
                %v844 = vld [vmem:[%s792 + $0xc8] sm:$0xff]
                %845 = vst [vmem:[%s793 + $0xc8] sm:$0xff] %v844
                %v846 = vld [vmem:[%s792 + $0xd0] sm:$0xff]
                %847 = vst [vmem:[%s793 + $0xd0] sm:$0xff] %v846
                %v848 = vld [vmem:[%s792 + $0xd8] sm:$0xff]
                %849 = vst [vmem:[%s793 + $0xd8] sm:$0xff] %v848
                %v850 = vld [vmem:[%s792 + $0xe0] sm:$0xff]
                %851 = vst [vmem:[%s793 + $0xe0] sm:$0xff] %v850
                %v852 = vld [vmem:[%s792 + $0xe8] sm:$0xff]
                %853 = vst [vmem:[%s793 + $0xe8] sm:$0xff] %v852
                %v854 = vld [vmem:[%s792 + $0xf0] sm:$0xff]
                %855 = vst [vmem:[%s793 + $0xf0] sm:$0xff] %v854
                %v856 = vld [vmem:[%s792 + $0xf8] sm:$0xff]
                %857 = vst [vmem:[%s793 + $0xf8] sm:$0xff] %v856
                %s858 = sadd.s32 1, %s791
                %p859 = scmp.ge.s32.totalorder %s858, %s784
                %s860 = scalar_select %p859, 0, %s858
                %s861 = smul.u32 %s860, 256
                %s862 = smul.u32 %s860, 256
                %s863 = scalar_lea.vmem %s763, %s861 [#allocation2]
                %s864 = scalar_lea.vmem %s775, %s862
              $region57: #{inception_b_forward.6} parent=51 // loop_footer
                %s788 = sadd.s32 %s786, 1
              $region58: #{inception_b_forward.6} parent=51 // loop_footer_branch
                %785 = sbr.rel target = $region54
              $region59: #{inception_b_forward.6} parent=51 // loop_exit
                _
              %s865 = sshrl.u32 %s770, 5
              %s866 = sand.u32 %s770, 31
              %s867 = smul.u32 %s865, 32
              %s868 = smul.u32 8, %s867
              %s869 = scalar_lea.vmem %s763, %s868 [#allocation2]
              %s870 = smul.u32 8, %s867
              %s871 = scalar_lea.vmem %s775, %s870
              // While loop
              $region60: #{inception_b_forward.6} parent=51 // loop_pre_header
                _
              $region61: #{inception_b_forward.6} parent=51 // loop_header
                %s873 = sphi 0, %s875
                %p874 = scmp.ge.s32.totalorder %s873, %s866
                %s878 = sphi 0, %s885
                %s879 = sphi %s869, %s888
                %s880 = sphi %s871, %s889
              $region62: #{inception_b_forward.6} parent=51 // loop_header_branch
                %877 = sbr.rel (%p874) target = $region66
              $region63: #{inception_b_forward.6} parent=51 // loop_body
                %v881 = vld [vmem:[%s879] sm:$0xff]
                %882 = vst [vmem:[%s880] sm:$0xff] %v881
                %s883 = sadd.s32 1, %s878
                %p884 = scmp.ge.s32.totalorder %s883, %s866
                %s885 = scalar_select %p884, 0, %s883
                %s886 = smul.u32 %s885, 8
                %s887 = smul.u32 %s885, 8
                %s888 = scalar_lea.vmem %s869, %s886 [#allocation2]
                %s889 = scalar_lea.vmem %s871, %s887
              $region64: #{inception_b_forward.6} parent=51 // loop_footer
                %s875 = sadd.s32 %s873, 1
              $region65: #{inception_b_forward.6} parent=51 // loop_footer_branch
                %872 = sbr.rel target = $region61
              $region66: #{inception_b_forward.6} parent=51 // loop_exit
                _
            $region52: #{inception_b_forward.6} parent=43 // pred_fallthru
              _
          $region44: #{inception_b_forward.6} parent=39 // pred_fallthru
            _
          %1000 = vnop
        $region40: #{inception_b_forward.6} parent=35 // pred_fallthru
          _
      $region36: #{inception_b_forward.6} parent=5 // pred_fallthru
        _
      %p1001 = scmp.le.s32.totalorder 2, %s10
      // Predicated region
      $region89: #{inception_b_forward.6} parent=5 // pred_check
        %p1002 = pneg %p1001
      $region90: #{inception_b_forward.6} parent=5 // pred_check_branch
        %1004 = sbr.rel (%p1002) target = $region92
      $region91: #{inception_b_forward.6} parent=5 // pred_region
        %s1005 = ssub.s32 %s10, 2
        // Predicated region
        $region93: #{inception_b_forward.6} parent=91 // pred_check
          %p1006 = pneg %p157
        $region94: #{inception_b_forward.6} parent=91 // pred_check_branch
          %1008 = sbr.rel (%p1006) target = $region96
        $region95: #{inception_b_forward.6} parent=91 // pred_region
          %s1009 = sand.u32 %s142, 1
          %s1010 = sand.u32 %s142, 1
          %s1011 = smul.addr %s1010, 256
          %s1012 = scalar_lea.vmem [#allocation2], %s1011
        $region96: #{inception_b_forward.6} parent=91 // pred_fallthru
          _
      $region92: #{inception_b_forward.6} parent=5 // pred_fallthru
        _
    $region6: #{inception_b_forward.6} parent=1 // loop_footer
      %s14 = sadd.s32 1, %s10
    $region7: #{inception_b_forward.6} parent=1 // loop_footer_branch
      %9 = sbr.rel target = $region3
    $region8: #{inception_b_forward.6} parent=1 // loop_exit
      _

// kernel: inception_b_forward.7
$region0: #{inception_b_forward.7}
  #allocation0 [shape = 'u32[]', space=smem, size = 0x4, offset = 0x4, fixed_abs, tag = 'smem constant byte address 0x4 - core index']
  #allocation1 [shape = 'u32[144,128]{1,0:T(1,128)}', space=vmem, size = 0x12000, scoped, tag = 'internal scratch']
  %s0 = inlined_call_operand.vmem [shape: bf16[578,576], index: 0, kind: input, shape index: {}]
  %s1 = inlined_call_operand.vmem [shape: bf16[576,96], index: 1, kind: input, shape index: {}]
  %s2 = inlined_call_operand.vmem [shape: f32[1,96], index: 2, kind: input, shape index: {}]
  %s3 = inlined_call_operand.vmem [shape: f32[1,96], index: 3, kind: input, shape index: {}]
  %s4 = inlined_call_operand.vmem [shape: f32[578,96], index: 4, kind: output, shape index: {}]
  %s5 = sld [smem:[#allocation0]]
  $region97: #{inception_b_forward.7} parent=0
    _
  %s7 = ssub.s32 1, %s5
  %s8 = scalar_select 0, %s7, %s5
  $region1: #{inception_b_forward.7} parent=0
    #allocation2 [shape = 'u8[262144]{0}', space=vmem, size = 0x40000, scoped, tag = 'output window, operand 0']
    loop: start=0, step=1, limit=5
    $region2: #{inception_b_forward.7} parent=1 // loop_pre_header
      _
    $region3: #{inception_b_forward.7} parent=1 // loop_header
      %s10 = sphi 0, %s14
      %p11 = scmp.ge.s32.totalorder %s10, 5
      %s17 = sphi 0, %s29
      %s18 = sphi 0, %s25
      %s19 = sphi 0, %s17
      %s20 = sphi 0, %s18
      %s21 = sphi 0, %s19
      %s22 = sphi 0, %s20
      %s32 = sphi 0, %s34
      %s35 = sphi 0, %s32
      %s36 = sphi 0, %s35
      %s52 = sphi 0, %s36
      %s58 = sphi 0, %s60
      %s61 = sphi 0, %s58
      %s62 = sphi 0, %s61
      %s78 = sphi 0, %s62
      %s84 = sphi 0, %s86
      %s87 = sphi 0, %s84
      %s88 = sphi 0, %s87
      %s104 = sphi 0, %s88
      %s110 = sphi 0, %s112
      %s113 = sphi 0, %s110
      %s114 = sphi 0, %s113
      %s130 = sphi 0, %s114
      %s138 = sphi 0, %s140
      %s141 = sphi 0, %s138
      %s142 = sphi 0, %s141
      %s158 = sphi 0, %s142
    $region4: #{inception_b_forward.7} parent=1 // loop_header_branch
      %13 = sbr.rel (%p11) target = $region8
    $region5: #{inception_b_forward.7} parent=1 // loop_body
      %s15 = ssub.s32 %s10, 1
      %s16 = ssub.s32 %s10, 2
      %s23 = sadd.s32 1, %s18
      %p24 = scmp.ge.s32.totalorder %s23, 1
      %s25 = scalar_select %p24, 0, %s23
      %s26 = sadd.s32 1, %s17
      %s27 = scalar_select %p24, %s26, %s17
      %p28 = scmp.ge.s32.totalorder %s27, 3
      %s29 = scalar_select %p28, 0, %s27
      %s30 = ssub.s32 %s17, %s29
      %p31 = scmp.eq.s32.totalorder %s30, 0
      %s33 = sadd.s32 %s32, 1
      %s34 = scalar_select %p31, %s32, %s33
      %p37 = pneg %p31
      %p38 = scmp.eq.s32.totalorder %s10, 2
      %p39 = por %p37, %p38
      %p40 = scmp.ne.s32.totalorder %s32, %s35
      %p41 = scmp.eq.s32.totalorder %s10, 0
      %p42 = por %p40, %p41
      %p43 = scmp.ne.s32.totalorder %s32, %s35
      %p44 = scmp.eq.s32.totalorder %s15, 2
      %p45 = por %p43, %p44
      %p46 = scmp.ne.s32.totalorder %s35, %s36
      %p47 = scmp.eq.s32.totalorder %s15, 0
      %p48 = por %p46, %p47
      %p49 = scmp.ne.s32.totalorder %s35, %s36
      %p50 = scmp.eq.s32.totalorder %s16, 2
      %p51 = por %p49, %p50
      %p53 = scmp.ne.s32.totalorder %s36, %s52
      %p54 = scmp.eq.s32.totalorder %s16, 0
      %p55 = por %p53, %p54
      %s56 = ssub.s32 %s18, %s25
      %p57 = scmp.eq.s32.totalorder %s56, 0
      %s59 = sadd.s32 %s58, 1
      %s60 = scalar_select %p57, %s58, %s59
      %p63 = pneg %p57
      %p64 = scmp.eq.s32.totalorder %s10, 2
      %p65 = por %p63, %p64
      %p66 = scmp.ne.s32.totalorder %s58, %s61
      %p67 = scmp.eq.s32.totalorder %s10, 0
      %p68 = por %p66, %p67
      %p69 = scmp.ne.s32.totalorder %s58, %s61
      %p70 = scmp.eq.s32.totalorder %s15, 2
      %p71 = por %p69, %p70
      %p72 = scmp.ne.s32.totalorder %s61, %s62
      %p73 = scmp.eq.s32.totalorder %s15, 0
      %p74 = por %p72, %p73
      %p75 = scmp.ne.s32.totalorder %s61, %s62
      %p76 = scmp.eq.s32.totalorder %s16, 2
      %p77 = por %p75, %p76
      %p79 = scmp.ne.s32.totalorder %s62, %s78
      %p80 = scmp.eq.s32.totalorder %s16, 0
      %p81 = por %p79, %p80
      %s82 = ssub.s32 %s18, %s25
      %p83 = scmp.eq.s32.totalorder %s82, 0
      %s85 = sadd.s32 %s84, 1
      %s86 = scalar_select %p83, %s84, %s85
      %p89 = pneg %p83
      %p90 = scmp.eq.s32.totalorder %s10, 2
      %p91 = por %p89, %p90
      %p92 = scmp.ne.s32.totalorder %s84, %s87
      %p93 = scmp.eq.s32.totalorder %s10, 0
      %p94 = por %p92, %p93
      %p95 = scmp.ne.s32.totalorder %s84, %s87
      %p96 = scmp.eq.s32.totalorder %s15, 2
      %p97 = por %p95, %p96
      %p98 = scmp.ne.s32.totalorder %s87, %s88
      %p99 = scmp.eq.s32.totalorder %s15, 0
      %p100 = por %p98, %p99
      %p101 = scmp.ne.s32.totalorder %s87, %s88
      %p102 = scmp.eq.s32.totalorder %s16, 2
      %p103 = por %p101, %p102
      %p105 = scmp.ne.s32.totalorder %s88, %s104
      %p106 = scmp.eq.s32.totalorder %s16, 0
      %p107 = por %p105, %p106
      %s108 = ssub.s32 %s18, %s25
      %p109 = scmp.eq.s32.totalorder %s108, 0
      %s111 = sadd.s32 %s110, 1
      %s112 = scalar_select %p109, %s110, %s111
      %p115 = pneg %p109
      %p116 = scmp.eq.s32.totalorder %s10, 2
      %p117 = por %p115, %p116
      %p118 = scmp.ne.s32.totalorder %s110, %s113
      %p119 = scmp.eq.s32.totalorder %s10, 0
      %p120 = por %p118, %p119
      %p121 = scmp.ne.s32.totalorder %s110, %s113
      %p122 = scmp.eq.s32.totalorder %s15, 2
      %p123 = por %p121, %p122
      %p124 = scmp.ne.s32.totalorder %s113, %s114
      %p125 = scmp.eq.s32.totalorder %s15, 0
      %p126 = por %p124, %p125
      %p127 = scmp.ne.s32.totalorder %s113, %s114
      %p128 = scmp.eq.s32.totalorder %s16, 2
      %p129 = por %p127, %p128
      %p131 = scmp.ne.s32.totalorder %s114, %s130
      %p132 = scmp.eq.s32.totalorder %s16, 0
      %p133 = por %p131, %p132
      %s134 = ssub.s32 %s17, %s29
      %s135 = ssub.s32 %s18, %s25
      %s136 = sor.u32 %s134, %s135
      %p137 = scmp.eq.s32.totalorder %s136, 0
      %s139 = sadd.s32 %s138, 1
      %s140 = scalar_select %p137, %s138, %s139
      %p143 = pneg %p137
      %p144 = scmp.eq.s32.totalorder %s10, 2
      %p145 = por %p143, %p144
      %p146 = scmp.ne.s32.totalorder %s138, %s141
      %p147 = scmp.eq.s32.totalorder %s10, 0
      %p148 = por %p146, %p147
      %p149 = scmp.ne.s32.totalorder %s138, %s141
      %p150 = scmp.eq.s32.totalorder %s15, 2
      %p151 = por %p149, %p150
      %p152 = scmp.ne.s32.totalorder %s141, %s142
      %p153 = scmp.eq.s32.totalorder %s15, 0
      %p154 = por %p152, %p153
      %p155 = scmp.ne.s32.totalorder %s141, %s142
      %p156 = scmp.eq.s32.totalorder %s16, 2
      %p157 = por %p155, %p156
      %p159 = scmp.ne.s32.totalorder %s142, %s158
      %p160 = scmp.eq.s32.totalorder %s16, 0
      %p161 = por %p159, %p160
      %p162 = scmp.le.s32.totalorder 1, %s10
      %p163 = scmp.lt.s32.totalorder %s10, 4
      %p164 = pnand %p162, %p163
      %p165 = pneg %p164
      // Predicated region
      $region9: #{inception_b_forward.7} parent=5 // pred_check
        _
      $region10: #{inception_b_forward.7} parent=5 // pred_check_branch
        %167 = sbr.rel (%p164) target = $region12
      $region11: #{inception_b_forward.7} parent=5 // pred_region
        %s168 = ssub.s32 %s10, 1
        // Predicated region
        $region13: #{inception_b_forward.7} parent=11 // pred_check
          %p169 = pneg %p74
        $region14: #{inception_b_forward.7} parent=11 // pred_check_branch
          %171 = sbr.rel (%p169) target = $region16
        $region15: #{inception_b_forward.7} parent=11 // pred_region
          %p172 = scmp.lt.s32.totalorder %s20, 0
          %s173 = scalar_select %p172, %s20, 0
          %s174 = smul.addr %s173, 4
          %s175 = scalar_lea.vmem %s1, %s174
        $region16: #{inception_b_forward.7} parent=11 // pred_fallthru
          _
        // Predicated region
        $region17: #{inception_b_forward.7} parent=11 // pred_check
          %p176 = pneg %p100
        $region18: #{inception_b_forward.7} parent=11 // pred_check_branch
          %178 = sbr.rel (%p176) target = $region20
        $region19: #{inception_b_forward.7} parent=11 // pred_region
          %p179 = scmp.lt.s32.totalorder %s20, 0
          %s180 = scalar_select %p179, %s20, 0
          %s181 = scalar_lea.vmem %s2, %s180
        $region20: #{inception_b_forward.7} parent=11 // pred_fallthru
          _
        // Predicated region
        $region21: #{inception_b_forward.7} parent=11 // pred_check
          %p182 = pneg %p126
        $region22: #{inception_b_forward.7} parent=11 // pred_check_branch
          %184 = sbr.rel (%p182) target = $region24
        $region23: #{inception_b_forward.7} parent=11 // pred_region
          %p185 = scmp.lt.s32.totalorder %s20, 0
          %s186 = scalar_select %p185, %s20, 0
          %s187 = scalar_lea.vmem %s3, %s186
        $region24: #{inception_b_forward.7} parent=11 // pred_fallthru
          _
      $region12: #{inception_b_forward.7} parent=5 // pred_fallthru
        _
      %p188 = scmp.lt.s32.totalorder %s10, 3
      // Predicated region
      $region25: #{inception_b_forward.7} parent=5 // pred_check
        %p189 = pneg %p188
      $region26: #{inception_b_forward.7} parent=5 // pred_check_branch
        %191 = sbr.rel (%p189) target = $region28
      $region27: #{inception_b_forward.7} parent=5 // pred_region
        // Predicated region
        $region29: #{inception_b_forward.7} parent=27 // pred_check
          %p192 = pneg %p42
        $region30: #{inception_b_forward.7} parent=27 // pred_check_branch
          %194 = sbr.rel (%p192) target = $region32
        $region31: #{inception_b_forward.7} parent=27 // pred_region
          %s195 = smul.u32 32, %s17
          %s196 = ssub.s32 73, %s195
          %p197 = scmp.lt.s32.totalorder %s196, 32
          %s198 = scalar_select %p197, %s196, 32
          %s199 = smul.u32 64, %s198
          %s200 = smul.u32 %s199, 5
          %p201 = scmp.lt.s32.totalorder %s195, 72
          %s202 = scalar_select %p201, %s195, 72
          %s203 = smul.addr %s202, 5
          %s204 = smul.addr %s203, 4
          %s205 = scalar_lea.vmem %s0, %s204
          %s206 = smul.u32 32, %s17
          %s207 = ssub.s32 73, %s206
          %p208 = scmp.lt.s32.totalorder %s207, 32
          %s209 = scalar_select %p208, %s207, 32
          %s210 = smul.u32 64, %s209
          %s211 = smul.u32 %s210, 5
        $region32: #{inception_b_forward.7} parent=27 // pred_fallthru
          _
      $region28: #{inception_b_forward.7} parent=5 // pred_fallthru
        _
      %p212 = scmp.le.s32.totalorder 1, %s10
      %p213 = scmp.lt.s32.totalorder %s10, 4
      %p214 = pnand %p212, %p213
      %p215 = pneg %p214
      // Predicated region
      $region33: #{inception_b_forward.7} parent=5 // pred_check
        _
      $region34: #{inception_b_forward.7} parent=5 // pred_check_branch
        %217 = sbr.rel (%p214) target = $region36
      $region35: #{inception_b_forward.7} parent=5 // pred_region
        %s218 = ssub.s32 %s10, 1
        %s219 = smul.u32 32, %s19
        %s220 = ssub.s32 73, %s219
        %p221 = scmp.lt.s32.totalorder %s220, 32
        %s222 = scalar_select %p221, %s220, 32
        %s223 = smul.u32 64, %s222
        %s224 = smul.u32 %s223, 5
        %p225 = scmp.lt.s32.totalorder %s219, 72
        %s226 = scalar_select %p225, %s219, 72
        %s227 = smul.addr %s226, 5
        %s228 = smul.addr %s227, 4
        %s229 = scalar_lea.vmem %s0, %s228
        %p230 = pneg %p48
        %p231 = pneg %p45
        %p232 = scmp.lt.s32.totalorder %s20, 0
        %s233 = scalar_select %p232, %s20, 0
        %s234 = smul.addr %s233, 4
        %s235 = scalar_lea.vmem %s1, %s234
        %p236 = pneg %p74
        %p237 = pneg %p71
        %p238 = scmp.lt.s32.totalorder %s20, 0
        %s239 = scalar_select %p238, %s20, 0
        %s240 = scalar_lea.vmem %s2, %s239
        %p241 = pneg %p100
        %p242 = pneg %p97
        %p243 = scmp.lt.s32.totalorder %s20, 0
        %s244 = scalar_select %p243, %s20, 0
        %s245 = scalar_lea.vmem %s3, %s244
        %p246 = pneg %p126
        %p247 = pneg %p123
        %p248 = pneg %p154
        %p249 = pneg %p151
        %s250 = sand.u32 %s141, 1
        %s251 = sand.u32 %s141, 1
        %s252 = smul.addr %s251, 256
        %s253 = scalar_lea.vmem [#allocation2], %s252
        %s254 = smul.u32 32, %s19
        %s255 = ssub.s32 73, %s254
        %p256 = scmp.lt.s32.totalorder %s255, 32
        %s257 = scalar_select %p256, %s255, 32
        %s258 = smul.u32 64, %s257
        %s259 = smul.u32 %s258, 5
        %p260 = scmp.lt.s32.totalorder %s254, 72
        %s261 = scalar_select %p260, %s254, 72
        %s262 = smul.addr %s261, 5
        %s263 = smul.addr %s262, 4
        %s264 = scalar_lea.vmem %s0, %s263
        %s265 = smul.u32 32, %s19
        %s266 = ssub.s32 73, %s265
        %p267 = scmp.lt.s32.totalorder %s266, 32
        %s268 = scalar_select %p267, %s266, 32
        %s269 = smul.u32 64, %s268
        %s270 = smul.u32 %s269, 5
        %p271 = scmp.lt.s32.totalorder %s20, 0
        %s272 = scalar_select %p271, %s20, 0
        %s273 = smul.addr %s272, 4
        %s274 = scalar_lea.vmem %s1, %s273
        %p275 = scmp.lt.s32.totalorder %s20, 0
        %s276 = scalar_select %p275, %s20, 0
        %s277 = scalar_lea.vmem %s2, %s276
        %p278 = scmp.lt.s32.totalorder %s20, 0
        %s279 = scalar_select %p278, %s20, 0
        %s280 = scalar_lea.vmem %s3, %s279
        %s281 = smul.u32 32, %s19
        %s282 = ssub.s32 73, %s281
        %p283 = scmp.lt.s32.totalorder %s282, 32
        %s284 = scalar_select %p283, %s282, 32
        %s285 = smul.u32 128, %s284
        %v287 = vld [vmem:[%s264] sm:$0xff]
        %v288 = vld [vmem:[%s264 + $0x8] sm:$0xff]
        %v289 = vld [vmem:[%s264 + $0x10] sm:$0xf]
        %v290 = vld [vmem:[%s264 + $0x14] sm:$0xff]
        %v291 = vld [vmem:[%s264 + $0x1c] sm:$0xff]
        %v292 = vld [vmem:[%s264 + $0x24] sm:$0xf]
        %v293 = vld [vmem:[%s264 + $0x28] sm:$0xff]
        %v294 = vld [vmem:[%s264 + $0x30] sm:$0xff]
        %v295 = vld [vmem:[%s264 + $0x38] sm:$0xf]
        %v296 = vld [vmem:[%s264 + $0x3c] sm:$0xff]
        %v297 = vld [vmem:[%s264 + $0x44] sm:$0xff]
        %v298 = vld [vmem:[%s264 + $0x4c] sm:$0xf]
        %v299 = vld [vmem:[%s264 + $0x50] sm:$0xff]
        %v300 = vld [vmem:[%s264 + $0x58] sm:$0xff]
        %v301 = vld [vmem:[%s264 + $0x60] sm:$0xf]
        %v302 = vld [vmem:[%s264 + $0x64] sm:$0xff]
        %v303 = vld [vmem:[%s264 + $0x6c] sm:$0xff]
        %v304 = vld [vmem:[%s264 + $0x74] sm:$0xf]
        %v305 = vld [vmem:[%s264 + $0x78] sm:$0xff]
        %v306 = vld [vmem:[%s264 + $0x80] sm:$0xff]
        %v307 = vld [vmem:[%s264 + $0x88] sm:$0xf]
        %v308 = vld [vmem:[%s264 + $0x8c] sm:$0xff]
        %v309 = vld [vmem:[%s264 + $0x94] sm:$0xff]
        %v310 = vld [vmem:[%s264 + $0x9c] sm:$0xf]
        %v311 = vld [vmem:[%s264 + $0xa0] sm:$0xff]
        %v312 = vld [vmem:[%s264 + $0xa8] sm:$0xff]
        %v313 = vld [vmem:[%s264 + $0xb0] sm:$0xf]
        %v314 = vld [vmem:[%s264 + $0xb4] sm:$0xff]
        %v315 = vld [vmem:[%s264 + $0xbc] sm:$0xff]
        %v316 = vld [vmem:[%s264 + $0xc4] sm:$0xf]
        %v317 = vld [vmem:[%s264 + $0xc8] sm:$0xff]
        %v318 = vld [vmem:[%s264 + $0xd0] sm:$0xff]
        %v319 = vld [vmem:[%s264 + $0xd8] sm:$0xf]
        %v320 = vld [vmem:[%s264 + $0xdc] sm:$0xff]
        %v321 = vld [vmem:[%s264 + $0xe4] sm:$0xff]
        %v322 = vld [vmem:[%s264 + $0xec] sm:$0xf]
        %v323 = vld [vmem:[%s264 + $0xf0] sm:$0xff]
        %v324 = vld [vmem:[%s264 + $0xf8] sm:$0xff]
        %v325 = vld [vmem:[%s264 + $0x100] sm:$0xf]
        %v326 = vld [vmem:[%s264 + $0x104] sm:$0xff]
        %v327 = vld [vmem:[%s264 + $0x10c] sm:$0xff]
        %v328 = vld [vmem:[%s264 + $0x114] sm:$0xf]
        %v329 = vld [vmem:[%s264 + $0x118] sm:$0xff]
        %v330 = vld [vmem:[%s264 + $0x120] sm:$0xff]
        %v331 = vld [vmem:[%s264 + $0x128] sm:$0xf]
        %v332 = vld [vmem:[%s264 + $0x12c] sm:$0xff]
        %v333 = vld [vmem:[%s264 + $0x134] sm:$0xff]
        %v334 = vld [vmem:[%s264 + $0x13c] sm:$0xf]
        %v335 = vld [vmem:[%s264 + $0x140] sm:$0xff]
        %v336 = vld [vmem:[%s264 + $0x148] sm:$0xff]
        %v337 = vld [vmem:[%s264 + $0x150] sm:$0xf]
        %v338 = vld [vmem:[%s264 + $0x154] sm:$0xff]
        %v339 = vld [vmem:[%s264 + $0x15c] sm:$0xff]
        %v340 = vld [vmem:[%s264 + $0x164] sm:$0xf]
        %v341 = vld [vmem:[%s264 + $0x168] sm:$0xff]
        %v342 = vld [vmem:[%s264 + $0x170] sm:$0xff]
        %v343 = vld [vmem:[%s264 + $0x178] sm:$0xf]
        %v344 = vld [vmem:[%s264 + $0x17c] sm:$0xff]
        %v345 = vld [vmem:[%s264 + $0x184] sm:$0xff]
        %v346 = vld [vmem:[%s264 + $0x18c] sm:$0xf]
        %v347 = vld [vmem:[%s264 + $0x190] sm:$0xff]
        %v348 = vld [vmem:[%s264 + $0x198] sm:$0xff]
        %v349 = vld [vmem:[%s264 + $0x1a0] sm:$0xf]
        %v350 = vld [vmem:[%s264 + $0x1a4] sm:$0xff]
        %v351 = vld [vmem:[%s264 + $0x1ac] sm:$0xff]
        %v352 = vld [vmem:[%s264 + $0x1b4] sm:$0xf]
        %v353 = vld [vmem:[%s264 + $0x1b8] sm:$0xff]
        %v354 = vld [vmem:[%s264 + $0x1c0] sm:$0xff]
        %v355 = vld [vmem:[%s264 + $0x1c8] sm:$0xf]
        %v356 = vld [vmem:[%s264 + $0x1cc] sm:$0xff]
        %v357 = vld [vmem:[%s264 + $0x1d4] sm:$0xff]
        %v358 = vld [vmem:[%s264 + $0x1dc] sm:$0xf]
        %v359 = vld [vmem:[%s264 + $0x1e0] sm:$0xff]
        %v360 = vld [vmem:[%s264 + $0x1e8] sm:$0xff]
        %v361 = vld [vmem:[%s264 + $0x1f0] sm:$0xf]
        %v362 = vld [vmem:[%s264 + $0x1f4] sm:$0xff]
        %v363 = vld [vmem:[%s264 + $0x1fc] sm:$0xff]
        %v364 = vld [vmem:[%s264 + $0x204] sm:$0xf]
        %v365 = vld [vmem:[%s264 + $0x208] sm:$0xff]
        %v366 = vld [vmem:[%s264 + $0x210] sm:$0xff]
        %v367 = vld [vmem:[%s264 + $0x218] sm:$0xf]
        %v368 = vld [vmem:[%s264 + $0x21c] sm:$0xff]
        %v369 = vld [vmem:[%s264 + $0x224] sm:$0xff]
        %v370 = vld [vmem:[%s264 + $0x22c] sm:$0xf]
        %v371 = vld [vmem:[%s264 + $0x230] sm:$0xff]
        %v372 = vld [vmem:[%s264 + $0x238] sm:$0xff]
        %v373 = vld [vmem:[%s264 + $0x240] sm:$0xf]
        %v374 = vld [vmem:[%s264 + $0x244] sm:$0xff]
        %v375 = vld [vmem:[%s264 + $0x24c] sm:$0xff]
        %v376 = vld [vmem:[%s264 + $0x254] sm:$0xf]
        %v377 = vld [vmem:[%s264 + $0x258] sm:$0xff]
        %v378 = vld [vmem:[%s264 + $0x260] sm:$0xff]
        %v379 = vld [vmem:[%s264 + $0x268] sm:$0xf]
        %v380 = vld [vmem:[%s264 + $0x26c] sm:$0xff]
        %v381 = vld [vmem:[%s264 + $0x274] sm:$0xff]
        %v382 = vld [vmem:[%s264 + $0x27c] sm:$0xf]
        %v383 = vld [vmem:[%s274] sm:$0xf]
        %v384 = vld [vmem:[%s274 + $0x4] sm:$0xf]
        %v385 = vld [vmem:[%s274 + $0x8] sm:$0xf]
        %v386 = vld [vmem:[%s274 + $0xc] sm:$0xf]
        %v387 = vld [vmem:[%s274 + $0x10] sm:$0xf]
        %v388 = vld [vmem:[%s274 + $0x14] sm:$0xf]
        %v389 = vld [vmem:[%s274 + $0x18] sm:$0xf]
        %v390 = vld [vmem:[%s274 + $0x1c] sm:$0xf]
        %v391 = vld [vmem:[%s274 + $0x20] sm:$0xf]
        %v392 = vld [vmem:[%s274 + $0x24] sm:$0xf]
        %v393 = vld [vmem:[%s274 + $0x28] sm:$0xf]
        %v394 = vld [vmem:[%s274 + $0x2c] sm:$0xf]
        %v395 = vld [vmem:[%s274 + $0x30] sm:$0xf]
        %v396 = vld [vmem:[%s274 + $0x34] sm:$0xf]
        %v397 = vld [vmem:[%s274 + $0x38] sm:$0xf]
        %v398 = vld [vmem:[%s274 + $0x3c] sm:$0xf]
        %v399 = vld [vmem:[%s274 + $0x40] sm:$0xf]
        %v400 = vld [vmem:[%s274 + $0x44] sm:$0xf]
        %v401 = vld [vmem:[%s274 + $0x48] sm:$0xf]
        %v402 = vld [vmem:[%s274 + $0x4c] sm:$0xf]
        %v403 = vld [vmem:[%s274 + $0x50] sm:$0xf]
        %v404 = vld [vmem:[%s274 + $0x54] sm:$0xf]
        %v405 = vld [vmem:[%s274 + $0x58] sm:$0xf]
        %v406 = vld [vmem:[%s274 + $0x5c] sm:$0xf]
        %v407 = vld [vmem:[%s274 + $0x60] sm:$0xf]
        %v408 = vld [vmem:[%s274 + $0x64] sm:$0xf]
        %v409 = vld [vmem:[%s274 + $0x68] sm:$0xf]
        %v410 = vld [vmem:[%s274 + $0x6c] sm:$0xf]
        %v411 = vld [vmem:[%s274 + $0x70] sm:$0xf]
        %v412 = vld [vmem:[%s274 + $0x74] sm:$0xf]
        %v413 = vld [vmem:[%s274 + $0x78] sm:$0xf]
        %v414 = vld [vmem:[%s274 + $0x7c] sm:$0xf]
        %v415 = vld [vmem:[%s274 + $0x80] sm:$0xf]
        %v416 = vld [vmem:[%s274 + $0x84] sm:$0xf]
        %v417 = vld [vmem:[%s274 + $0x88] sm:$0xf]
        %v418 = vld [vmem:[%s274 + $0x8c] sm:$0xf]
        %v419 = vld [vmem:[%s274 + $0x90] sm:$0xf]
        %v420 = vld [vmem:[%s274 + $0x94] sm:$0xf]
        %v421 = vld [vmem:[%s274 + $0x98] sm:$0xf]
        %v422 = vld [vmem:[%s274 + $0x9c] sm:$0xf]
        %v423 = vld [vmem:[%s274 + $0xa0] sm:$0xf]
        %v424 = vld [vmem:[%s274 + $0xa4] sm:$0xf]
        %v425 = vld [vmem:[%s274 + $0xa8] sm:$0xf]
        %v426 = vld [vmem:[%s274 + $0xac] sm:$0xf]
        %v427 = vld [vmem:[%s274 + $0xb0] sm:$0xf]
        %v428 = vld [vmem:[%s274 + $0xb4] sm:$0xf]
        %v429 = vld [vmem:[%s274 + $0xb8] sm:$0xf]
        %v430 = vld [vmem:[%s274 + $0xbc] sm:$0xf]
        %v431 = vld [vmem:[%s274 + $0xc0] sm:$0xf]
        %v432 = vld [vmem:[%s274 + $0xc4] sm:$0xf]
        %v433 = vld [vmem:[%s274 + $0xc8] sm:$0xf]
        %v434 = vld [vmem:[%s274 + $0xcc] sm:$0xf]
        %v435 = vld [vmem:[%s274 + $0xd0] sm:$0xf]
        %v436 = vld [vmem:[%s274 + $0xd4] sm:$0xf]
        %v437 = vld [vmem:[%s274 + $0xd8] sm:$0xf]
        %v438 = vld [vmem:[%s274 + $0xdc] sm:$0xf]
        %v439 = vld [vmem:[%s274 + $0xe0] sm:$0xf]
        %v440 = vld [vmem:[%s274 + $0xe4] sm:$0xf]
        %v441 = vld [vmem:[%s274 + $0xe8] sm:$0xf]
        %v442 = vld [vmem:[%s274 + $0xec] sm:$0xf]
        %v443 = vld [vmem:[%s274 + $0xf0] sm:$0xf]
        %v444 = vld [vmem:[%s274 + $0xf4] sm:$0xf]
        %v445 = vld [vmem:[%s274 + $0xf8] sm:$0xf]
        %v446 = vld [vmem:[%s274 + $0xfc] sm:$0xf]
        %v447 = vld [vmem:[%s274 + $0x100] sm:$0xf]
        %v448 = vld [vmem:[%s274 + $0x104] sm:$0xf]
        %v449 = vld [vmem:[%s274 + $0x108] sm:$0xf]
        %v450 = vld [vmem:[%s274 + $0x10c] sm:$0xf]
        %v451 = vld [vmem:[%s274 + $0x110] sm:$0xf]
        %v452 = vld [vmem:[%s274 + $0x114] sm:$0xf]
        %v453 = vld [vmem:[%s274 + $0x118] sm:$0xf]
        %v454 = vld [vmem:[%s274 + $0x11c] sm:$0xf]
        %v551 = vunpack.c.l.b16 %v287
        %v552 = vunpack.c.h.b16 %v287
        %v553 = vunpack.c.l.b16 %v288
        %v554 = vunpack.c.h.b16 %v288
        %v555 = vunpack.c.l.b16 %v289
        %v556 = vunpack.c.l.b16 %v290
        %v557 = vunpack.c.h.b16 %v290
        %v558 = vunpack.c.l.b16 %v291
        %v559 = vunpack.c.h.b16 %v291
        %v560 = vunpack.c.l.b16 %v292
        %v561 = vunpack.c.l.b16 %v293
        %v562 = vunpack.c.h.b16 %v293
        %v563 = vunpack.c.l.b16 %v294
        %v564 = vunpack.c.h.b16 %v294
        %v565 = vunpack.c.l.b16 %v295
        %v566 = vunpack.c.l.b16 %v296
        %v567 = vunpack.c.h.b16 %v296
        %v568 = vunpack.c.l.b16 %v297
        %v569 = vunpack.c.h.b16 %v297
        %v570 = vunpack.c.l.b16 %v298
        %v571 = vunpack.c.l.b16 %v299
        %v572 = vunpack.c.h.b16 %v299
        %v573 = vunpack.c.l.b16 %v300
        %v574 = vunpack.c.h.b16 %v300
        %v575 = vunpack.c.l.b16 %v301
        %v576 = vunpack.c.l.b16 %v302
        %v577 = vunpack.c.h.b16 %v302
        %v578 = vunpack.c.l.b16 %v303
        %v579 = vunpack.c.h.b16 %v303
        %v580 = vunpack.c.l.b16 %v304
        %v581 = vunpack.c.l.b16 %v305
        %v582 = vunpack.c.h.b16 %v305
        %v583 = vunpack.c.l.b16 %v306
        %v584 = vunpack.c.h.b16 %v306
        %v585 = vunpack.c.l.b16 %v307
        %v586 = vunpack.c.l.b16 %v308
        %v587 = vunpack.c.h.b16 %v308
        %v588 = vunpack.c.l.b16 %v309
        %v589 = vunpack.c.h.b16 %v309
        %v590 = vunpack.c.l.b16 %v310
        %v591 = vunpack.c.l.b16 %v311
        %v592 = vunpack.c.h.b16 %v311
        %v593 = vunpack.c.l.b16 %v312
        %v594 = vunpack.c.h.b16 %v312
        %v595 = vunpack.c.l.b16 %v313
        %v596 = vunpack.c.l.b16 %v314
        %v597 = vunpack.c.h.b16 %v314
        %v598 = vunpack.c.l.b16 %v315
        %v599 = vunpack.c.h.b16 %v315
        %v600 = vunpack.c.l.b16 %v316
        %v601 = vunpack.c.l.b16 %v317
        %v602 = vunpack.c.h.b16 %v317
        %v603 = vunpack.c.l.b16 %v318
        %v604 = vunpack.c.h.b16 %v318
        %v605 = vunpack.c.l.b16 %v319
        %v606 = vunpack.c.l.b16 %v320
        %v607 = vunpack.c.h.b16 %v320
        %v608 = vunpack.c.l.b16 %v321
        %v609 = vunpack.c.h.b16 %v321
        %v610 = vunpack.c.l.b16 %v322
        %v611 = vunpack.c.l.b16 %v323
        %v612 = vunpack.c.h.b16 %v323
        %v613 = vunpack.c.l.b16 %v324
        %v614 = vunpack.c.h.b16 %v324
        %v615 = vunpack.c.l.b16 %v325
        %v616 = vunpack.c.l.b16 %v326
        %v617 = vunpack.c.h.b16 %v326
        %v618 = vunpack.c.l.b16 %v327
        %v619 = vunpack.c.h.b16 %v327
        %v620 = vunpack.c.l.b16 %v328
        %v621 = vunpack.c.l.b16 %v329
        %v622 = vunpack.c.h.b16 %v329
        %v623 = vunpack.c.l.b16 %v330
        %v624 = vunpack.c.h.b16 %v330
        %v625 = vunpack.c.l.b16 %v331
        %v626 = vunpack.c.l.b16 %v332
        %v627 = vunpack.c.h.b16 %v332
        %v628 = vunpack.c.l.b16 %v333
        %v629 = vunpack.c.h.b16 %v333
        %v630 = vunpack.c.l.b16 %v334
        %v631 = vunpack.c.l.b16 %v335
        %v632 = vunpack.c.h.b16 %v335
        %v633 = vunpack.c.l.b16 %v336
        %v634 = vunpack.c.h.b16 %v336
        %v635 = vunpack.c.l.b16 %v337
        %v636 = vunpack.c.l.b16 %v338
        %v637 = vunpack.c.h.b16 %v338
        %v638 = vunpack.c.l.b16 %v339
        %v639 = vunpack.c.h.b16 %v339
        %v640 = vunpack.c.l.b16 %v340
        %v641 = vunpack.c.l.b16 %v341
        %v642 = vunpack.c.h.b16 %v341
        %v643 = vunpack.c.l.b16 %v342
        %v644 = vunpack.c.h.b16 %v342
        %v645 = vunpack.c.l.b16 %v343
        %v646 = vunpack.c.l.b16 %v344
        %v647 = vunpack.c.h.b16 %v344
        %v648 = vunpack.c.l.b16 %v345
        %v649 = vunpack.c.h.b16 %v345
        %v650 = vunpack.c.l.b16 %v346
        %v651 = vunpack.c.l.b16 %v347
        %v652 = vunpack.c.h.b16 %v347
        %v653 = vunpack.c.l.b16 %v348
        %v654 = vunpack.c.h.b16 %v348
        %v655 = vunpack.c.l.b16 %v349
        %v656 = vunpack.c.l.b16 %v350
        %v657 = vunpack.c.h.b16 %v350
        %v658 = vunpack.c.l.b16 %v351
        %v659 = vunpack.c.h.b16 %v351
        %v660 = vunpack.c.l.b16 %v352
        %v661 = vunpack.c.l.b16 %v353
        %v662 = vunpack.c.h.b16 %v353
        %v663 = vunpack.c.l.b16 %v354
        %v664 = vunpack.c.h.b16 %v354
        %v665 = vunpack.c.l.b16 %v355
        %v666 = vunpack.c.l.b16 %v356
        %v667 = vunpack.c.h.b16 %v356
        %v668 = vunpack.c.l.b16 %v357
        %v669 = vunpack.c.h.b16 %v357
        %v670 = vunpack.c.l.b16 %v358
        %v671 = vunpack.c.l.b16 %v359
        %v672 = vunpack.c.h.b16 %v359
        %v673 = vunpack.c.l.b16 %v360
        %v674 = vunpack.c.h.b16 %v360
        %v675 = vunpack.c.l.b16 %v361
        %v676 = vunpack.c.l.b16 %v362
        %v677 = vunpack.c.h.b16 %v362
        %v678 = vunpack.c.l.b16 %v363
        %v679 = vunpack.c.h.b16 %v363
        %v680 = vunpack.c.l.b16 %v364
        %v681 = vunpack.c.l.b16 %v365
        %v682 = vunpack.c.h.b16 %v365
        %v683 = vunpack.c.l.b16 %v366
        %v684 = vunpack.c.h.b16 %v366
        %v685 = vunpack.c.l.b16 %v367
        %v686 = vunpack.c.l.b16 %v368
        %v687 = vunpack.c.h.b16 %v368
        %v688 = vunpack.c.l.b16 %v369
        %v689 = vunpack.c.h.b16 %v369
        %v690 = vunpack.c.l.b16 %v370
        %v691 = vunpack.c.l.b16 %v371
        %v692 = vunpack.c.h.b16 %v371
        %v693 = vunpack.c.l.b16 %v372
        %v694 = vunpack.c.h.b16 %v372
        %v695 = vunpack.c.l.b16 %v373
        %v696 = vunpack.c.l.b16 %v374
        %v697 = vunpack.c.h.b16 %v374
        %v698 = vunpack.c.l.b16 %v375
        %v699 = vunpack.c.h.b16 %v375
        %v700 = vunpack.c.l.b16 %v376
        %v701 = vunpack.c.l.b16 %v377
        %v702 = vunpack.c.h.b16 %v377
        %v703 = vunpack.c.l.b16 %v378
        %v704 = vunpack.c.h.b16 %v378
        %v705 = vunpack.c.l.b16 %v379
        %v706 = vunpack.c.l.b16 %v380
        %v707 = vunpack.c.h.b16 %v380
        %v708 = vunpack.c.l.b16 %v381
        %v709 = vunpack.c.h.b16 %v381
        %v710 = vunpack.c.l.b16 %v382
        %v711 = vpack.c.b16 %v556, %v551
        %v712 = vpack.c.b16 %v557, %v552
        %v713 = vpack.c.b16 %v558, %v553
        %v714 = vpack.c.b16 %v559, %v554
        %v715 = vpack.c.b16 %v560, %v555
        %v716 = vpack.c.b16 %v566, %v561
        %v717 = vpack.c.b16 %v567, %v562
        %v718 = vpack.c.b16 %v568, %v563
        %v719 = vpack.c.b16 %v569, %v564
        %v720 = vpack.c.b16 %v570, %v565
        %v721 = vpack.c.b16 %v576, %v571
        %v722 = vpack.c.b16 %v577, %v572
        %v723 = vpack.c.b16 %v578, %v573
        %v724 = vpack.c.b16 %v579, %v574
        %v725 = vpack.c.b16 %v580, %v575
        %v726 = vpack.c.b16 %v586, %v581
        %v727 = vpack.c.b16 %v587, %v582
        %v728 = vpack.c.b16 %v588, %v583
        %v729 = vpack.c.b16 %v589, %v584
        %v730 = vpack.c.b16 %v590, %v585
        %v731 = vpack.c.b16 %v596, %v591
        %v732 = vpack.c.b16 %v597, %v592
        %v733 = vpack.c.b16 %v598, %v593
        %v734 = vpack.c.b16 %v599, %v594
        %v735 = vpack.c.b16 %v600, %v595
        %v736 = vpack.c.b16 %v606, %v601
        %v737 = vpack.c.b16 %v607, %v602
        %v738 = vpack.c.b16 %v608, %v603
        %v739 = vpack.c.b16 %v609, %v604
        %v740 = vpack.c.b16 %v610, %v605
        %v741 = vpack.c.b16 %v616, %v611
        %v742 = vpack.c.b16 %v617, %v612
        %v743 = vpack.c.b16 %v618, %v613
        %v744 = vpack.c.b16 %v619, %v614
        %v745 = vpack.c.b16 %v620, %v615
        %v746 = vpack.c.b16 %v626, %v621
        %v747 = vpack.c.b16 %v627, %v622
        %v748 = vpack.c.b16 %v628, %v623
        %v749 = vpack.c.b16 %v629, %v624
        %v750 = vpack.c.b16 %v630, %v625
        %v751 = vpack.c.b16 %v636, %v631
        %v752 = vpack.c.b16 %v637, %v632
        %v753 = vpack.c.b16 %v638, %v633
        %v754 = vpack.c.b16 %v639, %v634
        %v755 = vpack.c.b16 %v640, %v635
        %v756 = vpack.c.b16 %v646, %v641
        %v757 = vpack.c.b16 %v647, %v642
        %v758 = vpack.c.b16 %v648, %v643
        %v759 = vpack.c.b16 %v649, %v644
        %v760 = vpack.c.b16 %v650, %v645
        %v761 = vpack.c.b16 %v656, %v651
        %v762 = vpack.c.b16 %v657, %v652
        %v763 = vpack.c.b16 %v658, %v653
        %v764 = vpack.c.b16 %v659, %v654
        %v765 = vpack.c.b16 %v660, %v655
        %v766 = vpack.c.b16 %v666, %v661
        %v767 = vpack.c.b16 %v667, %v662
        %v768 = vpack.c.b16 %v668, %v663
        %v769 = vpack.c.b16 %v669, %v664
        %v770 = vpack.c.b16 %v670, %v665
        %v771 = vpack.c.b16 %v676, %v671
        %v772 = vpack.c.b16 %v677, %v672
        %v773 = vpack.c.b16 %v678, %v673
        %v774 = vpack.c.b16 %v679, %v674
        %v775 = vpack.c.b16 %v680, %v675
        %v776 = vpack.c.b16 %v686, %v681
        %v777 = vpack.c.b16 %v687, %v682
        %v778 = vpack.c.b16 %v688, %v683
        %v779 = vpack.c.b16 %v689, %v684
        %v780 = vpack.c.b16 %v690, %v685
        %v781 = vpack.c.b16 %v696, %v691
        %v782 = vpack.c.b16 %v697, %v692
        %v783 = vpack.c.b16 %v698, %v693
        %v784 = vpack.c.b16 %v699, %v694
        %v785 = vpack.c.b16 %v700, %v695
        %v786 = vpack.c.b16 %v706, %v701
        %v787 = vpack.c.b16 %v707, %v702
        %v788 = vpack.c.b16 %v708, %v703
        %v789 = vpack.c.b16 %v709, %v704
        %v790 = vpack.c.b16 %v710, %v705
        %v927 = vunpack.c.l.b16 %v383
        %v928 = vunpack.c.l.b16 %v384
        %v929 = vunpack.c.l.b16 %v385
        %v930 = vunpack.c.l.b16 %v386
        %v931 = vunpack.c.l.b16 %v387
        %v932 = vunpack.c.l.b16 %v388
        %v933 = vunpack.c.l.b16 %v389
        %v934 = vunpack.c.l.b16 %v390
        %v935 = vunpack.c.l.b16 %v391
        %v936 = vunpack.c.l.b16 %v392
        %v937 = vunpack.c.l.b16 %v393
        %v938 = vunpack.c.l.b16 %v394
        %v939 = vunpack.c.l.b16 %v395
        %v940 = vunpack.c.l.b16 %v396
        %v941 = vunpack.c.l.b16 %v397
        %v942 = vunpack.c.l.b16 %v398
        %v943 = vunpack.c.l.b16 %v399
        %v944 = vunpack.c.l.b16 %v400
        %v945 = vunpack.c.l.b16 %v401
        %v946 = vunpack.c.l.b16 %v402
        %v947 = vunpack.c.l.b16 %v403
        %v948 = vunpack.c.l.b16 %v404
        %v949 = vunpack.c.l.b16 %v405
        %v950 = vunpack.c.l.b16 %v406
        %v951 = vunpack.c.l.b16 %v407
        %v952 = vunpack.c.l.b16 %v408
        %v953 = vunpack.c.l.b16 %v409
        %v954 = vunpack.c.l.b16 %v410
        %v955 = vunpack.c.l.b16 %v411
        %v956 = vunpack.c.l.b16 %v412
        %v957 = vunpack.c.l.b16 %v413
        %v958 = vunpack.c.l.b16 %v414
        %v959 = vunpack.c.l.b16 %v415
        %v960 = vunpack.c.l.b16 %v416
        %v961 = vunpack.c.l.b16 %v417
        %v962 = vunpack.c.l.b16 %v418
        %v963 = vunpack.c.l.b16 %v419
        %v964 = vunpack.c.l.b16 %v420
        %v965 = vunpack.c.l.b16 %v421
        %v966 = vunpack.c.l.b16 %v422
        %v967 = vunpack.c.l.b16 %v423
        %v968 = vunpack.c.l.b16 %v424
        %v969 = vunpack.c.l.b16 %v425
        %v970 = vunpack.c.l.b16 %v426
        %v971 = vunpack.c.l.b16 %v427
        %v972 = vunpack.c.l.b16 %v428
        %v973 = vunpack.c.l.b16 %v429
        %v974 = vunpack.c.l.b16 %v430
        %v975 = vunpack.c.l.b16 %v431
        %v976 = vunpack.c.l.b16 %v432
        %v977 = vunpack.c.l.b16 %v433
        %v978 = vunpack.c.l.b16 %v434
        %v979 = vunpack.c.l.b16 %v435
        %v980 = vunpack.c.l.b16 %v436
        %v981 = vunpack.c.l.b16 %v437
        %v982 = vunpack.c.l.b16 %v438
        %v983 = vunpack.c.l.b16 %v439
        %v984 = vunpack.c.l.b16 %v440
        %v985 = vunpack.c.l.b16 %v441
        %v986 = vunpack.c.l.b16 %v442
        %v987 = vunpack.c.l.b16 %v443
        %v988 = vunpack.c.l.b16 %v444
        %v989 = vunpack.c.l.b16 %v445
        %v990 = vunpack.c.l.b16 %v446
        %v991 = vunpack.c.l.b16 %v447
        %v992 = vunpack.c.l.b16 %v448
        %v993 = vunpack.c.l.b16 %v449
        %v994 = vunpack.c.l.b16 %v450
        %v995 = vunpack.c.l.b16 %v451
        %v996 = vunpack.c.l.b16 %v452
        %v997 = vunpack.c.l.b16 %v453
        %v998 = vunpack.c.l.b16 %v454
        %v999 = vpack.c.b16 %v928, %v927
        %v1000 = vpack.c.b16 %v930, %v929
        %v1001 = vpack.c.b16 %v932, %v931
        %v1002 = vpack.c.b16 %v934, %v933
        %v1003 = vpack.c.b16 %v936, %v935
        %v1004 = vpack.c.b16 %v938, %v937
        %v1005 = vpack.c.b16 %v940, %v939
        %v1006 = vpack.c.b16 %v942, %v941
        %v1007 = vpack.c.b16 %v944, %v943
        %v1008 = vpack.c.b16 %v946, %v945
        %v1009 = vpack.c.b16 %v948, %v947
        %v1010 = vpack.c.b16 %v950, %v949
        %v1011 = vpack.c.b16 %v952, %v951
        %v1012 = vpack.c.b16 %v954, %v953
        %v1013 = vpack.c.b16 %v956, %v955
        %v1014 = vpack.c.b16 %v958, %v957
        %v1015 = vpack.c.b16 %v960, %v959
        %v1016 = vpack.c.b16 %v962, %v961
        %v1017 = vpack.c.b16 %v964, %v963
        %v1018 = vpack.c.b16 %v966, %v965
        %v1019 = vpack.c.b16 %v968, %v967
        %v1020 = vpack.c.b16 %v970, %v969
        %v1021 = vpack.c.b16 %v972, %v971
        %v1022 = vpack.c.b16 %v974, %v973
        %v1023 = vpack.c.b16 %v976, %v975
        %v1024 = vpack.c.b16 %v978, %v977
        %v1025 = vpack.c.b16 %v980, %v979
        %v1026 = vpack.c.b16 %v982, %v981
        %v1027 = vpack.c.b16 %v984, %v983
        %v1028 = vpack.c.b16 %v986, %v985
        %v1029 = vpack.c.b16 %v988, %v987
        %v1030 = vpack.c.b16 %v990, %v989
        %v1031 = vpack.c.b16 %v992, %v991
        %v1032 = vpack.c.b16 %v994, %v993
        %v1033 = vpack.c.b16 %v996, %v995
        %v1034 = vpack.c.b16 %v998, %v997
        %vm1071 = vcmask 523264
        %v1073 = vsel %vm1071, %v715, 0
        %v1076 = vsel %vm1071, %v720, 0
        %v1079 = vsel %vm1071, %v725, 0
        %v1082 = vsel %vm1071, %v730, 0
        %v1085 = vsel %vm1071, %v735, 0
        %v1088 = vsel %vm1071, %v740, 0
        %v1091 = vsel %vm1071, %v745, 0
        %v1094 = vsel %vm1071, %v750, 0
        %v1097 = vsel %vm1071, %v755, 0
        %v1100 = vsel %vm1071, %v760, 0
        %v1103 = vsel %vm1071, %v765, 0
        %v1106 = vsel %vm1071, %v770, 0
        %v1109 = vsel %vm1071, %v775, 0
        %v1112 = vsel %vm1071, %v780, 0
        %v1115 = vsel %vm1071, %v785, 0
        %v1118 = vsel %vm1071, %v790, 0
        %1120 = vmatprep.subr.bf16.mxu0 0
        %1121 = vmatpush1.bf16.msra.mxu0 %v999
        %1122 = vmatprep.subr.bf16.mxu0 0
        %1123 = vmatpush1.bf16.msra.mxu0 %v1000
        %1124 = vmatprep.subr.bf16.mxu0 0
        %1125 = vmatpush1.bf16.msra.mxu0 %v1001
        %1126 = vmatprep.subr.bf16.mxu0 0
        %1127 = vmatpush1.bf16.msra.mxu0 %v1002
        %1128 = vmatprep.subr.bf16.mxu0 0
        %1129 = vmatpush1.bf16.msra.mxu0 %v1003
        %1130 = vmatprep.subr.bf16.mxu0 0
        %1131 = vmatpush1.bf16.msra.mxu0 %v1004
        %1132 = vmatprep.subr.bf16.mxu0 0
        %1133 = vmatpush1.bf16.msra.mxu0 %v1005
        %1134 = vmatprep.subr.bf16.mxu0 0
        %1135 = vmatpush1.bf16.msra.mxu0 %v1006
        %1136 = vmatprep.subr.bf16.mxu0 0
        %1137 = vmatpush1.bf16.msra.mxu0 %v1007
        %1138 = vmatprep.subr.bf16.mxu0 0
        %1139 = vmatpush1.bf16.msra.mxu0 %v1008
        %1140 = vmatprep.subr.bf16.mxu0 0
        %1141 = vmatpush1.bf16.msra.mxu0 %v1009
        %1142 = vmatprep.subr.bf16.mxu0 0
        %1143 = vmatpush1.bf16.msra.mxu0 %v1010
        %1144 = vmatprep.subr.bf16.mxu0 0
        %1145 = vmatpush1.bf16.msra.mxu0 %v1011
        %1146 = vmatprep.subr.bf16.mxu0 0
        %1147 = vmatpush1.bf16.msra.mxu0 %v1012
        %1148 = vmatprep.subr.bf16.mxu0 0
        %1149 = vmatpush1.bf16.msra.mxu0 %v1013
        %1150 = vmatprep.subr.bf16.mxu0 0
        %1151 = vmatpush1.bf16.msra.mxu0 %v1014
        %1152 = vmatprep.mubr.bf16.mxu0 %v712
        %1153 = vmatmul.mubr.bf16.gmra.mrb[0].mxu0 %v711
        %v1154 = vpop.f32.mrb[0].mxu0
        %v1155 = vadd.f32 0.0, %v1154
        %v1156 = vpop.f32.mrb[0].mxu0
        %v1157 = vpop.f32.mrb[0].mxu0
        %v1158 = vadd.f32 0.0, %v1157
        %v1159 = vpop.f32.mrb[0].mxu0
        %1160 = vmatprep.mubr.bf16.mxu0 %v717
        %1161 = vmatmul.mubr.bf16.gmra.mrb[0].mxu0 %v716
        %v1162 = vpop.f32.mrb[0].mxu0
        %v1163 = vadd.f32 0.0, %v1162
        %v1164 = vpop.f32.mrb[0].mxu0
        %v1165 = vpop.f32.mrb[0].mxu0
        %v1166 = vadd.f32 0.0, %v1165
        %v1167 = vpop.f32.mrb[0].mxu0
        %1168 = vmatprep.mubr.bf16.mxu0 %v722
        %1169 = vmatmul.mubr.bf16.gmra.mrb[0].mxu0 %v721
        %v1170 = vpop.f32.mrb[0].mxu0
        %v1171 = vadd.f32 0.0, %v1170
        %v1172 = vpop.f32.mrb[0].mxu0
        %v1173 = vpop.f32.mrb[0].mxu0
        %v1174 = vadd.f32 0.0, %v1173
        %v1175 = vpop.f32.mrb[0].mxu0
        %1176 = vmatprep.mubr.bf16.mxu0 %v727
        %1177 = vmatmul.mubr.bf16.gmra.mrb[0].mxu0 %v726
        %v1178 = vpop.f32.mrb[0].mxu0
        %v1179 = vadd.f32 0.0, %v1178
        %v1180 = vpop.f32.mrb[0].mxu0
        %v1181 = vpop.f32.mrb[0].mxu0
        %v1182 = vadd.f32 0.0, %v1181
        %v1183 = vpop.f32.mrb[0].mxu0
        %1184 = vmatprep.mubr.bf16.mxu0 %v732
        %1185 = vmatmul.mubr.bf16.gmra.mrb[0].mxu0 %v731
        %v1186 = vpop.f32.mrb[0].mxu0
        %v1187 = vadd.f32 0.0, %v1186
        %v1188 = vpop.f32.mrb[0].mxu0
        %v1189 = vpop.f32.mrb[0].mxu0
        %v1190 = vadd.f32 0.0, %v1189
        %v1191 = vpop.f32.mrb[0].mxu0
        %1192 = vmatprep.mubr.bf16.mxu0 %v737
        %1193 = vmatmul.mubr.bf16.gmra.mrb[0].mxu0 %v736
        %v1194 = vpop.f32.mrb[0].mxu0
        %v1195 = vadd.f32 0.0, %v1194
        %v1196 = vpop.f32.mrb[0].mxu0
        %v1197 = vpop.f32.mrb[0].mxu0
        %v1198 = vadd.f32 0.0, %v1197
        %v1199 = vpop.f32.mrb[0].mxu0
        %1200 = vmatprep.mubr.bf16.mxu0 %v742
        %1201 = vmatmul.mubr.bf16.gmra.mrb[0].mxu0 %v741
        %v1202 = vpop.f32.mrb[0].mxu0
        %v1203 = vadd.f32 0.0, %v1202
        %v1204 = vpop.f32.mrb[0].mxu0
        %v1205 = vpop.f32.mrb[0].mxu0
        %v1206 = vadd.f32 0.0, %v1205
        %v1207 = vpop.f32.mrb[0].mxu0
        %1208 = vmatprep.mubr.bf16.mxu0 %v747
        %1209 = vmatmul.mubr.bf16.gmra.mrb[0].mxu0 %v746
        %v1210 = vpop.f32.mrb[0].mxu0
        %v1211 = vadd.f32 0.0, %v1210
        %v1212 = vpop.f32.mrb[0].mxu0
        %v1213 = vpop.f32.mrb[0].mxu0
        %v1214 = vadd.f32 0.0, %v1213
        %v1215 = vpop.f32.mrb[0].mxu0
        %1216 = vmatprep.mubr.bf16.mxu0 %v752
        %1217 = vmatmul.mubr.bf16.gmra.mrb[0].mxu0 %v751
        %v1218 = vpop.f32.mrb[0].mxu0
        %v1219 = vadd.f32 0.0, %v1218
        %v1220 = vpop.f32.mrb[0].mxu0
        %v1221 = vpop.f32.mrb[0].mxu0
        %v1222 = vadd.f32 0.0, %v1221
        %v1223 = vpop.f32.mrb[0].mxu0
        %1224 = vmatprep.mubr.bf16.mxu0 %v757
        %1225 = vmatmul.mubr.bf16.gmra.mrb[0].mxu0 %v756
        %v1226 = vpop.f32.mrb[0].mxu0
        %v1227 = vadd.f32 0.0, %v1226
        %v1228 = vpop.f32.mrb[0].mxu0
        %v1229 = vpop.f32.mrb[0].mxu0
        %v1230 = vadd.f32 0.0, %v1229
        %v1231 = vpop.f32.mrb[0].mxu0
        %1232 = vmatprep.mubr.bf16.mxu0 %v762
        %1233 = vmatmul.mubr.bf16.gmra.mrb[0].mxu0 %v761
        %v1234 = vpop.f32.mrb[0].mxu0
        %v1235 = vadd.f32 0.0, %v1234
        %v1236 = vpop.f32.mrb[0].mxu0
        %v1237 = vpop.f32.mrb[0].mxu0
        %v1238 = vadd.f32 0.0, %v1237
        %v1239 = vpop.f32.mrb[0].mxu0
        %1240 = vmatprep.mubr.bf16.mxu0 %v767
        %1241 = vmatmul.mubr.bf16.gmra.mrb[0].mxu0 %v766
        %v1242 = vpop.f32.mrb[0].mxu0
        %v1243 = vadd.f32 0.0, %v1242
        %v1244 = vpop.f32.mrb[0].mxu0
        %v1245 = vpop.f32.mrb[0].mxu0
        %v1246 = vadd.f32 0.0, %v1245
        %v1247 = vpop.f32.mrb[0].mxu0
        %1248 = vmatprep.mubr.bf16.mxu0 %v772
        %1249 = vmatmul.mubr.bf16.gmra.mrb[0].mxu0 %v771
        %v1250 = vpop.f32.mrb[0].mxu0
        %v1251 = vadd.f32 0.0, %v1250
        %v1252 = vpop.f32.mrb[0].mxu0
        %v1253 = vpop.f32.mrb[0].mxu0
        %v1254 = vadd.f32 0.0, %v1253
        %v1255 = vpop.f32.mrb[0].mxu0
        %1256 = vmatprep.mubr.bf16.mxu0 %v777
        %1257 = vmatmul.mubr.bf16.gmra.mrb[0].mxu0 %v776
        %v1258 = vpop.f32.mrb[0].mxu0
        %v1259 = vadd.f32 0.0, %v1258
        %v1260 = vpop.f32.mrb[0].mxu0
        %v1261 = vpop.f32.mrb[0].mxu0
        %v1262 = vadd.f32 0.0, %v1261
        %v1263 = vpop.f32.mrb[0].mxu0
        %1264 = vmatprep.mubr.bf16.mxu0 %v782
        %1265 = vmatmul.mubr.bf16.gmra.mrb[0].mxu0 %v781
        %v1266 = vpop.f32.mrb[0].mxu0
        %v1267 = vadd.f32 0.0, %v1266
        %v1268 = vpop.f32.mrb[0].mxu0
        %v1269 = vpop.f32.mrb[0].mxu0
        %v1270 = vadd.f32 0.0, %v1269
        %v1271 = vpop.f32.mrb[0].mxu0
        %1272 = vmatprep.mubr.bf16.mxu0 %v787
        %1273 = vmatmul.mubr.bf16.gmra.mrb[0].mxu0 %v786
        %v1274 = vpop.f32.mrb[0].mxu0
        %v1275 = vadd.f32 0.0, %v1274
        %v1276 = vpop.f32.mrb[0].mxu0
        %v1277 = vpop.f32.mrb[0].mxu0
        %v1278 = vadd.f32 0.0, %v1277
        %v1279 = vpop.f32.mrb[0].mxu0
        %1280 = vdwg.mxu0
        %1281 = vmatprep.subr.bf16.mxu0 0
        %1282 = vmatpush1.bf16.msra.mxu0 %v1015
        %1283 = vmatprep.subr.bf16.mxu0 0
        %1284 = vmatpush1.bf16.msra.mxu0 %v1016
        %1285 = vmatprep.subr.bf16.mxu0 0
        %1286 = vmatpush1.bf16.msra.mxu0 %v1017
        %1287 = vmatprep.subr.bf16.mxu0 0
        %1288 = vmatpush1.bf16.msra.mxu0 %v1018
        %1289 = vmatprep.subr.bf16.mxu0 0
        %1290 = vmatpush1.bf16.msra.mxu0 %v1019
        %1291 = vmatprep.subr.bf16.mxu0 0
        %1292 = vmatpush1.bf16.msra.mxu0 %v1020
        %1293 = vmatprep.subr.bf16.mxu0 0
        %1294 = vmatpush1.bf16.msra.mxu0 %v1021
        %1295 = vmatprep.subr.bf16.mxu0 0
        %1296 = vmatpush1.bf16.msra.mxu0 %v1022
        %1297 = vmatprep.subr.bf16.mxu0 0
        %1298 = vmatpush1.bf16.msra.mxu0 %v1023
        %1299 = vmatprep.subr.bf16.mxu0 0
        %1300 = vmatpush1.bf16.msra.mxu0 %v1024
        %1301 = vmatprep.subr.bf16.mxu0 0
        %1302 = vmatpush1.bf16.msra.mxu0 %v1025
        %1303 = vmatprep.subr.bf16.mxu0 0
        %1304 = vmatpush1.bf16.msra.mxu0 %v1026
        %1305 = vmatprep.subr.bf16.mxu0 0
        %1306 = vmatpush1.bf16.msra.mxu0 %v1027
        %1307 = vmatprep.subr.bf16.mxu0 0
        %1308 = vmatpush1.bf16.msra.mxu0 %v1028
        %1309 = vmatprep.subr.bf16.mxu0 0
        %1310 = vmatpush1.bf16.msra.mxu0 %v1029
        %1311 = vmatprep.subr.bf16.mxu0 0
        %1312 = vmatpush1.bf16.msra.mxu0 %v1030
        %1313 = vmatprep.mubr.bf16.mxu0 %v714
        %1314 = vmatmul.mubr.bf16.gmra.mrb[0].mxu0 %v713
        %v1315 = vpop.f32.mrb[0].mxu0
        %v1316 = vadd.f32 %v1155, %v1315
        %v1317 = vpop.f32.mrb[0].mxu0
        %v1318 = vpop.f32.mrb[0].mxu0
        %v1319 = vadd.f32 %v1158, %v1318
        %v1320 = vpop.f32.mrb[0].mxu0
        %1321 = vmatprep.mubr.bf16.mxu0 %v719
        %1322 = vmatmul.mubr.bf16.gmra.mrb[0].mxu0 %v718
        %v1323 = vpop.f32.mrb[0].mxu0
        %v1324 = vadd.f32 %v1163, %v1323
        %v1325 = vpop.f32.mrb[0].mxu0
        %v1326 = vpop.f32.mrb[0].mxu0
        %v1327 = vadd.f32 %v1166, %v1326
        %v1328 = vpop.f32.mrb[0].mxu0
        %1329 = vmatprep.mubr.bf16.mxu0 %v724
        %1330 = vmatmul.mubr.bf16.gmra.mrb[0].mxu0 %v723
        %v1331 = vpop.f32.mrb[0].mxu0
        %v1332 = vadd.f32 %v1171, %v1331
        %v1333 = vpop.f32.mrb[0].mxu0
        %v1334 = vpop.f32.mrb[0].mxu0
        %v1335 = vadd.f32 %v1174, %v1334
        %v1336 = vpop.f32.mrb[0].mxu0
        %1337 = vmatprep.mubr.bf16.mxu0 %v729
        %1338 = vmatmul.mubr.bf16.gmra.mrb[0].mxu0 %v728
        %v1339 = vpop.f32.mrb[0].mxu0
        %v1340 = vadd.f32 %v1179, %v1339
        %v1341 = vpop.f32.mrb[0].mxu0
        %v1342 = vpop.f32.mrb[0].mxu0
        %v1343 = vadd.f32 %v1182, %v1342
        %v1344 = vpop.f32.mrb[0].mxu0
        %1345 = vmatprep.mubr.bf16.mxu0 %v734
        %1346 = vmatmul.mubr.bf16.gmra.mrb[0].mxu0 %v733
        %v1347 = vpop.f32.mrb[0].mxu0
        %v1348 = vadd.f32 %v1187, %v1347
        %v1349 = vpop.f32.mrb[0].mxu0
        %v1350 = vpop.f32.mrb[0].mxu0
        %v1351 = vadd.f32 %v1190, %v1350
        %v1352 = vpop.f32.mrb[0].mxu0
        %1353 = vmatprep.mubr.bf16.mxu0 %v739
        %1354 = vmatmul.mubr.bf16.gmra.mrb[0].mxu0 %v738
        %v1355 = vpop.f32.mrb[0].mxu0
        %v1356 = vadd.f32 %v1195, %v1355
        %v1357 = vpop.f32.mrb[0].mxu0
        %v1358 = vpop.f32.mrb[0].mxu0
        %v1359 = vadd.f32 %v1198, %v1358
        %v1360 = vpop.f32.mrb[0].mxu0
        %1361 = vmatprep.mubr.bf16.mxu0 %v744
        %1362 = vmatmul.mubr.bf16.gmra.mrb[0].mxu0 %v743
        %v1363 = vpop.f32.mrb[0].mxu0
        %v1364 = vadd.f32 %v1203, %v1363
        %v1365 = vpop.f32.mrb[0].mxu0
        %v1366 = vpop.f32.mrb[0].mxu0
        %v1367 = vadd.f32 %v1206, %v1366
        %v1368 = vpop.f32.mrb[0].mxu0
        %1369 = vmatprep.mubr.bf16.mxu0 %v749
        %1370 = vmatmul.mubr.bf16.gmra.mrb[0].mxu0 %v748
        %v1371 = vpop.f32.mrb[0].mxu0
        %v1372 = vadd.f32 %v1211, %v1371
        %v1373 = vpop.f32.mrb[0].mxu0
        %v1374 = vpop.f32.mrb[0].mxu0
        %v1375 = vadd.f32 %v1214, %v1374
        %v1376 = vpop.f32.mrb[0].mxu0
        %1377 = vmatprep.mubr.bf16.mxu0 %v754
        %1378 = vmatmul.mubr.bf16.gmra.mrb[0].mxu0 %v753
        %v1379 = vpop.f32.mrb[0].mxu0
        %v1380 = vadd.f32 %v1219, %v1379
        %v1381 = vpop.f32.mrb[0].mxu0
        %v1382 = vpop.f32.mrb[0].mxu0
        %v1383 = vadd.f32 %v1222, %v1382
        %v1384 = vpop.f32.mrb[0].mxu0
        %1385 = vmatprep.mubr.bf16.mxu0 %v759
        %1386 = vmatmul.mubr.bf16.gmra.mrb[0].mxu0 %v758
        %v1387 = vpop.f32.mrb[0].mxu0
        %v1388 = vadd.f32 %v1227, %v1387
        %v1389 = vpop.f32.mrb[0].mxu0
        %v1390 = vpop.f32.mrb[0].mxu0
        %v1391 = vadd.f32 %v1230, %v1390
        %v1392 = vpop.f32.mrb[0].mxu0
        %1393 = vmatprep.mubr.bf16.mxu0 %v764
        %1394 = vmatmul.mubr.bf16.gmra.mrb[0].mxu0 %v763
        %v1395 = vpop.f32.mrb[0].mxu0
        %v1396 = vadd.f32 %v1235, %v1395
        %v1397 = vpop.f32.mrb[0].mxu0
        %v1398 = vpop.f32.mrb[0].mxu0
        %v1399 = vadd.f32 %v1238, %v1398
        %v1400 = vpop.f32.mrb[0].mxu0
        %1401 = vmatprep.mubr.bf16.mxu0 %v769
        %1402 = vmatmul.mubr.bf16.gmra.mrb[0].mxu0 %v768
        %v1403 = vpop.f32.mrb[0].mxu0
        %v1404 = vadd.f32 %v1243, %v1403
        %v1405 = vpop.f32.mrb[0].mxu0
        %v1406 = vpop.f32.mrb[0].mxu0
        %v1407 = vadd.f32 %v1246, %v1406
        %v1408 = vpop.f32.mrb[0].mxu0
        %1409 = vmatprep.mubr.bf16.mxu0 %v774
        %1410 = vmatmul.mubr.bf16.gmra.mrb[0].mxu0 %v773
        %v1411 = vpop.f32.mrb[0].mxu0
        %v1412 = vadd.f32 %v1251, %v1411
        %v1413 = vpop.f32.mrb[0].mxu0
        %v1414 = vpop.f32.mrb[0].mxu0
        %v1415 = vadd.f32 %v1254, %v1414
        %v1416 = vpop.f32.mrb[0].mxu0
        %1417 = vmatprep.mubr.bf16.mxu0 %v779
        %1418 = vmatmul.mubr.bf16.gmra.mrb[0].mxu0 %v778
        %v1419 = vpop.f32.mrb[0].mxu0
        %v1420 = vadd.f32 %v1259, %v1419
        %v1421 = vpop.f32.mrb[0].mxu0
        %v1422 = vpop.f32.mrb[0].mxu0
        %v1423 = vadd.f32 %v1262, %v1422
        %v1424 = vpop.f32.mrb[0].mxu0
        %1425 = vmatprep.mubr.bf16.mxu0 %v784
        %1426 = vmatmul.mubr.bf16.gmra.mrb[0].mxu0 %v783
        %v1427 = vpop.f32.mrb[0].mxu0
        %v1428 = vadd.f32 %v1267, %v1427
        %v1429 = vpop.f32.mrb[0].mxu0
        %v1430 = vpop.f32.mrb[0].mxu0
        %v1431 = vadd.f32 %v1270, %v1430
        %v1432 = vpop.f32.mrb[0].mxu0
        %1433 = vmatprep.mubr.bf16.mxu0 %v789
        %1434 = vmatmul.mubr.bf16.gmra.mrb[0].mxu0 %v788
        %v1435 = vpop.f32.mrb[0].mxu0
        %v1436 = vadd.f32 %v1275, %v1435
        %v1437 = vpop.f32.mrb[0].mxu0
        %v1438 = vpop.f32.mrb[0].mxu0
        %v1439 = vadd.f32 %v1278, %v1438
        %v1440 = vpop.f32.mrb[0].mxu0
        %1441 = vdwg.mxu0
        %1442 = vmatprep.subr.bf16.mxu0 0
        %1443 = vmatpush1.bf16.msra.mxu0 %v1031
        %1444 = vmatprep.subr.bf16.mxu0 0
        %1445 = vmatpush1.bf16.msra.mxu0 %v1032
        %1446 = vmatprep.subr.bf16.mxu0 0
        %1447 = vmatpush1.bf16.msra.mxu0 %v1033
        %1448 = vmatprep.subr.bf16.mxu0 0
        %1449 = vmatpush1.bf16.msra.mxu0 %v1034
        %1450 = vmatprep.subr.bf16.mxu0 0
        %1451 = vmatpush1.bf16.msra.mxu0 0
        %1452 = vmatprep.subr.bf16.mxu0 0
        %1453 = vmatpush1.bf16.msra.mxu0 0
        %1454 = vmatprep.subr.bf16.mxu0 0
        %1455 = vmatpush1.bf16.msra.mxu0 0
        %1456 = vmatprep.subr.bf16.mxu0 0
        %1457 = vmatpush1.bf16.msra.mxu0 0
        %1458 = vmatprep.subr.bf16.mxu0 0
        %1459 = vmatpush1.bf16.msra.mxu0 0
        %1460 = vmatprep.subr.bf16.mxu0 0
        %1461 = vmatpush1.bf16.msra.mxu0 0
        %1462 = vmatprep.subr.bf16.mxu0 0
        %1463 = vmatpush1.bf16.msra.mxu0 0
        %1464 = vmatprep.subr.bf16.mxu0 0
        %1465 = vmatpush1.bf16.msra.mxu0 0
        %1466 = vmatprep.subr.bf16.mxu0 0
        %1467 = vmatpush1.bf16.msra.mxu0 0
        %1468 = vmatprep.subr.bf16.mxu0 0
        %1469 = vmatpush1.bf16.msra.mxu0 0
        %1470 = vmatprep.subr.bf16.mxu0 0
        %1471 = vmatpush1.bf16.msra.mxu0 0
        %1472 = vmatprep.subr.bf16.mxu0 0
        %1473 = vmatpush1.bf16.msra.mxu0 0
        %1474 = vmatprep.mubr.bf16.mxu0 0
        %1475 = vmatmul.mubr.bf16.gmra.mrb[0].mxu0 %v1073
        %v1476 = vpop.f32.mrb[0].mxu0
        %v1477 = vadd.f32 %v1316, %v1476
        %v1478 = vpop.f32.mrb[0].mxu0
        %v1479 = vpop.f32.mrb[0].mxu0
        %v1480 = vadd.f32 %v1319, %v1479
        %v1481 = vpop.f32.mrb[0].mxu0
        %1482 = vmatprep.mubr.bf16.mxu0 0
        %1483 = vmatmul.mubr.bf16.gmra.mrb[0].mxu0 %v1076
        %v1484 = vpop.f32.mrb[0].mxu0
        %v1485 = vadd.f32 %v1324, %v1484
        %v1486 = vpop.f32.mrb[0].mxu0
        %v1487 = vpop.f32.mrb[0].mxu0
        %v1488 = vadd.f32 %v1327, %v1487
        %v1489 = vpop.f32.mrb[0].mxu0
        %1490 = vmatprep.mubr.bf16.mxu0 0
        %1491 = vmatmul.mubr.bf16.gmra.mrb[0].mxu0 %v1079
        %v1492 = vpop.f32.mrb[0].mxu0
        %v1493 = vadd.f32 %v1332, %v1492
        %v1494 = vpop.f32.mrb[0].mxu0
        %v1495 = vpop.f32.mrb[0].mxu0
        %v1496 = vadd.f32 %v1335, %v1495
        %v1497 = vpop.f32.mrb[0].mxu0
        %1498 = vmatprep.mubr.bf16.mxu0 0
        %1499 = vmatmul.mubr.bf16.gmra.mrb[0].mxu0 %v1082
        %v1500 = vpop.f32.mrb[0].mxu0
        %v1501 = vadd.f32 %v1340, %v1500
        %v1502 = vpop.f32.mrb[0].mxu0
        %v1503 = vpop.f32.mrb[0].mxu0
        %v1504 = vadd.f32 %v1343, %v1503
        %v1505 = vpop.f32.mrb[0].mxu0
        %1506 = vmatprep.mubr.bf16.mxu0 0
        %1507 = vmatmul.mubr.bf16.gmra.mrb[0].mxu0 %v1085
        %v1508 = vpop.f32.mrb[0].mxu0
        %v1509 = vadd.f32 %v1348, %v1508
        %v1510 = vpop.f32.mrb[0].mxu0
        %v1511 = vpop.f32.mrb[0].mxu0
        %v1512 = vadd.f32 %v1351, %v1511
        %v1513 = vpop.f32.mrb[0].mxu0
        %1514 = vmatprep.mubr.bf16.mxu0 0
        %1515 = vmatmul.mubr.bf16.gmra.mrb[0].mxu0 %v1088
        %v1516 = vpop.f32.mrb[0].mxu0
        %v1517 = vadd.f32 %v1356, %v1516
        %v1518 = vpop.f32.mrb[0].mxu0
        %v1519 = vpop.f32.mrb[0].mxu0
        %v1520 = vadd.f32 %v1359, %v1519
        %v1521 = vpop.f32.mrb[0].mxu0
        %1522 = vmatprep.mubr.bf16.mxu0 0
        %1523 = vmatmul.mubr.bf16.gmra.mrb[0].mxu0 %v1091
        %v1524 = vpop.f32.mrb[0].mxu0
        %v1525 = vadd.f32 %v1364, %v1524
        %v1526 = vpop.f32.mrb[0].mxu0
        %v1527 = vpop.f32.mrb[0].mxu0
        %v1528 = vadd.f32 %v1367, %v1527
        %v1529 = vpop.f32.mrb[0].mxu0
        %1530 = vmatprep.mubr.bf16.mxu0 0
        %1531 = vmatmul.mubr.bf16.gmra.mrb[0].mxu0 %v1094
        %v1532 = vpop.f32.mrb[0].mxu0
        %v1533 = vadd.f32 %v1372, %v1532
        %v1534 = vpop.f32.mrb[0].mxu0
        %v1535 = vpop.f32.mrb[0].mxu0
        %v1536 = vadd.f32 %v1375, %v1535
        %v1537 = vpop.f32.mrb[0].mxu0
        %1538 = vmatprep.mubr.bf16.mxu0 0
        %1539 = vmatmul.mubr.bf16.gmra.mrb[0].mxu0 %v1097
        %v1540 = vpop.f32.mrb[0].mxu0
        %v1541 = vadd.f32 %v1380, %v1540
        %v1542 = vpop.f32.mrb[0].mxu0
        %v1543 = vpop.f32.mrb[0].mxu0
        %v1544 = vadd.f32 %v1383, %v1543
        %v1545 = vpop.f32.mrb[0].mxu0
        %1546 = vmatprep.mubr.bf16.mxu0 0
        %1547 = vmatmul.mubr.bf16.gmra.mrb[0].mxu0 %v1100
        %v1548 = vpop.f32.mrb[0].mxu0
        %v1549 = vadd.f32 %v1388, %v1548
        %v1550 = vpop.f32.mrb[0].mxu0
        %v1551 = vpop.f32.mrb[0].mxu0
        %v1552 = vadd.f32 %v1391, %v1551
        %v1553 = vpop.f32.mrb[0].mxu0
        %1554 = vmatprep.mubr.bf16.mxu0 0
        %1555 = vmatmul.mubr.bf16.gmra.mrb[0].mxu0 %v1103
        %v1556 = vpop.f32.mrb[0].mxu0
        %v1557 = vadd.f32 %v1396, %v1556
        %v1558 = vpop.f32.mrb[0].mxu0
        %v1559 = vpop.f32.mrb[0].mxu0
        %v1560 = vadd.f32 %v1399, %v1559
        %v1561 = vpop.f32.mrb[0].mxu0
        %1562 = vmatprep.mubr.bf16.mxu0 0
        %1563 = vmatmul.mubr.bf16.gmra.mrb[0].mxu0 %v1106
        %v1564 = vpop.f32.mrb[0].mxu0
        %v1565 = vadd.f32 %v1404, %v1564
        %v1566 = vpop.f32.mrb[0].mxu0
        %v1567 = vpop.f32.mrb[0].mxu0
        %v1568 = vadd.f32 %v1407, %v1567
        %v1569 = vpop.f32.mrb[0].mxu0
        %1570 = vmatprep.mubr.bf16.mxu0 0
        %1571 = vmatmul.mubr.bf16.gmra.mrb[0].mxu0 %v1109
        %v1572 = vpop.f32.mrb[0].mxu0
        %v1573 = vadd.f32 %v1412, %v1572
        %v1574 = vpop.f32.mrb[0].mxu0
        %v1575 = vpop.f32.mrb[0].mxu0
        %v1576 = vadd.f32 %v1415, %v1575
        %v1577 = vpop.f32.mrb[0].mxu0
        %1578 = vmatprep.mubr.bf16.mxu0 0
        %1579 = vmatmul.mubr.bf16.gmra.mrb[0].mxu0 %v1112
        %v1580 = vpop.f32.mrb[0].mxu0
        %v1581 = vadd.f32 %v1420, %v1580
        %v1582 = vpop.f32.mrb[0].mxu0
        %v1583 = vpop.f32.mrb[0].mxu0
        %v1584 = vadd.f32 %v1423, %v1583
        %v1585 = vpop.f32.mrb[0].mxu0
        %1586 = vmatprep.mubr.bf16.mxu0 0
        %1587 = vmatmul.mubr.bf16.gmra.mrb[0].mxu0 %v1115
        %v1588 = vpop.f32.mrb[0].mxu0
        %v1589 = vadd.f32 %v1428, %v1588
        %v1590 = vpop.f32.mrb[0].mxu0
        %v1591 = vpop.f32.mrb[0].mxu0
        %v1592 = vadd.f32 %v1431, %v1591
        %v1593 = vpop.f32.mrb[0].mxu0
        %1594 = vmatprep.mubr.bf16.mxu0 0
        %1595 = vmatmul.mubr.bf16.gmra.mrb[0].mxu0 %v1118
        %v1596 = vpop.f32.mrb[0].mxu0
        %v1597 = vadd.f32 %v1436, %v1596
        %v1598 = vpop.f32.mrb[0].mxu0
        %v1599 = vpop.f32.mrb[0].mxu0
        %v1600 = vadd.f32 %v1439, %v1599
        %v1601 = vpop.f32.mrb[0].mxu0
        %1602 = vdwg.mxu0
        %v1603 = vld [vmem:[%s277] sm:$0x1]
        %v1605 = vlaneseq
        %v1606 = vshrl.u32 %v1605, 7
        %v1607 = vsub.s32 0, %v1606
        %v1608 = vrot.slane %v1603, %v1607
        %v1610 = vmul.f32 %v1477, %v1608
        %v1611 = vmul.f32 %v1480, %v1608
        %v1612 = vmul.f32 %v1485, %v1608
        %v1613 = vmul.f32 %v1488, %v1608
        %v1614 = vmul.f32 %v1493, %v1608
        %v1615 = vmul.f32 %v1496, %v1608
        %v1616 = vmul.f32 %v1501, %v1608
        %v1617 = vmul.f32 %v1504, %v1608
        %v1618 = vmul.f32 %v1509, %v1608
        %v1619 = vmul.f32 %v1512, %v1608
        %v1620 = vmul.f32 %v1517, %v1608
        %v1621 = vmul.f32 %v1520, %v1608
        %v1622 = vmul.f32 %v1525, %v1608
        %v1623 = vmul.f32 %v1528, %v1608
        %v1624 = vmul.f32 %v1533, %v1608
        %v1625 = vmul.f32 %v1536, %v1608
        %v1626 = vmul.f32 %v1541, %v1608
        %v1627 = vmul.f32 %v1544, %v1608
        %v1628 = vmul.f32 %v1549, %v1608
        %v1629 = vmul.f32 %v1552, %v1608
        %v1630 = vmul.f32 %v1557, %v1608
        %v1631 = vmul.f32 %v1560, %v1608
        %v1632 = vmul.f32 %v1565, %v1608
        %v1633 = vmul.f32 %v1568, %v1608
        %v1634 = vmul.f32 %v1573, %v1608
        %v1635 = vmul.f32 %v1576, %v1608
        %v1636 = vmul.f32 %v1581, %v1608
        %v1637 = vmul.f32 %v1584, %v1608
        %v1638 = vmul.f32 %v1589, %v1608
        %v1639 = vmul.f32 %v1592, %v1608
        %v1640 = vmul.f32 %v1597, %v1608
        %v1641 = vmul.f32 %v1600, %v1608
        %v1642 = vld [vmem:[%s280] sm:$0x1]
        %v1644 = vlaneseq
        %v1645 = vshrl.u32 %v1644, 7
        %v1646 = vsub.s32 0, %v1645
        %v1647 = vrot.slane %v1642, %v1646
        %v1649 = vadd.f32 %v1610, %v1647
        %v1650 = vadd.f32 %v1611, %v1647
        %v1651 = vadd.f32 %v1612, %v1647
        %v1652 = vadd.f32 %v1613, %v1647
        %v1653 = vadd.f32 %v1614, %v1647
        %v1654 = vadd.f32 %v1615, %v1647
        %v1655 = vadd.f32 %v1616, %v1647
        %v1656 = vadd.f32 %v1617, %v1647
        %v1657 = vadd.f32 %v1618, %v1647
        %v1658 = vadd.f32 %v1619, %v1647
        %v1659 = vadd.f32 %v1620, %v1647
        %v1660 = vadd.f32 %v1621, %v1647
        %v1661 = vadd.f32 %v1622, %v1647
        %v1662 = vadd.f32 %v1623, %v1647
        %v1663 = vadd.f32 %v1624, %v1647
        %v1664 = vadd.f32 %v1625, %v1647
        %v1665 = vadd.f32 %v1626, %v1647
        %v1666 = vadd.f32 %v1627, %v1647
        %v1667 = vadd.f32 %v1628, %v1647
        %v1668 = vadd.f32 %v1629, %v1647
        %v1669 = vadd.f32 %v1630, %v1647
        %v1670 = vadd.f32 %v1631, %v1647
        %v1671 = vadd.f32 %v1632, %v1647
        %v1672 = vadd.f32 %v1633, %v1647
        %v1673 = vadd.f32 %v1634, %v1647
        %v1674 = vadd.f32 %v1635, %v1647
        %v1675 = vadd.f32 %v1636, %v1647
        %v1676 = vadd.f32 %v1637, %v1647
        %v1677 = vadd.f32 %v1638, %v1647
        %v1678 = vadd.f32 %v1639, %v1647
        %v1679 = vadd.f32 %v1640, %v1647
        %v1680 = vadd.f32 %v1641, %v1647
        %v1681 = vmax.f32 %v1649, 0.0
        %v1682 = vmax.f32 %v1650, 0.0
        %v1683 = vmax.f32 %v1651, 0.0
        %v1684 = vmax.f32 %v1652, 0.0
        %v1685 = vmax.f32 %v1653, 0.0
        %v1686 = vmax.f32 %v1654, 0.0
        %v1687 = vmax.f32 %v1655, 0.0
        %v1688 = vmax.f32 %v1656, 0.0
        %v1689 = vmax.f32 %v1657, 0.0
        %v1690 = vmax.f32 %v1658, 0.0
        %v1691 = vmax.f32 %v1659, 0.0
        %v1692 = vmax.f32 %v1660, 0.0
        %v1693 = vmax.f32 %v1661, 0.0
        %v1694 = vmax.f32 %v1662, 0.0
        %v1695 = vmax.f32 %v1663, 0.0
        %v1696 = vmax.f32 %v1664, 0.0
        %v1697 = vmax.f32 %v1665, 0.0
        %v1698 = vmax.f32 %v1666, 0.0
        %v1699 = vmax.f32 %v1667, 0.0
        %v1700 = vmax.f32 %v1668, 0.0
        %v1701 = vmax.f32 %v1669, 0.0
        %v1702 = vmax.f32 %v1670, 0.0
        %v1703 = vmax.f32 %v1671, 0.0
        %v1704 = vmax.f32 %v1672, 0.0
        %v1705 = vmax.f32 %v1673, 0.0
        %v1706 = vmax.f32 %v1674, 0.0
        %v1707 = vmax.f32 %v1675, 0.0
        %v1708 = vmax.f32 %v1676, 0.0
        %v1709 = vmax.f32 %v1677, 0.0
        %v1710 = vmax.f32 %v1678, 0.0
        %v1711 = vmax.f32 %v1679, 0.0
        %v1712 = vmax.f32 %v1680, 0.0
        %vm1713 = vcmask 785408
        %1714 = vst.msk [vmem:[%s253] sm:$0xff] %vm1713, %v1681
        %1715 = vst.msk [vmem:[%s253 + $0x8] sm:$0xff] %vm1713, %v1682
        %1716 = vst.msk [vmem:[%s253 + $0x10] sm:$0xff] %vm1713, %v1683
        %1717 = vst.msk [vmem:[%s253 + $0x18] sm:$0xff] %vm1713, %v1684
        %1718 = vst.msk [vmem:[%s253 + $0x20] sm:$0xff] %vm1713, %v1685
        %1719 = vst.msk [vmem:[%s253 + $0x28] sm:$0xff] %vm1713, %v1686
        %1720 = vst.msk [vmem:[%s253 + $0x30] sm:$0xff] %vm1713, %v1687
        %1721 = vst.msk [vmem:[%s253 + $0x38] sm:$0xff] %vm1713, %v1688
        %1722 = vst.msk [vmem:[%s253 + $0x40] sm:$0xff] %vm1713, %v1689
        %1723 = vst.msk [vmem:[%s253 + $0x48] sm:$0xff] %vm1713, %v1690
        %1724 = vst.msk [vmem:[%s253 + $0x50] sm:$0xff] %vm1713, %v1691
        %1725 = vst.msk [vmem:[%s253 + $0x58] sm:$0xff] %vm1713, %v1692
        %1726 = vst.msk [vmem:[%s253 + $0x60] sm:$0xff] %vm1713, %v1693
        %1727 = vst.msk [vmem:[%s253 + $0x68] sm:$0xff] %vm1713, %v1694
        %1728 = vst.msk [vmem:[%s253 + $0x70] sm:$0xff] %vm1713, %v1695
        %1729 = vst.msk [vmem:[%s253 + $0x78] sm:$0xff] %vm1713, %v1696
        %1730 = vst.msk [vmem:[%s253 + $0x80] sm:$0xff] %vm1713, %v1697
        %1731 = vst.msk [vmem:[%s253 + $0x88] sm:$0xff] %vm1713, %v1698
        %1732 = vst.msk [vmem:[%s253 + $0x90] sm:$0xff] %vm1713, %v1699
        %1733 = vst.msk [vmem:[%s253 + $0x98] sm:$0xff] %vm1713, %v1700
        %1734 = vst.msk [vmem:[%s253 + $0xa0] sm:$0xff] %vm1713, %v1701
        %1735 = vst.msk [vmem:[%s253 + $0xa8] sm:$0xff] %vm1713, %v1702
        %1736 = vst.msk [vmem:[%s253 + $0xb0] sm:$0xff] %vm1713, %v1703
        %1737 = vst.msk [vmem:[%s253 + $0xb8] sm:$0xff] %vm1713, %v1704
        %1738 = vst.msk [vmem:[%s253 + $0xc0] sm:$0xff] %vm1713, %v1705
        %1739 = vst.msk [vmem:[%s253 + $0xc8] sm:$0xff] %vm1713, %v1706
        %1740 = vst.msk [vmem:[%s253 + $0xd0] sm:$0xff] %vm1713, %v1707
        %1741 = vst.msk [vmem:[%s253 + $0xd8] sm:$0xff] %vm1713, %v1708
        %1742 = vst.msk [vmem:[%s253 + $0xe0] sm:$0xff] %vm1713, %v1709
        %1743 = vst.msk [vmem:[%s253 + $0xe8] sm:$0xff] %vm1713, %v1710
        %1744 = vst.msk [vmem:[%s253 + $0xf0] sm:$0xff] %vm1713, %v1711
        %1745 = vst.msk [vmem:[%s253 + $0xf8] sm:$0xff] %vm1713, %v1712
        %s1746 = sand.u32 %s141, 1
        %s1747 = sand.u32 %s141, 1
        %s1748 = smul.addr %s1747, 256
        %s1749 = scalar_lea.vmem [#allocation2], %s1748
        // Predicated region
        $region37: #{inception_b_forward.7} parent=35 // pred_check
          %p1750 = pneg %p151
        $region38: #{inception_b_forward.7} parent=35 // pred_check_branch
          %1752 = sbr.rel (%p1750) target = $region40
        $region39: #{inception_b_forward.7} parent=35 // pred_region
          %s1753 = smul.u32 32, %s19
          %s1754 = ssub.s32 73, %s1753
          %p1755 = scmp.lt.s32.totalorder %s1754, 32
          %s1756 = scalar_select %p1755, %s1754, 32
          %s1757 = smul.u32 128, %s1756
          %p1758 = scmp.ne.s32.totalorder 0, %s1757
          %s1759 = sadd.s32 %s20, %s1753
          %s1760 = smul.addr %s1759, 8
          %s1761 = scalar_lea.vmem %s4, %s1760
          // Predicated region
          $region41: #{inception_b_forward.7} parent=39 // pred_check
            %p1762 = pneg %p1758
          $region42: #{inception_b_forward.7} parent=39 // pred_check_branch
            %1764 = sbr.rel (%p1762) target = $region44
          $region43: #{inception_b_forward.7} parent=39 // pred_region
            // Predicated region
            $region45: #{inception_b_forward.7} parent=43 // pred_check
              _
            $region46: #{inception_b_forward.7} parent=43 // pred_check_branch
              %1766 = sbr.rel (0) target = $region48
            $region47: #{inception_b_forward.7} parent=43 // pred_region
              // Predicated region
              $region67: #{inception_b_forward.7} parent=47 // pred_check
                _
              $region68: #{inception_b_forward.7} parent=47 // pred_check_branch
                %1877 = sbr.rel (0) target = $region70
              $region69: #{inception_b_forward.7} parent=47 // pred_region
                %s1878 = sshrl.u32 %s1756, 5
                // While loop
                $region71: #{inception_b_forward.7} parent=69 // loop_pre_header
                  _
                $region72: #{inception_b_forward.7} parent=69 // loop_header
                  %s1880 = sphi 0, %s1882
                  %p1881 = scmp.ge.s32.totalorder %s1880, %s1878
                  %s1885 = sphi 0, %s1954
                  %s1886 = sphi %s1749, %s1957
                  %s1887 = sphi %s1761, %s1958
                $region73: #{inception_b_forward.7} parent=69 // loop_header_branch
                  %1884 = sbr.rel (%p1881) target = $region77
                $region74: #{inception_b_forward.7} parent=69 // loop_body
                  %v1888 = vld [vmem:[%s1886] sm:$0xff]
                  %1889 = vst [vmem:[%s1887] sm:$0xff] %v1888
                  %v1890 = vld [vmem:[%s1886 + $0x8] sm:$0xff]
                  %1891 = vst [vmem:[%s1887 + $0x8] sm:$0xff] %v1890
                  %v1892 = vld [vmem:[%s1886 + $0x10] sm:$0xff]
                  %1893 = vst [vmem:[%s1887 + $0x10] sm:$0xff] %v1892
                  %v1894 = vld [vmem:[%s1886 + $0x18] sm:$0xff]
                  %1895 = vst [vmem:[%s1887 + $0x18] sm:$0xff] %v1894
                  %v1896 = vld [vmem:[%s1886 + $0x20] sm:$0xff]
                  %1897 = vst [vmem:[%s1887 + $0x20] sm:$0xff] %v1896
                  %v1898 = vld [vmem:[%s1886 + $0x28] sm:$0xff]
                  %1899 = vst [vmem:[%s1887 + $0x28] sm:$0xff] %v1898
                  %v1900 = vld [vmem:[%s1886 + $0x30] sm:$0xff]
                  %1901 = vst [vmem:[%s1887 + $0x30] sm:$0xff] %v1900
                  %v1902 = vld [vmem:[%s1886 + $0x38] sm:$0xff]
                  %1903 = vst [vmem:[%s1887 + $0x38] sm:$0xff] %v1902
                  %v1904 = vld [vmem:[%s1886 + $0x40] sm:$0xff]
                  %1905 = vst [vmem:[%s1887 + $0x40] sm:$0xff] %v1904
                  %v1906 = vld [vmem:[%s1886 + $0x48] sm:$0xff]
                  %1907 = vst [vmem:[%s1887 + $0x48] sm:$0xff] %v1906
                  %v1908 = vld [vmem:[%s1886 + $0x50] sm:$0xff]
                  %1909 = vst [vmem:[%s1887 + $0x50] sm:$0xff] %v1908
                  %v1910 = vld [vmem:[%s1886 + $0x58] sm:$0xff]
                  %1911 = vst [vmem:[%s1887 + $0x58] sm:$0xff] %v1910
                  %v1912 = vld [vmem:[%s1886 + $0x60] sm:$0xff]
                  %1913 = vst [vmem:[%s1887 + $0x60] sm:$0xff] %v1912
                  %v1914 = vld [vmem:[%s1886 + $0x68] sm:$0xff]
                  %1915 = vst [vmem:[%s1887 + $0x68] sm:$0xff] %v1914
                  %v1916 = vld [vmem:[%s1886 + $0x70] sm:$0xff]
                  %1917 = vst [vmem:[%s1887 + $0x70] sm:$0xff] %v1916
                  %v1918 = vld [vmem:[%s1886 + $0x78] sm:$0xff]
                  %1919 = vst [vmem:[%s1887 + $0x78] sm:$0xff] %v1918
                  %v1920 = vld [vmem:[%s1886 + $0x80] sm:$0xff]
                  %1921 = vst [vmem:[%s1887 + $0x80] sm:$0xff] %v1920
                  %v1922 = vld [vmem:[%s1886 + $0x88] sm:$0xff]
                  %1923 = vst [vmem:[%s1887 + $0x88] sm:$0xff] %v1922
                  %v1924 = vld [vmem:[%s1886 + $0x90] sm:$0xff]
                  %1925 = vst [vmem:[%s1887 + $0x90] sm:$0xff] %v1924
                  %v1926 = vld [vmem:[%s1886 + $0x98] sm:$0xff]
                  %1927 = vst [vmem:[%s1887 + $0x98] sm:$0xff] %v1926
                  %v1928 = vld [vmem:[%s1886 + $0xa0] sm:$0xff]
                  %1929 = vst [vmem:[%s1887 + $0xa0] sm:$0xff] %v1928
                  %v1930 = vld [vmem:[%s1886 + $0xa8] sm:$0xff]
                  %1931 = vst [vmem:[%s1887 + $0xa8] sm:$0xff] %v1930
                  %v1932 = vld [vmem:[%s1886 + $0xb0] sm:$0xff]
                  %1933 = vst [vmem:[%s1887 + $0xb0] sm:$0xff] %v1932
                  %v1934 = vld [vmem:[%s1886 + $0xb8] sm:$0xff]
                  %1935 = vst [vmem:[%s1887 + $0xb8] sm:$0xff] %v1934
                  %v1936 = vld [vmem:[%s1886 + $0xc0] sm:$0xff]
                  %1937 = vst [vmem:[%s1887 + $0xc0] sm:$0xff] %v1936
                  %v1938 = vld [vmem:[%s1886 + $0xc8] sm:$0xff]
                  %1939 = vst [vmem:[%s1887 + $0xc8] sm:$0xff] %v1938
                  %v1940 = vld [vmem:[%s1886 + $0xd0] sm:$0xff]
                  %1941 = vst [vmem:[%s1887 + $0xd0] sm:$0xff] %v1940
                  %v1942 = vld [vmem:[%s1886 + $0xd8] sm:$0xff]
                  %1943 = vst [vmem:[%s1887 + $0xd8] sm:$0xff] %v1942
                  %v1944 = vld [vmem:[%s1886 + $0xe0] sm:$0xff]
                  %1945 = vst [vmem:[%s1887 + $0xe0] sm:$0xff] %v1944
                  %v1946 = vld [vmem:[%s1886 + $0xe8] sm:$0xff]
                  %1947 = vst [vmem:[%s1887 + $0xe8] sm:$0xff] %v1946
                  %v1948 = vld [vmem:[%s1886 + $0xf0] sm:$0xff]
                  %1949 = vst [vmem:[%s1887 + $0xf0] sm:$0xff] %v1948
                  %v1950 = vld [vmem:[%s1886 + $0xf8] sm:$0xff]
                  %1951 = vst [vmem:[%s1887 + $0xf8] sm:$0xff] %v1950
                  %s1952 = sadd.s32 1, %s1885
                  %p1953 = scmp.ge.s32.totalorder %s1952, %s1878
                  %s1954 = scalar_select %p1953, 0, %s1952
                  %s1955 = smul.u32 %s1954, 256
                  %s1956 = smul.u32 %s1954, 256
                  %s1957 = scalar_lea.vmem %s1749, %s1955 [#allocation2]
                  %s1958 = scalar_lea.vmem %s1761, %s1956
                $region75: #{inception_b_forward.7} parent=69 // loop_footer
                  %s1882 = sadd.s32 %s1880, 1
                $region76: #{inception_b_forward.7} parent=69 // loop_footer_branch
                  %1879 = sbr.rel target = $region72
                $region77: #{inception_b_forward.7} parent=69 // loop_exit
                  _
                %s1959 = sshrl.u32 %s1756, 5
                %s1960 = sand.u32 %s1756, 31
                %s1961 = smul.u32 %s1959, 32
                %s1962 = smul.u32 8, %s1961
                %s1963 = scalar_lea.vmem %s1749, %s1962 [#allocation2]
                %s1964 = smul.u32 8, %s1961
                %s1965 = scalar_lea.vmem %s1761, %s1964
                // While loop
                $region78: #{inception_b_forward.7} parent=69 // loop_pre_header
                  _
                $region79: #{inception_b_forward.7} parent=69 // loop_header
                  %s1967 = sphi 0, %s1969
                  %p1968 = scmp.ge.s32.totalorder %s1967, %s1960
                  %s1972 = sphi 0, %s1979
                  %s1973 = sphi %s1963, %s1982
                  %s1974 = sphi %s1965, %s1983
                $region80: #{inception_b_forward.7} parent=69 // loop_header_branch
                  %1971 = sbr.rel (%p1968) target = $region84
                $region81: #{inception_b_forward.7} parent=69 // loop_body
                  %v1975 = vld [vmem:[%s1973] sm:$0xff]
                  %1976 = vst [vmem:[%s1974] sm:$0xff] %v1975
                  %s1977 = sadd.s32 1, %s1972
                  %p1978 = scmp.ge.s32.totalorder %s1977, %s1960
                  %s1979 = scalar_select %p1978, 0, %s1977
                  %s1980 = smul.u32 %s1979, 8
                  %s1981 = smul.u32 %s1979, 8
                  %s1982 = scalar_lea.vmem %s1963, %s1980 [#allocation2]
                  %s1983 = scalar_lea.vmem %s1965, %s1981
                $region82: #{inception_b_forward.7} parent=69 // loop_footer
                  %s1969 = sadd.s32 %s1967, 1
                $region83: #{inception_b_forward.7} parent=69 // loop_footer_branch
                  %1966 = sbr.rel target = $region79
                $region84: #{inception_b_forward.7} parent=69 // loop_exit
                  _
              $region70: #{inception_b_forward.7} parent=47 // pred_fallthru
                _
              // Predicated region
              $region85: #{inception_b_forward.7} parent=47 // pred_check
                _
              $region86: #{inception_b_forward.7} parent=47 // pred_check_branch
                %1985 = sbr.rel target = $region88
              $region87: #{inception_b_forward.7} parent=47 // pred_region
                _
              $region88: #{inception_b_forward.7} parent=47 // pred_fallthru
                _
            $region48: #{inception_b_forward.7} parent=43 // pred_fallthru
              _
            // Predicated region
            $region49: #{inception_b_forward.7} parent=43 // pred_check
              _
            $region50: #{inception_b_forward.7} parent=43 // pred_check_branch
              %1768 = sbr.rel target = $region52
            $region51: #{inception_b_forward.7} parent=43 // pred_region
              %s1770 = sshrl.u32 %s1756, 5
              // While loop
              $region53: #{inception_b_forward.7} parent=51 // loop_pre_header
                _
              $region54: #{inception_b_forward.7} parent=51 // loop_header
                %s1772 = sphi 0, %s1774
                %p1773 = scmp.ge.s32.totalorder %s1772, %s1770
                %s1777 = sphi 0, %s1846
                %s1778 = sphi %s1749, %s1849
                %s1779 = sphi %s1761, %s1850
              $region55: #{inception_b_forward.7} parent=51 // loop_header_branch
                %1776 = sbr.rel (%p1773) target = $region59
              $region56: #{inception_b_forward.7} parent=51 // loop_body
                %v1780 = vld [vmem:[%s1778] sm:$0xff]
                %1781 = vst [vmem:[%s1779] sm:$0xff] %v1780
                %v1782 = vld [vmem:[%s1778 + $0x8] sm:$0xff]
                %1783 = vst [vmem:[%s1779 + $0x8] sm:$0xff] %v1782
                %v1784 = vld [vmem:[%s1778 + $0x10] sm:$0xff]
                %1785 = vst [vmem:[%s1779 + $0x10] sm:$0xff] %v1784
                %v1786 = vld [vmem:[%s1778 + $0x18] sm:$0xff]
                %1787 = vst [vmem:[%s1779 + $0x18] sm:$0xff] %v1786
                %v1788 = vld [vmem:[%s1778 + $0x20] sm:$0xff]
                %1789 = vst [vmem:[%s1779 + $0x20] sm:$0xff] %v1788
                %v1790 = vld [vmem:[%s1778 + $0x28] sm:$0xff]
                %1791 = vst [vmem:[%s1779 + $0x28] sm:$0xff] %v1790
                %v1792 = vld [vmem:[%s1778 + $0x30] sm:$0xff]
                %1793 = vst [vmem:[%s1779 + $0x30] sm:$0xff] %v1792
                %v1794 = vld [vmem:[%s1778 + $0x38] sm:$0xff]
                %1795 = vst [vmem:[%s1779 + $0x38] sm:$0xff] %v1794
                %v1796 = vld [vmem:[%s1778 + $0x40] sm:$0xff]
                %1797 = vst [vmem:[%s1779 + $0x40] sm:$0xff] %v1796
                %v1798 = vld [vmem:[%s1778 + $0x48] sm:$0xff]
                %1799 = vst [vmem:[%s1779 + $0x48] sm:$0xff] %v1798
                %v1800 = vld [vmem:[%s1778 + $0x50] sm:$0xff]
                %1801 = vst [vmem:[%s1779 + $0x50] sm:$0xff] %v1800
                %v1802 = vld [vmem:[%s1778 + $0x58] sm:$0xff]
                %1803 = vst [vmem:[%s1779 + $0x58] sm:$0xff] %v1802
                %v1804 = vld [vmem:[%s1778 + $0x60] sm:$0xff]
                %1805 = vst [vmem:[%s1779 + $0x60] sm:$0xff] %v1804
                %v1806 = vld [vmem:[%s1778 + $0x68] sm:$0xff]
                %1807 = vst [vmem:[%s1779 + $0x68] sm:$0xff] %v1806
                %v1808 = vld [vmem:[%s1778 + $0x70] sm:$0xff]
                %1809 = vst [vmem:[%s1779 + $0x70] sm:$0xff] %v1808
                %v1810 = vld [vmem:[%s1778 + $0x78] sm:$0xff]
                %1811 = vst [vmem:[%s1779 + $0x78] sm:$0xff] %v1810
                %v1812 = vld [vmem:[%s1778 + $0x80] sm:$0xff]
                %1813 = vst [vmem:[%s1779 + $0x80] sm:$0xff] %v1812
                %v1814 = vld [vmem:[%s1778 + $0x88] sm:$0xff]
                %1815 = vst [vmem:[%s1779 + $0x88] sm:$0xff] %v1814
                %v1816 = vld [vmem:[%s1778 + $0x90] sm:$0xff]
                %1817 = vst [vmem:[%s1779 + $0x90] sm:$0xff] %v1816
                %v1818 = vld [vmem:[%s1778 + $0x98] sm:$0xff]
                %1819 = vst [vmem:[%s1779 + $0x98] sm:$0xff] %v1818
                %v1820 = vld [vmem:[%s1778 + $0xa0] sm:$0xff]
                %1821 = vst [vmem:[%s1779 + $0xa0] sm:$0xff] %v1820
                %v1822 = vld [vmem:[%s1778 + $0xa8] sm:$0xff]
                %1823 = vst [vmem:[%s1779 + $0xa8] sm:$0xff] %v1822
                %v1824 = vld [vmem:[%s1778 + $0xb0] sm:$0xff]
                %1825 = vst [vmem:[%s1779 + $0xb0] sm:$0xff] %v1824
                %v1826 = vld [vmem:[%s1778 + $0xb8] sm:$0xff]
                %1827 = vst [vmem:[%s1779 + $0xb8] sm:$0xff] %v1826
                %v1828 = vld [vmem:[%s1778 + $0xc0] sm:$0xff]
                %1829 = vst [vmem:[%s1779 + $0xc0] sm:$0xff] %v1828
                %v1830 = vld [vmem:[%s1778 + $0xc8] sm:$0xff]
                %1831 = vst [vmem:[%s1779 + $0xc8] sm:$0xff] %v1830
                %v1832 = vld [vmem:[%s1778 + $0xd0] sm:$0xff]
                %1833 = vst [vmem:[%s1779 + $0xd0] sm:$0xff] %v1832
                %v1834 = vld [vmem:[%s1778 + $0xd8] sm:$0xff]
                %1835 = vst [vmem:[%s1779 + $0xd8] sm:$0xff] %v1834
                %v1836 = vld [vmem:[%s1778 + $0xe0] sm:$0xff]
                %1837 = vst [vmem:[%s1779 + $0xe0] sm:$0xff] %v1836
                %v1838 = vld [vmem:[%s1778 + $0xe8] sm:$0xff]
                %1839 = vst [vmem:[%s1779 + $0xe8] sm:$0xff] %v1838
                %v1840 = vld [vmem:[%s1778 + $0xf0] sm:$0xff]
                %1841 = vst [vmem:[%s1779 + $0xf0] sm:$0xff] %v1840
                %v1842 = vld [vmem:[%s1778 + $0xf8] sm:$0xff]
                %1843 = vst [vmem:[%s1779 + $0xf8] sm:$0xff] %v1842
                %s1844 = sadd.s32 1, %s1777
                %p1845 = scmp.ge.s32.totalorder %s1844, %s1770
                %s1846 = scalar_select %p1845, 0, %s1844
                %s1847 = smul.u32 %s1846, 256
                %s1848 = smul.u32 %s1846, 256
                %s1849 = scalar_lea.vmem %s1749, %s1847 [#allocation2]
                %s1850 = scalar_lea.vmem %s1761, %s1848
              $region57: #{inception_b_forward.7} parent=51 // loop_footer
                %s1774 = sadd.s32 %s1772, 1
              $region58: #{inception_b_forward.7} parent=51 // loop_footer_branch
                %1771 = sbr.rel target = $region54
              $region59: #{inception_b_forward.7} parent=51 // loop_exit
                _
              %s1851 = sshrl.u32 %s1756, 5
              %s1852 = sand.u32 %s1756, 31
              %s1853 = smul.u32 %s1851, 32
              %s1854 = smul.u32 8, %s1853
              %s1855 = scalar_lea.vmem %s1749, %s1854 [#allocation2]
              %s1856 = smul.u32 8, %s1853
              %s1857 = scalar_lea.vmem %s1761, %s1856
              // While loop
              $region60: #{inception_b_forward.7} parent=51 // loop_pre_header
                _
              $region61: #{inception_b_forward.7} parent=51 // loop_header
                %s1859 = sphi 0, %s1861
                %p1860 = scmp.ge.s32.totalorder %s1859, %s1852
                %s1864 = sphi 0, %s1871
                %s1865 = sphi %s1855, %s1874
                %s1866 = sphi %s1857, %s1875
              $region62: #{inception_b_forward.7} parent=51 // loop_header_branch
                %1863 = sbr.rel (%p1860) target = $region66
              $region63: #{inception_b_forward.7} parent=51 // loop_body
                %v1867 = vld [vmem:[%s1865] sm:$0xff]
                %1868 = vst [vmem:[%s1866] sm:$0xff] %v1867
                %s1869 = sadd.s32 1, %s1864
                %p1870 = scmp.ge.s32.totalorder %s1869, %s1852
                %s1871 = scalar_select %p1870, 0, %s1869
                %s1872 = smul.u32 %s1871, 8
                %s1873 = smul.u32 %s1871, 8
                %s1874 = scalar_lea.vmem %s1855, %s1872 [#allocation2]
                %s1875 = scalar_lea.vmem %s1857, %s1873
              $region64: #{inception_b_forward.7} parent=51 // loop_footer
                %s1861 = sadd.s32 %s1859, 1
              $region65: #{inception_b_forward.7} parent=51 // loop_footer_branch
                %1858 = sbr.rel target = $region61
              $region66: #{inception_b_forward.7} parent=51 // loop_exit
                _
            $region52: #{inception_b_forward.7} parent=43 // pred_fallthru
              _
          $region44: #{inception_b_forward.7} parent=39 // pred_fallthru
            _
          %1986 = vnop
        $region40: #{inception_b_forward.7} parent=35 // pred_fallthru
          _
      $region36: #{inception_b_forward.7} parent=5 // pred_fallthru
        _
      %p1987 = scmp.le.s32.totalorder 2, %s10
      // Predicated region
      $region89: #{inception_b_forward.7} parent=5 // pred_check
        %p1988 = pneg %p1987
      $region90: #{inception_b_forward.7} parent=5 // pred_check_branch
        %1990 = sbr.rel (%p1988) target = $region92
      $region91: #{inception_b_forward.7} parent=5 // pred_region
        %s1991 = ssub.s32 %s10, 2
        // Predicated region
        $region93: #{inception_b_forward.7} parent=91 // pred_check
          %p1992 = pneg %p157
        $region94: #{inception_b_forward.7} parent=91 // pred_check_branch
          %1994 = sbr.rel (%p1992) target = $region96
        $region95: #{inception_b_forward.7} parent=91 // pred_region
          %s1995 = sand.u32 %s142, 1
          %s1996 = sand.u32 %s142, 1
          %s1997 = smul.addr %s1996, 256
          %s1998 = scalar_lea.vmem [#allocation2], %s1997
        $region96: #{inception_b_forward.7} parent=91 // pred_fallthru
          _
      $region92: #{inception_b_forward.7} parent=5 // pred_fallthru
        _
    $region6: #{inception_b_forward.7} parent=1 // loop_footer
      %s14 = sadd.s32 1, %s10
    $region7: #{inception_b_forward.7} parent=1 // loop_footer_branch
      %9 = sbr.rel target = $region3
    $region8: #{inception_b_forward.7} parent=1 // loop_exit
      _

// kernel: inception_b_forward.8
$region0: #{inception_b_forward.8}
  #allocation0 [shape = 'u32[]', space=smem, size = 0x4, offset = 0x4, fixed_abs, tag = 'smem constant byte address 0x4 - core index']
  #allocation1 [shape = 'u32[144,128]{1,0:T(1,128)}', space=vmem, size = 0x12000, scoped, tag = 'internal scratch']
  %s0 = inlined_call_operand.vmem [shape: bf16[128,864], index: 0, kind: input, shape index: {}]
  %s1 = inlined_call_operand.vmem [shape: bf16[864,96], index: 1, kind: input, shape index: {}]
  %s2 = inlined_call_operand.vmem [shape: f32[1,96], index: 2, kind: input, shape index: {}]
  %s3 = inlined_call_operand.vmem [shape: f32[1,96], index: 3, kind: input, shape index: {}]
  %s4 = inlined_call_operand.vmem [shape: f32[128,96], index: 4, kind: output, shape index: {}]
  %s5 = sld [smem:[#allocation0]]
  $region26: #{inception_b_forward.8} parent=0
    _
  %s7 = ssub.s32 1, %s5
  %s8 = scalar_select 0, %s7, %s5
  // Predicated region
  $region2: #{inception_b_forward.8} parent=0 // pred_check
    _
  $region3: #{inception_b_forward.8} parent=0 // pred_check_branch
    %10 = sbr.rel (0) target = $region5
  $region4: #{inception_b_forward.8} parent=0 // pred_region
    _
  $region5: #{inception_b_forward.8} parent=0 // pred_fallthru
    _
  // Predicated region
  $region6: #{inception_b_forward.8} parent=0 // pred_check
    _
  $region7: #{inception_b_forward.8} parent=0 // pred_check_branch
    %12 = sbr.rel (0) target = $region9
  $region8: #{inception_b_forward.8} parent=0 // pred_region
    _
  $region9: #{inception_b_forward.8} parent=0 // pred_fallthru
    _
  // Predicated region
  $region10: #{inception_b_forward.8} parent=0 // pred_check
    _
  $region11: #{inception_b_forward.8} parent=0 // pred_check_branch
    %14 = sbr.rel (0) target = $region13
  $region12: #{inception_b_forward.8} parent=0 // pred_region
    _
  $region13: #{inception_b_forward.8} parent=0 // pred_fallthru
    _
  // Predicated region
  $region14: #{inception_b_forward.8} parent=0 // pred_check
    _
  $region15: #{inception_b_forward.8} parent=0 // pred_check_branch
    %16 = sbr.rel (0) target = $region17
  $region16: #{inception_b_forward.8} parent=0 // pred_region
    _
  $region17: #{inception_b_forward.8} parent=0 // pred_fallthru
    _
  %v18 = vld [vmem:[%s0] sm:$0xff]
  %v19 = vld [vmem:[%s0 + $0x8] sm:$0xff]
  %v20 = vld [vmem:[%s0 + $0x10] sm:$0xff]
  %v21 = vld [vmem:[%s0 + $0x18] sm:$0xf]
  %v22 = vld [vmem:[%s0 + $0x1c] sm:$0xff]
  %v23 = vld [vmem:[%s0 + $0x24] sm:$0xff]
  %v24 = vld [vmem:[%s0 + $0x2c] sm:$0xff]
  %v25 = vld [vmem:[%s0 + $0x34] sm:$0xf]
  %v26 = vld [vmem:[%s0 + $0x38] sm:$0xff]
  %v27 = vld [vmem:[%s0 + $0x40] sm:$0xff]
  %v28 = vld [vmem:[%s0 + $0x48] sm:$0xff]
  %v29 = vld [vmem:[%s0 + $0x50] sm:$0xf]
  %v30 = vld [vmem:[%s0 + $0x54] sm:$0xff]
  %v31 = vld [vmem:[%s0 + $0x5c] sm:$0xff]
  %v32 = vld [vmem:[%s0 + $0x64] sm:$0xff]
  %v33 = vld [vmem:[%s0 + $0x6c] sm:$0xf]
  %v34 = vld [vmem:[%s0 + $0x70] sm:$0xff]
  %v35 = vld [vmem:[%s0 + $0x78] sm:$0xff]
  %v36 = vld [vmem:[%s0 + $0x80] sm:$0xff]
  %v37 = vld [vmem:[%s0 + $0x88] sm:$0xf]
  %v38 = vld [vmem:[%s0 + $0x8c] sm:$0xff]
  %v39 = vld [vmem:[%s0 + $0x94] sm:$0xff]
  %v40 = vld [vmem:[%s0 + $0x9c] sm:$0xff]
  %v41 = vld [vmem:[%s0 + $0xa4] sm:$0xf]
  %v42 = vld [vmem:[%s0 + $0xa8] sm:$0xff]
  %v43 = vld [vmem:[%s0 + $0xb0] sm:$0xff]
  %v44 = vld [vmem:[%s0 + $0xb8] sm:$0xff]
  %v45 = vld [vmem:[%s0 + $0xc0] sm:$0xf]
  %v46 = vld [vmem:[%s0 + $0xc4] sm:$0xff]
  %v47 = vld [vmem:[%s0 + $0xcc] sm:$0xff]
  %v48 = vld [vmem:[%s0 + $0xd4] sm:$0xff]
  %v49 = vld [vmem:[%s0 + $0xdc] sm:$0xf]
  %v50 = vld [vmem:[%s0 + $0xe0] sm:$0xff]
  %v51 = vld [vmem:[%s0 + $0xe8] sm:$0xff]
  %v52 = vld [vmem:[%s0 + $0xf0] sm:$0xff]
  %v53 = vld [vmem:[%s0 + $0xf8] sm:$0xf]
  %v54 = vld [vmem:[%s0 + $0xfc] sm:$0xff]
  %v55 = vld [vmem:[%s0 + $0x104] sm:$0xff]
  %v56 = vld [vmem:[%s0 + $0x10c] sm:$0xff]
  %v57 = vld [vmem:[%s0 + $0x114] sm:$0xf]
  %v58 = vld [vmem:[%s0 + $0x118] sm:$0xff]
  %v59 = vld [vmem:[%s0 + $0x120] sm:$0xff]
  %v60 = vld [vmem:[%s0 + $0x128] sm:$0xff]
  %v61 = vld [vmem:[%s0 + $0x130] sm:$0xf]
  %v62 = vld [vmem:[%s0 + $0x134] sm:$0xff]
  %v63 = vld [vmem:[%s0 + $0x13c] sm:$0xff]
  %v64 = vld [vmem:[%s0 + $0x144] sm:$0xff]
  %v65 = vld [vmem:[%s0 + $0x14c] sm:$0xf]
  %v66 = vld [vmem:[%s0 + $0x150] sm:$0xff]
  %v67 = vld [vmem:[%s0 + $0x158] sm:$0xff]
  %v68 = vld [vmem:[%s0 + $0x160] sm:$0xff]
  %v69 = vld [vmem:[%s0 + $0x168] sm:$0xf]
  %v70 = vld [vmem:[%s0 + $0x16c] sm:$0xff]
  %v71 = vld [vmem:[%s0 + $0x174] sm:$0xff]
  %v72 = vld [vmem:[%s0 + $0x17c] sm:$0xff]
  %v73 = vld [vmem:[%s0 + $0x184] sm:$0xf]
  %v74 = vld [vmem:[%s0 + $0x188] sm:$0xff]
  %v75 = vld [vmem:[%s0 + $0x190] sm:$0xff]
  %v76 = vld [vmem:[%s0 + $0x198] sm:$0xff]
  %v77 = vld [vmem:[%s0 + $0x1a0] sm:$0xf]
  %v78 = vld [vmem:[%s0 + $0x1a4] sm:$0xff]
  %v79 = vld [vmem:[%s0 + $0x1ac] sm:$0xff]
  %v80 = vld [vmem:[%s0 + $0x1b4] sm:$0xff]
  %v81 = vld [vmem:[%s0 + $0x1bc] sm:$0xf]
  %v82 = vld [vmem:[%s1] sm:$0xf]
  %v83 = vld [vmem:[%s1 + $0x4] sm:$0xf]
  %v84 = vld [vmem:[%s1 + $0x8] sm:$0xf]
  %v85 = vld [vmem:[%s1 + $0xc] sm:$0xf]
  %v86 = vld [vmem:[%s1 + $0x10] sm:$0xf]
  %v87 = vld [vmem:[%s1 + $0x14] sm:$0xf]
  %v88 = vld [vmem:[%s1 + $0x18] sm:$0xf]
  %v89 = vld [vmem:[%s1 + $0x1c] sm:$0xf]
  %v90 = vld [vmem:[%s1 + $0x20] sm:$0xf]
  %v91 = vld [vmem:[%s1 + $0x24] sm:$0xf]
  %v92 = vld [vmem:[%s1 + $0x28] sm:$0xf]
  %v93 = vld [vmem:[%s1 + $0x2c] sm:$0xf]
  %v94 = vld [vmem:[%s1 + $0x30] sm:$0xf]
  %v95 = vld [vmem:[%s1 + $0x34] sm:$0xf]
  %v96 = vld [vmem:[%s1 + $0x38] sm:$0xf]
  %v97 = vld [vmem:[%s1 + $0x3c] sm:$0xf]
  %v98 = vld [vmem:[%s1 + $0x40] sm:$0xf]
  %v99 = vld [vmem:[%s1 + $0x44] sm:$0xf]
  %v100 = vld [vmem:[%s1 + $0x48] sm:$0xf]
  %v101 = vld [vmem:[%s1 + $0x4c] sm:$0xf]
  %v102 = vld [vmem:[%s1 + $0x50] sm:$0xf]
  %v103 = vld [vmem:[%s1 + $0x54] sm:$0xf]
  %v104 = vld [vmem:[%s1 + $0x58] sm:$0xf]
  %v105 = vld [vmem:[%s1 + $0x5c] sm:$0xf]
  %v106 = vld [vmem:[%s1 + $0x60] sm:$0xf]
  %v107 = vld [vmem:[%s1 + $0x64] sm:$0xf]
  %v108 = vld [vmem:[%s1 + $0x68] sm:$0xf]
  %v109 = vld [vmem:[%s1 + $0x6c] sm:$0xf]
  %v110 = vld [vmem:[%s1 + $0x70] sm:$0xf]
  %v111 = vld [vmem:[%s1 + $0x74] sm:$0xf]
  %v112 = vld [vmem:[%s1 + $0x78] sm:$0xf]
  %v113 = vld [vmem:[%s1 + $0x7c] sm:$0xf]
  %v114 = vld [vmem:[%s1 + $0x80] sm:$0xf]
  %v115 = vld [vmem:[%s1 + $0x84] sm:$0xf]
  %v116 = vld [vmem:[%s1 + $0x88] sm:$0xf]
  %v117 = vld [vmem:[%s1 + $0x8c] sm:$0xf]
  %v118 = vld [vmem:[%s1 + $0x90] sm:$0xf]
  %v119 = vld [vmem:[%s1 + $0x94] sm:$0xf]
  %v120 = vld [vmem:[%s1 + $0x98] sm:$0xf]
  %v121 = vld [vmem:[%s1 + $0x9c] sm:$0xf]
  %v122 = vld [vmem:[%s1 + $0xa0] sm:$0xf]
  %v123 = vld [vmem:[%s1 + $0xa4] sm:$0xf]
  %v124 = vld [vmem:[%s1 + $0xa8] sm:$0xf]
  %v125 = vld [vmem:[%s1 + $0xac] sm:$0xf]
  %v126 = vld [vmem:[%s1 + $0xb0] sm:$0xf]
  %v127 = vld [vmem:[%s1 + $0xb4] sm:$0xf]
  %v128 = vld [vmem:[%s1 + $0xb8] sm:$0xf]
  %v129 = vld [vmem:[%s1 + $0xbc] sm:$0xf]
  %v130 = vld [vmem:[%s1 + $0xc0] sm:$0xf]
  %v131 = vld [vmem:[%s1 + $0xc4] sm:$0xf]
  %v132 = vld [vmem:[%s1 + $0xc8] sm:$0xf]
  %v133 = vld [vmem:[%s1 + $0xcc] sm:$0xf]
  %v134 = vld [vmem:[%s1 + $0xd0] sm:$0xf]
  %v135 = vld [vmem:[%s1 + $0xd4] sm:$0xf]
  %v136 = vld [vmem:[%s1 + $0xd8] sm:$0xf]
  %v137 = vld [vmem:[%s1 + $0xdc] sm:$0xf]
  %v138 = vld [vmem:[%s1 + $0xe0] sm:$0xf]
  %v139 = vld [vmem:[%s1 + $0xe4] sm:$0xf]
  %v140 = vld [vmem:[%s1 + $0xe8] sm:$0xf]
  %v141 = vld [vmem:[%s1 + $0xec] sm:$0xf]
  %v142 = vld [vmem:[%s1 + $0xf0] sm:$0xf]
  %v143 = vld [vmem:[%s1 + $0xf4] sm:$0xf]
  %v144 = vld [vmem:[%s1 + $0xf8] sm:$0xf]
  %v145 = vld [vmem:[%s1 + $0xfc] sm:$0xf]
  %v146 = vld [vmem:[%s1 + $0x100] sm:$0xf]
  %v147 = vld [vmem:[%s1 + $0x104] sm:$0xf]
  %v148 = vld [vmem:[%s1 + $0x108] sm:$0xf]
  %v149 = vld [vmem:[%s1 + $0x10c] sm:$0xf]
  %v150 = vld [vmem:[%s1 + $0x110] sm:$0xf]
  %v151 = vld [vmem:[%s1 + $0x114] sm:$0xf]
  %v152 = vld [vmem:[%s1 + $0x118] sm:$0xf]
  %v153 = vld [vmem:[%s1 + $0x11c] sm:$0xf]
  %v154 = vld [vmem:[%s1 + $0x120] sm:$0xf]
  %v155 = vld [vmem:[%s1 + $0x124] sm:$0xf]
  %v156 = vld [vmem:[%s1 + $0x128] sm:$0xf]
  %v157 = vld [vmem:[%s1 + $0x12c] sm:$0xf]
  %v158 = vld [vmem:[%s1 + $0x130] sm:$0xf]
  %v159 = vld [vmem:[%s1 + $0x134] sm:$0xf]
  %v160 = vld [vmem:[%s1 + $0x138] sm:$0xf]
  %v161 = vld [vmem:[%s1 + $0x13c] sm:$0xf]
  %v162 = vld [vmem:[%s1 + $0x140] sm:$0xf]
  %v163 = vld [vmem:[%s1 + $0x144] sm:$0xf]
  %v164 = vld [vmem:[%s1 + $0x148] sm:$0xf]
  %v165 = vld [vmem:[%s1 + $0x14c] sm:$0xf]
  %v166 = vld [vmem:[%s1 + $0x150] sm:$0xf]
  %v167 = vld [vmem:[%s1 + $0x154] sm:$0xf]
  %v168 = vld [vmem:[%s1 + $0x158] sm:$0xf]
  %v169 = vld [vmem:[%s1 + $0x15c] sm:$0xf]
  %v170 = vld [vmem:[%s1 + $0x160] sm:$0xf]
  %v171 = vld [vmem:[%s1 + $0x164] sm:$0xf]
  %v172 = vld [vmem:[%s1 + $0x168] sm:$0xf]
  %v173 = vld [vmem:[%s1 + $0x16c] sm:$0xf]
  %v174 = vld [vmem:[%s1 + $0x170] sm:$0xf]
  %v175 = vld [vmem:[%s1 + $0x174] sm:$0xf]
  %v176 = vld [vmem:[%s1 + $0x178] sm:$0xf]
  %v177 = vld [vmem:[%s1 + $0x17c] sm:$0xf]
  %v178 = vld [vmem:[%s1 + $0x180] sm:$0xf]
  %v179 = vld [vmem:[%s1 + $0x184] sm:$0xf]
  %v180 = vld [vmem:[%s1 + $0x188] sm:$0xf]
  %v181 = vld [vmem:[%s1 + $0x18c] sm:$0xf]
  %v182 = vld [vmem:[%s1 + $0x190] sm:$0xf]
  %v183 = vld [vmem:[%s1 + $0x194] sm:$0xf]
  %v184 = vld [vmem:[%s1 + $0x198] sm:$0xf]
  %v185 = vld [vmem:[%s1 + $0x19c] sm:$0xf]
  %v186 = vld [vmem:[%s1 + $0x1a0] sm:$0xf]
  %v187 = vld [vmem:[%s1 + $0x1a4] sm:$0xf]
  %v188 = vld [vmem:[%s1 + $0x1a8] sm:$0xf]
  %v189 = vld [vmem:[%s1 + $0x1ac] sm:$0xf]
  %v254 = vunpack.c.l.b16 %v18
  %v255 = vunpack.c.h.b16 %v18
  %v256 = vunpack.c.l.b16 %v19
  %v257 = vunpack.c.h.b16 %v19
  %v258 = vunpack.c.l.b16 %v20
  %v259 = vunpack.c.h.b16 %v20
  %v260 = vunpack.c.l.b16 %v21
  %v261 = vunpack.c.l.b16 %v22
  %v262 = vunpack.c.h.b16 %v22
  %v263 = vunpack.c.l.b16 %v23
  %v264 = vunpack.c.h.b16 %v23
  %v265 = vunpack.c.l.b16 %v24
  %v266 = vunpack.c.h.b16 %v24
  %v267 = vunpack.c.l.b16 %v25
  %v268 = vunpack.c.l.b16 %v26
  %v269 = vunpack.c.h.b16 %v26
  %v270 = vunpack.c.l.b16 %v27
  %v271 = vunpack.c.h.b16 %v27
  %v272 = vunpack.c.l.b16 %v28
  %v273 = vunpack.c.h.b16 %v28
  %v274 = vunpack.c.l.b16 %v29
  %v275 = vunpack.c.l.b16 %v30
  %v276 = vunpack.c.h.b16 %v30
  %v277 = vunpack.c.l.b16 %v31
  %v278 = vunpack.c.h.b16 %v31
  %v279 = vunpack.c.l.b16 %v32
  %v280 = vunpack.c.h.b16 %v32
  %v281 = vunpack.c.l.b16 %v33
  %v282 = vunpack.c.l.b16 %v34
  %v283 = vunpack.c.h.b16 %v34
  %v284 = vunpack.c.l.b16 %v35
  %v285 = vunpack.c.h.b16 %v35
  %v286 = vunpack.c.l.b16 %v36
  %v287 = vunpack.c.h.b16 %v36
  %v288 = vunpack.c.l.b16 %v37
  %v289 = vunpack.c.l.b16 %v38
  %v290 = vunpack.c.h.b16 %v38
  %v291 = vunpack.c.l.b16 %v39
  %v292 = vunpack.c.h.b16 %v39
  %v293 = vunpack.c.l.b16 %v40
  %v294 = vunpack.c.h.b16 %v40
  %v295 = vunpack.c.l.b16 %v41
  %v296 = vunpack.c.l.b16 %v42
  %v297 = vunpack.c.h.b16 %v42
  %v298 = vunpack.c.l.b16 %v43
  %v299 = vunpack.c.h.b16 %v43
  %v300 = vunpack.c.l.b16 %v44
  %v301 = vunpack.c.h.b16 %v44
  %v302 = vunpack.c.l.b16 %v45
  %v303 = vunpack.c.l.b16 %v46
  %v304 = vunpack.c.h.b16 %v46
  %v305 = vunpack.c.l.b16 %v47
  %v306 = vunpack.c.h.b16 %v47
  %v307 = vunpack.c.l.b16 %v48
  %v308 = vunpack.c.h.b16 %v48
  %v309 = vunpack.c.l.b16 %v49
  %v310 = vunpack.c.l.b16 %v50
  %v311 = vunpack.c.h.b16 %v50
  %v312 = vunpack.c.l.b16 %v51
  %v313 = vunpack.c.h.b16 %v51
  %v314 = vunpack.c.l.b16 %v52
  %v315 = vunpack.c.h.b16 %v52
  %v316 = vunpack.c.l.b16 %v53
  %v317 = vunpack.c.l.b16 %v54
  %v318 = vunpack.c.h.b16 %v54
  %v319 = vunpack.c.l.b16 %v55
  %v320 = vunpack.c.h.b16 %v55
  %v321 = vunpack.c.l.b16 %v56
  %v322 = vunpack.c.h.b16 %v56
  %v323 = vunpack.c.l.b16 %v57
  %v324 = vunpack.c.l.b16 %v58
  %v325 = vunpack.c.h.b16 %v58
  %v326 = vunpack.c.l.b16 %v59
  %v327 = vunpack.c.h.b16 %v59
  %v328 = vunpack.c.l.b16 %v60
  %v329 = vunpack.c.h.b16 %v60
  %v330 = vunpack.c.l.b16 %v61
  %v331 = vunpack.c.l.b16 %v62
  %v332 = vunpack.c.h.b16 %v62
  %v333 = vunpack.c.l.b16 %v63
  %v334 = vunpack.c.h.b16 %v63
  %v335 = vunpack.c.l.b16 %v64
  %v336 = vunpack.c.h.b16 %v64
  %v337 = vunpack.c.l.b16 %v65
  %v338 = vunpack.c.l.b16 %v66
  %v339 = vunpack.c.h.b16 %v66
  %v340 = vunpack.c.l.b16 %v67
  %v341 = vunpack.c.h.b16 %v67
  %v342 = vunpack.c.l.b16 %v68
  %v343 = vunpack.c.h.b16 %v68
  %v344 = vunpack.c.l.b16 %v69
  %v345 = vunpack.c.l.b16 %v70
  %v346 = vunpack.c.h.b16 %v70
  %v347 = vunpack.c.l.b16 %v71
  %v348 = vunpack.c.h.b16 %v71
  %v349 = vunpack.c.l.b16 %v72
  %v350 = vunpack.c.h.b16 %v72
  %v351 = vunpack.c.l.b16 %v73
  %v352 = vunpack.c.l.b16 %v74
  %v353 = vunpack.c.h.b16 %v74
  %v354 = vunpack.c.l.b16 %v75
  %v355 = vunpack.c.h.b16 %v75
  %v356 = vunpack.c.l.b16 %v76
  %v357 = vunpack.c.h.b16 %v76
  %v358 = vunpack.c.l.b16 %v77
  %v359 = vunpack.c.l.b16 %v78
  %v360 = vunpack.c.h.b16 %v78
  %v361 = vunpack.c.l.b16 %v79
  %v362 = vunpack.c.h.b16 %v79
  %v363 = vunpack.c.l.b16 %v80
  %v364 = vunpack.c.h.b16 %v80
  %v365 = vunpack.c.l.b16 %v81
  %v366 = vpack.c.b16 %v261, %v254
  %v367 = vpack.c.b16 %v262, %v255
  %v368 = vpack.c.b16 %v263, %v256
  %v369 = vpack.c.b16 %v264, %v257
  %v370 = vpack.c.b16 %v265, %v258
  %v371 = vpack.c.b16 %v266, %v259
  %v372 = vpack.c.b16 %v267, %v260
  %v373 = vpack.c.b16 %v275, %v268
  %v374 = vpack.c.b16 %v276, %v269
  %v375 = vpack.c.b16 %v277, %v270
  %v376 = vpack.c.b16 %v278, %v271
  %v377 = vpack.c.b16 %v279, %v272
  %v378 = vpack.c.b16 %v280, %v273
  %v379 = vpack.c.b16 %v281, %v274
  %v380 = vpack.c.b16 %v289, %v282
  %v381 = vpack.c.b16 %v290, %v283
  %v382 = vpack.c.b16 %v291, %v284
  %v383 = vpack.c.b16 %v292, %v285
  %v384 = vpack.c.b16 %v293, %v286
  %v385 = vpack.c.b16 %v294, %v287
  %v386 = vpack.c.b16 %v295, %v288
  %v387 = vpack.c.b16 %v303, %v296
  %v388 = vpack.c.b16 %v304, %v297
  %v389 = vpack.c.b16 %v305, %v298
  %v390 = vpack.c.b16 %v306, %v299
  %v391 = vpack.c.b16 %v307, %v300
  %v392 = vpack.c.b16 %v308, %v301
  %v393 = vpack.c.b16 %v309, %v302
  %v394 = vpack.c.b16 %v317, %v310
  %v395 = vpack.c.b16 %v318, %v311
  %v396 = vpack.c.b16 %v319, %v312
  %v397 = vpack.c.b16 %v320, %v313
  %v398 = vpack.c.b16 %v321, %v314
  %v399 = vpack.c.b16 %v322, %v315
  %v400 = vpack.c.b16 %v323, %v316
  %v401 = vpack.c.b16 %v331, %v324
  %v402 = vpack.c.b16 %v332, %v325
  %v403 = vpack.c.b16 %v333, %v326
  %v404 = vpack.c.b16 %v334, %v327
  %v405 = vpack.c.b16 %v335, %v328
  %v406 = vpack.c.b16 %v336, %v329
  %v407 = vpack.c.b16 %v337, %v330
  %v408 = vpack.c.b16 %v345, %v338
  %v409 = vpack.c.b16 %v346, %v339
  %v410 = vpack.c.b16 %v347, %v340
  %v411 = vpack.c.b16 %v348, %v341
  %v412 = vpack.c.b16 %v349, %v342
  %v413 = vpack.c.b16 %v350, %v343
  %v414 = vpack.c.b16 %v351, %v344
  %v415 = vpack.c.b16 %v359, %v352
  %v416 = vpack.c.b16 %v360, %v353
  %v417 = vpack.c.b16 %v361, %v354
  %v418 = vpack.c.b16 %v362, %v355
  %v419 = vpack.c.b16 %v363, %v356
  %v420 = vpack.c.b16 %v364, %v357
  %v421 = vpack.c.b16 %v365, %v358
  %v578 = vunpack.c.l.b16 %v82
  %v579 = vunpack.c.l.b16 %v83
  %v580 = vunpack.c.l.b16 %v84
  %v581 = vunpack.c.l.b16 %v85
  %v582 = vunpack.c.l.b16 %v86
  %v583 = vunpack.c.l.b16 %v87
  %v584 = vunpack.c.l.b16 %v88
  %v585 = vunpack.c.l.b16 %v89
  %v586 = vunpack.c.l.b16 %v90
  %v587 = vunpack.c.l.b16 %v91
  %v588 = vunpack.c.l.b16 %v92
  %v589 = vunpack.c.l.b16 %v93
  %v590 = vunpack.c.l.b16 %v94
  %v591 = vunpack.c.l.b16 %v95
  %v592 = vunpack.c.l.b16 %v96
  %v593 = vunpack.c.l.b16 %v97
  %v594 = vunpack.c.l.b16 %v98
  %v595 = vunpack.c.l.b16 %v99
  %v596 = vunpack.c.l.b16 %v100
  %v597 = vunpack.c.l.b16 %v101
  %v598 = vunpack.c.l.b16 %v102
  %v599 = vunpack.c.l.b16 %v103
  %v600 = vunpack.c.l.b16 %v104
  %v601 = vunpack.c.l.b16 %v105
  %v602 = vunpack.c.l.b16 %v106
  %v603 = vunpack.c.l.b16 %v107
  %v604 = vunpack.c.l.b16 %v108
  %v605 = vunpack.c.l.b16 %v109
  %v606 = vunpack.c.l.b16 %v110
  %v607 = vunpack.c.l.b16 %v111
  %v608 = vunpack.c.l.b16 %v112
  %v609 = vunpack.c.l.b16 %v113
  %v610 = vunpack.c.l.b16 %v114
  %v611 = vunpack.c.l.b16 %v115
  %v612 = vunpack.c.l.b16 %v116
  %v613 = vunpack.c.l.b16 %v117
  %v614 = vunpack.c.l.b16 %v118
  %v615 = vunpack.c.l.b16 %v119
  %v616 = vunpack.c.l.b16 %v120
  %v617 = vunpack.c.l.b16 %v121
  %v618 = vunpack.c.l.b16 %v122
  %v619 = vunpack.c.l.b16 %v123
  %v620 = vunpack.c.l.b16 %v124
  %v621 = vunpack.c.l.b16 %v125
  %v622 = vunpack.c.l.b16 %v126
  %v623 = vunpack.c.l.b16 %v127
  %v624 = vunpack.c.l.b16 %v128
  %v625 = vunpack.c.l.b16 %v129
  %v626 = vunpack.c.l.b16 %v130
  %v627 = vunpack.c.l.b16 %v131
  %v628 = vunpack.c.l.b16 %v132
  %v629 = vunpack.c.l.b16 %v133
  %v630 = vunpack.c.l.b16 %v134
  %v631 = vunpack.c.l.b16 %v135
  %v632 = vunpack.c.l.b16 %v136
  %v633 = vunpack.c.l.b16 %v137
  %v634 = vunpack.c.l.b16 %v138
  %v635 = vunpack.c.l.b16 %v139
  %v636 = vunpack.c.l.b16 %v140
  %v637 = vunpack.c.l.b16 %v141
  %v638 = vunpack.c.l.b16 %v142
  %v639 = vunpack.c.l.b16 %v143
  %v640 = vunpack.c.l.b16 %v144
  %v641 = vunpack.c.l.b16 %v145
  %v642 = vunpack.c.l.b16 %v146
  %v643 = vunpack.c.l.b16 %v147
  %v644 = vunpack.c.l.b16 %v148
  %v645 = vunpack.c.l.b16 %v149
  %v646 = vunpack.c.l.b16 %v150
  %v647 = vunpack.c.l.b16 %v151
  %v648 = vunpack.c.l.b16 %v152
  %v649 = vunpack.c.l.b16 %v153
  %v650 = vunpack.c.l.b16 %v154
  %v651 = vunpack.c.l.b16 %v155
  %v652 = vunpack.c.l.b16 %v156
  %v653 = vunpack.c.l.b16 %v157
  %v654 = vunpack.c.l.b16 %v158
  %v655 = vunpack.c.l.b16 %v159
  %v656 = vunpack.c.l.b16 %v160
  %v657 = vunpack.c.l.b16 %v161
  %v658 = vunpack.c.l.b16 %v162
  %v659 = vunpack.c.l.b16 %v163
  %v660 = vunpack.c.l.b16 %v164
  %v661 = vunpack.c.l.b16 %v165
  %v662 = vunpack.c.l.b16 %v166
  %v663 = vunpack.c.l.b16 %v167
  %v664 = vunpack.c.l.b16 %v168
  %v665 = vunpack.c.l.b16 %v169
  %v666 = vunpack.c.l.b16 %v170
  %v667 = vunpack.c.l.b16 %v171
  %v668 = vunpack.c.l.b16 %v172
  %v669 = vunpack.c.l.b16 %v173
  %v670 = vunpack.c.l.b16 %v174
  %v671 = vunpack.c.l.b16 %v175
  %v672 = vunpack.c.l.b16 %v176
  %v673 = vunpack.c.l.b16 %v177
  %v674 = vunpack.c.l.b16 %v178
  %v675 = vunpack.c.l.b16 %v179
  %v676 = vunpack.c.l.b16 %v180
  %v677 = vunpack.c.l.b16 %v181
  %v678 = vunpack.c.l.b16 %v182
  %v679 = vunpack.c.l.b16 %v183
  %v680 = vunpack.c.l.b16 %v184
  %v681 = vunpack.c.l.b16 %v185
  %v682 = vunpack.c.l.b16 %v186
  %v683 = vunpack.c.l.b16 %v187
  %v684 = vunpack.c.l.b16 %v188
  %v685 = vunpack.c.l.b16 %v189
  %v686 = vpack.c.b16 %v579, %v578
  %v687 = vpack.c.b16 %v581, %v580
  %v688 = vpack.c.b16 %v583, %v582
  %v689 = vpack.c.b16 %v585, %v584
  %v690 = vpack.c.b16 %v587, %v586
  %v691 = vpack.c.b16 %v589, %v588
  %v692 = vpack.c.b16 %v591, %v590
  %v693 = vpack.c.b16 %v593, %v592
  %v694 = vpack.c.b16 %v595, %v594
  %v695 = vpack.c.b16 %v597, %v596
  %v696 = vpack.c.b16 %v599, %v598
  %v697 = vpack.c.b16 %v601, %v600
  %v698 = vpack.c.b16 %v603, %v602
  %v699 = vpack.c.b16 %v605, %v604
  %v700 = vpack.c.b16 %v607, %v606
  %v701 = vpack.c.b16 %v609, %v608
  %v702 = vpack.c.b16 %v611, %v610
  %v703 = vpack.c.b16 %v613, %v612
  %v704 = vpack.c.b16 %v615, %v614
  %v705 = vpack.c.b16 %v617, %v616
  %v706 = vpack.c.b16 %v619, %v618
  %v707 = vpack.c.b16 %v621, %v620
  %v708 = vpack.c.b16 %v623, %v622
  %v709 = vpack.c.b16 %v625, %v624
  %v710 = vpack.c.b16 %v627, %v626
  %v711 = vpack.c.b16 %v629, %v628
  %v712 = vpack.c.b16 %v631, %v630
  %v713 = vpack.c.b16 %v633, %v632
  %v714 = vpack.c.b16 %v635, %v634
  %v715 = vpack.c.b16 %v637, %v636
  %v716 = vpack.c.b16 %v639, %v638
  %v717 = vpack.c.b16 %v641, %v640
  %v718 = vpack.c.b16 %v643, %v642
  %v719 = vpack.c.b16 %v645, %v644
  %v720 = vpack.c.b16 %v647, %v646
  %v721 = vpack.c.b16 %v649, %v648
  %v722 = vpack.c.b16 %v651, %v650
  %v723 = vpack.c.b16 %v653, %v652
  %v724 = vpack.c.b16 %v655, %v654
  %v725 = vpack.c.b16 %v657, %v656
  %v726 = vpack.c.b16 %v659, %v658
  %v727 = vpack.c.b16 %v661, %v660
  %v728 = vpack.c.b16 %v663, %v662
  %v729 = vpack.c.b16 %v665, %v664
  %v730 = vpack.c.b16 %v667, %v666
  %v731 = vpack.c.b16 %v669, %v668
  %v732 = vpack.c.b16 %v671, %v670
  %v733 = vpack.c.b16 %v673, %v672
  %v734 = vpack.c.b16 %v675, %v674
  %v735 = vpack.c.b16 %v677, %v676
  %v736 = vpack.c.b16 %v679, %v678
  %v737 = vpack.c.b16 %v681, %v680
  %v738 = vpack.c.b16 %v683, %v682
  %v739 = vpack.c.b16 %v685, %v684
  %vm794 = vcmask 785408
  %v796 = vsel %vm794, %v372, 0
  %v799 = vsel %vm794, %v379, 0
  %v802 = vsel %vm794, %v386, 0
  %v805 = vsel %vm794, %v393, 0
  %v808 = vsel %vm794, %v400, 0
  %v811 = vsel %vm794, %v407, 0
  %v814 = vsel %vm794, %v414, 0
  %v817 = vsel %vm794, %v421, 0
  %819 = vmatprep.subr.bf16.mxu0 0
  %820 = vmatpush1.bf16.msra.mxu0 %v686
  %821 = vmatprep.subr.bf16.mxu0 0
  %822 = vmatpush1.bf16.msra.mxu0 %v687
  %823 = vmatprep.subr.bf16.mxu0 0
  %824 = vmatpush1.bf16.msra.mxu0 %v688
  %825 = vmatprep.subr.bf16.mxu0 0
  %826 = vmatpush1.bf16.msra.mxu0 %v689
  %827 = vmatprep.subr.bf16.mxu0 0
  %828 = vmatpush1.bf16.msra.mxu0 %v690
  %829 = vmatprep.subr.bf16.mxu0 0
  %830 = vmatpush1.bf16.msra.mxu0 %v691
  %831 = vmatprep.subr.bf16.mxu0 0
  %832 = vmatpush1.bf16.msra.mxu0 %v692
  %833 = vmatprep.subr.bf16.mxu0 0
  %834 = vmatpush1.bf16.msra.mxu0 %v693
  %835 = vmatprep.subr.bf16.mxu0 0
  %836 = vmatpush1.bf16.msra.mxu0 %v694
  %837 = vmatprep.subr.bf16.mxu0 0
  %838 = vmatpush1.bf16.msra.mxu0 %v695
  %839 = vmatprep.subr.bf16.mxu0 0
  %840 = vmatpush1.bf16.msra.mxu0 %v696
  %841 = vmatprep.subr.bf16.mxu0 0
  %842 = vmatpush1.bf16.msra.mxu0 %v697
  %843 = vmatprep.subr.bf16.mxu0 0
  %844 = vmatpush1.bf16.msra.mxu0 %v698
  %845 = vmatprep.subr.bf16.mxu0 0
  %846 = vmatpush1.bf16.msra.mxu0 %v699
  %847 = vmatprep.subr.bf16.mxu0 0
  %848 = vmatpush1.bf16.msra.mxu0 %v700
  %849 = vmatprep.subr.bf16.mxu0 0
  %850 = vmatpush1.bf16.msra.mxu0 %v701
  %851 = vmatprep.mubr.bf16.mxu0 %v367
  %852 = vmatmul.mubr.bf16.gmra.mrb[0].mxu0 %v366
  %v853 = vpop.f32.mrb[0].mxu0
  %v854 = vadd.f32 0.0, %v853
  %v855 = vpop.f32.mrb[0].mxu0
  %v856 = vpop.f32.mrb[0].mxu0
  %v857 = vadd.f32 0.0, %v856
  %v858 = vpop.f32.mrb[0].mxu0
  %859 = vmatprep.mubr.bf16.mxu0 %v374
  %860 = vmatmul.mubr.bf16.gmra.mrb[0].mxu0 %v373
  %v861 = vpop.f32.mrb[0].mxu0
  %v862 = vadd.f32 0.0, %v861
  %v863 = vpop.f32.mrb[0].mxu0
  %v864 = vpop.f32.mrb[0].mxu0
  %v865 = vadd.f32 0.0, %v864
  %v866 = vpop.f32.mrb[0].mxu0
  %867 = vmatprep.mubr.bf16.mxu0 %v381
  %868 = vmatmul.mubr.bf16.gmra.mrb[0].mxu0 %v380
  %v869 = vpop.f32.mrb[0].mxu0
  %v870 = vadd.f32 0.0, %v869
  %v871 = vpop.f32.mrb[0].mxu0
  %v872 = vpop.f32.mrb[0].mxu0
  %v873 = vadd.f32 0.0, %v872
  %v874 = vpop.f32.mrb[0].mxu0
  %875 = vmatprep.mubr.bf16.mxu0 %v388
  %876 = vmatmul.mubr.bf16.gmra.mrb[0].mxu0 %v387
  %v877 = vpop.f32.mrb[0].mxu0
  %v878 = vadd.f32 0.0, %v877
  %v879 = vpop.f32.mrb[0].mxu0
  %v880 = vpop.f32.mrb[0].mxu0
  %v881 = vadd.f32 0.0, %v880
  %v882 = vpop.f32.mrb[0].mxu0
  %883 = vmatprep.mubr.bf16.mxu0 %v395
  %884 = vmatmul.mubr.bf16.gmra.mrb[0].mxu0 %v394
  %v885 = vpop.f32.mrb[0].mxu0
  %v886 = vadd.f32 0.0, %v885
  %v887 = vpop.f32.mrb[0].mxu0
  %v888 = vpop.f32.mrb[0].mxu0
  %v889 = vadd.f32 0.0, %v888
  %v890 = vpop.f32.mrb[0].mxu0
  %891 = vmatprep.mubr.bf16.mxu0 %v402
  %892 = vmatmul.mubr.bf16.gmra.mrb[0].mxu0 %v401
  %v893 = vpop.f32.mrb[0].mxu0
  %v894 = vadd.f32 0.0, %v893
  %v895 = vpop.f32.mrb[0].mxu0
  %v896 = vpop.f32.mrb[0].mxu0
  %v897 = vadd.f32 0.0, %v896
  %v898 = vpop.f32.mrb[0].mxu0
  %899 = vmatprep.mubr.bf16.mxu0 %v409
  %900 = vmatmul.mubr.bf16.gmra.mrb[0].mxu0 %v408
  %v901 = vpop.f32.mrb[0].mxu0
  %v902 = vadd.f32 0.0, %v901
  %v903 = vpop.f32.mrb[0].mxu0
  %v904 = vpop.f32.mrb[0].mxu0
  %v905 = vadd.f32 0.0, %v904
  %v906 = vpop.f32.mrb[0].mxu0
  %907 = vmatprep.mubr.bf16.mxu0 %v416
  %908 = vmatmul.mubr.bf16.gmra.mrb[0].mxu0 %v415
  %v909 = vpop.f32.mrb[0].mxu0
  %v910 = vadd.f32 0.0, %v909
  %v911 = vpop.f32.mrb[0].mxu0
  %v912 = vpop.f32.mrb[0].mxu0
  %v913 = vadd.f32 0.0, %v912
  %v914 = vpop.f32.mrb[0].mxu0
  %915 = vdwg.mxu0
  %916 = vmatprep.subr.bf16.mxu0 0
  %917 = vmatpush1.bf16.msra.mxu0 %v702
  %918 = vmatprep.subr.bf16.mxu0 0
  %919 = vmatpush1.bf16.msra.mxu0 %v703
  %920 = vmatprep.subr.bf16.mxu0 0
  %921 = vmatpush1.bf16.msra.mxu0 %v704
  %922 = vmatprep.subr.bf16.mxu0 0
  %923 = vmatpush1.bf16.msra.mxu0 %v705
  %924 = vmatprep.subr.bf16.mxu0 0
  %925 = vmatpush1.bf16.msra.mxu0 %v706
  %926 = vmatprep.subr.bf16.mxu0 0
  %927 = vmatpush1.bf16.msra.mxu0 %v707
  %928 = vmatprep.subr.bf16.mxu0 0
  %929 = vmatpush1.bf16.msra.mxu0 %v708
  %930 = vmatprep.subr.bf16.mxu0 0
  %931 = vmatpush1.bf16.msra.mxu0 %v709
  %932 = vmatprep.subr.bf16.mxu0 0
  %933 = vmatpush1.bf16.msra.mxu0 %v710
  %934 = vmatprep.subr.bf16.mxu0 0
  %935 = vmatpush1.bf16.msra.mxu0 %v711
  %936 = vmatprep.subr.bf16.mxu0 0
  %937 = vmatpush1.bf16.msra.mxu0 %v712
  %938 = vmatprep.subr.bf16.mxu0 0
  %939 = vmatpush1.bf16.msra.mxu0 %v713
  %940 = vmatprep.subr.bf16.mxu0 0
  %941 = vmatpush1.bf16.msra.mxu0 %v714
  %942 = vmatprep.subr.bf16.mxu0 0
  %943 = vmatpush1.bf16.msra.mxu0 %v715
  %944 = vmatprep.subr.bf16.mxu0 0
  %945 = vmatpush1.bf16.msra.mxu0 %v716
  %946 = vmatprep.subr.bf16.mxu0 0
  %947 = vmatpush1.bf16.msra.mxu0 %v717
  %948 = vmatprep.mubr.bf16.mxu0 %v369
  %949 = vmatmul.mubr.bf16.gmra.mrb[0].mxu0 %v368
  %v950 = vpop.f32.mrb[0].mxu0
  %v951 = vadd.f32 %v854, %v950
  %v952 = vpop.f32.mrb[0].mxu0
  %v953 = vpop.f32.mrb[0].mxu0
  %v954 = vadd.f32 %v857, %v953
  %v955 = vpop.f32.mrb[0].mxu0
  %956 = vmatprep.mubr.bf16.mxu0 %v376
  %957 = vmatmul.mubr.bf16.gmra.mrb[0].mxu0 %v375
  %v958 = vpop.f32.mrb[0].mxu0
  %v959 = vadd.f32 %v862, %v958
  %v960 = vpop.f32.mrb[0].mxu0
  %v961 = vpop.f32.mrb[0].mxu0
  %v962 = vadd.f32 %v865, %v961
  %v963 = vpop.f32.mrb[0].mxu0
  %964 = vmatprep.mubr.bf16.mxu0 %v383
  %965 = vmatmul.mubr.bf16.gmra.mrb[0].mxu0 %v382
  %v966 = vpop.f32.mrb[0].mxu0
  %v967 = vadd.f32 %v870, %v966
  %v968 = vpop.f32.mrb[0].mxu0
  %v969 = vpop.f32.mrb[0].mxu0
  %v970 = vadd.f32 %v873, %v969
  %v971 = vpop.f32.mrb[0].mxu0
  %972 = vmatprep.mubr.bf16.mxu0 %v390
  %973 = vmatmul.mubr.bf16.gmra.mrb[0].mxu0 %v389
  %v974 = vpop.f32.mrb[0].mxu0
  %v975 = vadd.f32 %v878, %v974
  %v976 = vpop.f32.mrb[0].mxu0
  %v977 = vpop.f32.mrb[0].mxu0
  %v978 = vadd.f32 %v881, %v977
  %v979 = vpop.f32.mrb[0].mxu0
  %980 = vmatprep.mubr.bf16.mxu0 %v397
  %981 = vmatmul.mubr.bf16.gmra.mrb[0].mxu0 %v396
  %v982 = vpop.f32.mrb[0].mxu0
  %v983 = vadd.f32 %v886, %v982
  %v984 = vpop.f32.mrb[0].mxu0
  %v985 = vpop.f32.mrb[0].mxu0
  %v986 = vadd.f32 %v889, %v985
  %v987 = vpop.f32.mrb[0].mxu0
  %988 = vmatprep.mubr.bf16.mxu0 %v404
  %989 = vmatmul.mubr.bf16.gmra.mrb[0].mxu0 %v403
  %v990 = vpop.f32.mrb[0].mxu0
  %v991 = vadd.f32 %v894, %v990
  %v992 = vpop.f32.mrb[0].mxu0
  %v993 = vpop.f32.mrb[0].mxu0
  %v994 = vadd.f32 %v897, %v993
  %v995 = vpop.f32.mrb[0].mxu0
  %996 = vmatprep.mubr.bf16.mxu0 %v411
  %997 = vmatmul.mubr.bf16.gmra.mrb[0].mxu0 %v410
  %v998 = vpop.f32.mrb[0].mxu0
  %v999 = vadd.f32 %v902, %v998
  %v1000 = vpop.f32.mrb[0].mxu0
  %v1001 = vpop.f32.mrb[0].mxu0
  %v1002 = vadd.f32 %v905, %v1001
  %v1003 = vpop.f32.mrb[0].mxu0
  %1004 = vmatprep.mubr.bf16.mxu0 %v418
  %1005 = vmatmul.mubr.bf16.gmra.mrb[0].mxu0 %v417
  %v1006 = vpop.f32.mrb[0].mxu0
  %v1007 = vadd.f32 %v910, %v1006
  %v1008 = vpop.f32.mrb[0].mxu0
  %v1009 = vpop.f32.mrb[0].mxu0
  %v1010 = vadd.f32 %v913, %v1009
  %v1011 = vpop.f32.mrb[0].mxu0
  %1012 = vdwg.mxu0
  %1013 = vmatprep.subr.bf16.mxu0 0
  %1014 = vmatpush1.bf16.msra.mxu0 %v718
  %1015 = vmatprep.subr.bf16.mxu0 0
  %1016 = vmatpush1.bf16.msra.mxu0 %v719
  %1017 = vmatprep.subr.bf16.mxu0 0
  %1018 = vmatpush1.bf16.msra.mxu0 %v720
  %1019 = vmatprep.subr.bf16.mxu0 0
  %1020 = vmatpush1.bf16.msra.mxu0 %v721
  %1021 = vmatprep.subr.bf16.mxu0 0
  %1022 = vmatpush1.bf16.msra.mxu0 %v722
  %1023 = vmatprep.subr.bf16.mxu0 0
  %1024 = vmatpush1.bf16.msra.mxu0 %v723
  %1025 = vmatprep.subr.bf16.mxu0 0
  %1026 = vmatpush1.bf16.msra.mxu0 %v724
  %1027 = vmatprep.subr.bf16.mxu0 0
  %1028 = vmatpush1.bf16.msra.mxu0 %v725
  %1029 = vmatprep.subr.bf16.mxu0 0
  %1030 = vmatpush1.bf16.msra.mxu0 %v726
  %1031 = vmatprep.subr.bf16.mxu0 0
  %1032 = vmatpush1.bf16.msra.mxu0 %v727
  %1033 = vmatprep.subr.bf16.mxu0 0
  %1034 = vmatpush1.bf16.msra.mxu0 %v728
  %1035 = vmatprep.subr.bf16.mxu0 0
  %1036 = vmatpush1.bf16.msra.mxu0 %v729
  %1037 = vmatprep.subr.bf16.mxu0 0
  %1038 = vmatpush1.bf16.msra.mxu0 %v730
  %1039 = vmatprep.subr.bf16.mxu0 0
  %1040 = vmatpush1.bf16.msra.mxu0 %v731
  %1041 = vmatprep.subr.bf16.mxu0 0
  %1042 = vmatpush1.bf16.msra.mxu0 %v732
  %1043 = vmatprep.subr.bf16.mxu0 0
  %1044 = vmatpush1.bf16.msra.mxu0 %v733
  %1045 = vmatprep.mubr.bf16.mxu0 %v371
  %1046 = vmatmul.mubr.bf16.gmra.mrb[0].mxu0 %v370
  %v1047 = vpop.f32.mrb[0].mxu0
  %v1048 = vadd.f32 %v951, %v1047
  %v1049 = vpop.f32.mrb[0].mxu0
  %v1050 = vpop.f32.mrb[0].mxu0
  %v1051 = vadd.f32 %v954, %v1050
  %v1052 = vpop.f32.mrb[0].mxu0
  %1053 = vmatprep.mubr.bf16.mxu0 %v378
  %1054 = vmatmul.mubr.bf16.gmra.mrb[0].mxu0 %v377
  %v1055 = vpop.f32.mrb[0].mxu0
  %v1056 = vadd.f32 %v959, %v1055
  %v1057 = vpop.f32.mrb[0].mxu0
  %v1058 = vpop.f32.mrb[0].mxu0
  %v1059 = vadd.f32 %v962, %v1058
  %v1060 = vpop.f32.mrb[0].mxu0
  %1061 = vmatprep.mubr.bf16.mxu0 %v385
  %1062 = vmatmul.mubr.bf16.gmra.mrb[0].mxu0 %v384
  %v1063 = vpop.f32.mrb[0].mxu0
  %v1064 = vadd.f32 %v967, %v1063
  %v1065 = vpop.f32.mrb[0].mxu0
  %v1066 = vpop.f32.mrb[0].mxu0
  %v1067 = vadd.f32 %v970, %v1066
  %v1068 = vpop.f32.mrb[0].mxu0
  %1069 = vmatprep.mubr.bf16.mxu0 %v392
  %1070 = vmatmul.mubr.bf16.gmra.mrb[0].mxu0 %v391
  %v1071 = vpop.f32.mrb[0].mxu0
  %v1072 = vadd.f32 %v975, %v1071
  %v1073 = vpop.f32.mrb[0].mxu0
  %v1074 = vpop.f32.mrb[0].mxu0
  %v1075 = vadd.f32 %v978, %v1074
  %v1076 = vpop.f32.mrb[0].mxu0
  %1077 = vmatprep.mubr.bf16.mxu0 %v399
  %1078 = vmatmul.mubr.bf16.gmra.mrb[0].mxu0 %v398
  %v1079 = vpop.f32.mrb[0].mxu0
  %v1080 = vadd.f32 %v983, %v1079
  %v1081 = vpop.f32.mrb[0].mxu0
  %v1082 = vpop.f32.mrb[0].mxu0
  %v1083 = vadd.f32 %v986, %v1082
  %v1084 = vpop.f32.mrb[0].mxu0
  %1085 = vmatprep.mubr.bf16.mxu0 %v406
  %1086 = vmatmul.mubr.bf16.gmra.mrb[0].mxu0 %v405
  %v1087 = vpop.f32.mrb[0].mxu0
  %v1088 = vadd.f32 %v991, %v1087
  %v1089 = vpop.f32.mrb[0].mxu0
  %v1090 = vpop.f32.mrb[0].mxu0
  %v1091 = vadd.f32 %v994, %v1090
  %v1092 = vpop.f32.mrb[0].mxu0
  %1093 = vmatprep.mubr.bf16.mxu0 %v413
  %1094 = vmatmul.mubr.bf16.gmra.mrb[0].mxu0 %v412
  %v1095 = vpop.f32.mrb[0].mxu0
  %v1096 = vadd.f32 %v999, %v1095
  %v1097 = vpop.f32.mrb[0].mxu0
  %v1098 = vpop.f32.mrb[0].mxu0
  %v1099 = vadd.f32 %v1002, %v1098
  %v1100 = vpop.f32.mrb[0].mxu0
  %1101 = vmatprep.mubr.bf16.mxu0 %v420
  %1102 = vmatmul.mubr.bf16.gmra.mrb[0].mxu0 %v419
  %v1103 = vpop.f32.mrb[0].mxu0
  %v1104 = vadd.f32 %v1007, %v1103
  %v1105 = vpop.f32.mrb[0].mxu0
  %v1106 = vpop.f32.mrb[0].mxu0
  %v1107 = vadd.f32 %v1010, %v1106
  %v1108 = vpop.f32.mrb[0].mxu0
  %1109 = vdwg.mxu0
  %1110 = vmatprep.subr.bf16.mxu0 0
  %1111 = vmatpush1.bf16.msra.mxu0 %v734
  %1112 = vmatprep.subr.bf16.mxu0 0
  %1113 = vmatpush1.bf16.msra.mxu0 %v735
  %1114 = vmatprep.subr.bf16.mxu0 0
  %1115 = vmatpush1.bf16.msra.mxu0 %v736
  %1116 = vmatprep.subr.bf16.mxu0 0
  %1117 = vmatpush1.bf16.msra.mxu0 %v737
  %1118 = vmatprep.subr.bf16.mxu0 0
  %1119 = vmatpush1.bf16.msra.mxu0 %v738
  %1120 = vmatprep.subr.bf16.mxu0 0
  %1121 = vmatpush1.bf16.msra.mxu0 %v739
  %1122 = vmatprep.subr.bf16.mxu0 0
  %1123 = vmatpush1.bf16.msra.mxu0 0
  %1124 = vmatprep.subr.bf16.mxu0 0
  %1125 = vmatpush1.bf16.msra.mxu0 0
  %1126 = vmatprep.subr.bf16.mxu0 0
  %1127 = vmatpush1.bf16.msra.mxu0 0
  %1128 = vmatprep.subr.bf16.mxu0 0
  %1129 = vmatpush1.bf16.msra.mxu0 0
  %1130 = vmatprep.subr.bf16.mxu0 0
  %1131 = vmatpush1.bf16.msra.mxu0 0
  %1132 = vmatprep.subr.bf16.mxu0 0
  %1133 = vmatpush1.bf16.msra.mxu0 0
  %1134 = vmatprep.subr.bf16.mxu0 0
  %1135 = vmatpush1.bf16.msra.mxu0 0
  %1136 = vmatprep.subr.bf16.mxu0 0
  %1137 = vmatpush1.bf16.msra.mxu0 0
  %1138 = vmatprep.subr.bf16.mxu0 0
  %1139 = vmatpush1.bf16.msra.mxu0 0
  %1140 = vmatprep.subr.bf16.mxu0 0
  %1141 = vmatpush1.bf16.msra.mxu0 0
  %1142 = vmatprep.mubr.bf16.mxu0 0
  %1143 = vmatmul.mubr.bf16.gmra.mrb[0].mxu0 %v796
  %v1144 = vpop.f32.mrb[0].mxu0
  %v1145 = vadd.f32 %v1048, %v1144
  %v1146 = vpop.f32.mrb[0].mxu0
  %v1147 = vpop.f32.mrb[0].mxu0
  %v1148 = vadd.f32 %v1051, %v1147
  %v1149 = vpop.f32.mrb[0].mxu0
  %1150 = vmatprep.mubr.bf16.mxu0 0
  %1151 = vmatmul.mubr.bf16.gmra.mrb[0].mxu0 %v799
  %v1152 = vpop.f32.mrb[0].mxu0
  %v1153 = vadd.f32 %v1056, %v1152
  %v1154 = vpop.f32.mrb[0].mxu0
  %v1155 = vpop.f32.mrb[0].mxu0
  %v1156 = vadd.f32 %v1059, %v1155
  %v1157 = vpop.f32.mrb[0].mxu0
  %1158 = vmatprep.mubr.bf16.mxu0 0
  %1159 = vmatmul.mubr.bf16.gmra.mrb[0].mxu0 %v802
  %v1160 = vpop.f32.mrb[0].mxu0
  %v1161 = vadd.f32 %v1064, %v1160
  %v1162 = vpop.f32.mrb[0].mxu0
  %v1163 = vpop.f32.mrb[0].mxu0
  %v1164 = vadd.f32 %v1067, %v1163
  %v1165 = vpop.f32.mrb[0].mxu0
  %1166 = vmatprep.mubr.bf16.mxu0 0
  %1167 = vmatmul.mubr.bf16.gmra.mrb[0].mxu0 %v805
  %v1168 = vpop.f32.mrb[0].mxu0
  %v1169 = vadd.f32 %v1072, %v1168
  %v1170 = vpop.f32.mrb[0].mxu0
  %v1171 = vpop.f32.mrb[0].mxu0
  %v1172 = vadd.f32 %v1075, %v1171
  %v1173 = vpop.f32.mrb[0].mxu0
  %1174 = vmatprep.mubr.bf16.mxu0 0
  %1175 = vmatmul.mubr.bf16.gmra.mrb[0].mxu0 %v808
  %v1176 = vpop.f32.mrb[0].mxu0
  %v1177 = vadd.f32 %v1080, %v1176
  %v1178 = vpop.f32.mrb[0].mxu0
  %v1179 = vpop.f32.mrb[0].mxu0
  %v1180 = vadd.f32 %v1083, %v1179
  %v1181 = vpop.f32.mrb[0].mxu0
  %1182 = vmatprep.mubr.bf16.mxu0 0
  %1183 = vmatmul.mubr.bf16.gmra.mrb[0].mxu0 %v811
  %v1184 = vpop.f32.mrb[0].mxu0
  %v1185 = vadd.f32 %v1088, %v1184
  %v1186 = vpop.f32.mrb[0].mxu0
  %v1187 = vpop.f32.mrb[0].mxu0
  %v1188 = vadd.f32 %v1091, %v1187
  %v1189 = vpop.f32.mrb[0].mxu0
  %1190 = vmatprep.mubr.bf16.mxu0 0
  %1191 = vmatmul.mubr.bf16.gmra.mrb[0].mxu0 %v814
  %v1192 = vpop.f32.mrb[0].mxu0
  %v1193 = vadd.f32 %v1096, %v1192
  %v1194 = vpop.f32.mrb[0].mxu0
  %v1195 = vpop.f32.mrb[0].mxu0
  %v1196 = vadd.f32 %v1099, %v1195
  %v1197 = vpop.f32.mrb[0].mxu0
  %1198 = vmatprep.mubr.bf16.mxu0 0
  %1199 = vmatmul.mubr.bf16.gmra.mrb[0].mxu0 %v817
  %v1200 = vpop.f32.mrb[0].mxu0
  %v1201 = vadd.f32 %v1104, %v1200
  %v1202 = vpop.f32.mrb[0].mxu0
  %v1203 = vpop.f32.mrb[0].mxu0
  %v1204 = vadd.f32 %v1107, %v1203
  %v1205 = vpop.f32.mrb[0].mxu0
  %1206 = vdwg.mxu0
  %v1207 = vld [vmem:[%s2] sm:$0x1]
  %v1209 = vlaneseq
  %v1210 = vshrl.u32 %v1209, 7
  %v1211 = vsub.s32 0, %v1210
  %v1212 = vrot.slane %v1207, %v1211
  %v1214 = vmul.f32 %v1145, %v1212
  %v1215 = vmul.f32 %v1148, %v1212
  %v1216 = vmul.f32 %v1153, %v1212
  %v1217 = vmul.f32 %v1156, %v1212
  %v1218 = vmul.f32 %v1161, %v1212
  %v1219 = vmul.f32 %v1164, %v1212
  %v1220 = vmul.f32 %v1169, %v1212
  %v1221 = vmul.f32 %v1172, %v1212
  %v1222 = vmul.f32 %v1177, %v1212
  %v1223 = vmul.f32 %v1180, %v1212
  %v1224 = vmul.f32 %v1185, %v1212
  %v1225 = vmul.f32 %v1188, %v1212
  %v1226 = vmul.f32 %v1193, %v1212
  %v1227 = vmul.f32 %v1196, %v1212
  %v1228 = vmul.f32 %v1201, %v1212
  %v1229 = vmul.f32 %v1204, %v1212
  %v1230 = vld [vmem:[%s3] sm:$0x1]
  %v1232 = vlaneseq
  %v1233 = vshrl.u32 %v1232, 7
  %v1234 = vsub.s32 0, %v1233
  %v1235 = vrot.slane %v1230, %v1234
  %v1237 = vadd.f32 %v1214, %v1235
  %v1238 = vadd.f32 %v1215, %v1235
  %v1239 = vadd.f32 %v1216, %v1235
  %v1240 = vadd.f32 %v1217, %v1235
  %v1241 = vadd.f32 %v1218, %v1235
  %v1242 = vadd.f32 %v1219, %v1235
  %v1243 = vadd.f32 %v1220, %v1235
  %v1244 = vadd.f32 %v1221, %v1235
  %v1245 = vadd.f32 %v1222, %v1235
  %v1246 = vadd.f32 %v1223, %v1235
  %v1247 = vadd.f32 %v1224, %v1235
  %v1248 = vadd.f32 %v1225, %v1235
  %v1249 = vadd.f32 %v1226, %v1235
  %v1250 = vadd.f32 %v1227, %v1235
  %v1251 = vadd.f32 %v1228, %v1235
  %v1252 = vadd.f32 %v1229, %v1235
  %v1253 = vmax.f32 %v1237, 0.0
  %v1254 = vmax.f32 %v1238, 0.0
  %v1255 = vmax.f32 %v1239, 0.0
  %v1256 = vmax.f32 %v1240, 0.0
  %v1257 = vmax.f32 %v1241, 0.0
  %v1258 = vmax.f32 %v1242, 0.0
  %v1259 = vmax.f32 %v1243, 0.0
  %v1260 = vmax.f32 %v1244, 0.0
  %v1261 = vmax.f32 %v1245, 0.0
  %v1262 = vmax.f32 %v1246, 0.0
  %v1263 = vmax.f32 %v1247, 0.0
  %v1264 = vmax.f32 %v1248, 0.0
  %v1265 = vmax.f32 %v1249, 0.0
  %v1266 = vmax.f32 %v1250, 0.0
  %v1267 = vmax.f32 %v1251, 0.0
  %v1268 = vmax.f32 %v1252, 0.0
  %1269 = vst.msk [vmem:[%s4] sm:$0xff] %vm794, %v1253
  %1270 = vst.msk [vmem:[%s4 + $0x8] sm:$0xff] %vm794, %v1254
  %1271 = vst.msk [vmem:[%s4 + $0x10] sm:$0xff] %vm794, %v1255
  %1272 = vst.msk [vmem:[%s4 + $0x18] sm:$0xff] %vm794, %v1256
  %1273 = vst.msk [vmem:[%s4 + $0x20] sm:$0xff] %vm794, %v1257
  %1274 = vst.msk [vmem:[%s4 + $0x28] sm:$0xff] %vm794, %v1258
  %1275 = vst.msk [vmem:[%s4 + $0x30] sm:$0xff] %vm794, %v1259
  %1276 = vst.msk [vmem:[%s4 + $0x38] sm:$0xff] %vm794, %v1260
  %1277 = vst.msk [vmem:[%s4 + $0x40] sm:$0xff] %vm794, %v1261
  %1278 = vst.msk [vmem:[%s4 + $0x48] sm:$0xff] %vm794, %v1262
  %1279 = vst.msk [vmem:[%s4 + $0x50] sm:$0xff] %vm794, %v1263
  %1280 = vst.msk [vmem:[%s4 + $0x58] sm:$0xff] %vm794, %v1264
  %1281 = vst.msk [vmem:[%s4 + $0x60] sm:$0xff] %vm794, %v1265
  %1282 = vst.msk [vmem:[%s4 + $0x68] sm:$0xff] %vm794, %v1266
  %1283 = vst.msk [vmem:[%s4 + $0x70] sm:$0xff] %vm794, %v1267
  %1284 = vst.msk [vmem:[%s4 + $0x78] sm:$0xff] %vm794, %v1268
  // Predicated region
  $region18: #{inception_b_forward.8} parent=0 // pred_check
    _
  $region19: #{inception_b_forward.8} parent=0 // pred_check_branch
    %1286 = sbr.rel (0) target = $region21
  $region20: #{inception_b_forward.8} parent=0 // pred_region
    _
  $region21: #{inception_b_forward.8} parent=0 // pred_fallthru
    _
  // Predicated region
  $region22: #{inception_b_forward.8} parent=0 // pred_check
    _
  $region23: #{inception_b_forward.8} parent=0 // pred_check_branch
    %1288 = sbr.rel (0) target = $region25
  $region24: #{inception_b_forward.8} parent=0 // pred_region
    _
  $region25: #{inception_b_forward.8} parent=0 // pred_fallthru
    _

// kernel: inception_b_forward.5
$region0: #{inception_b_forward.5}
  #allocation0 [shape = 'u32[]', space=smem, size = 0x4, offset = 0x4, fixed_abs, tag = 'smem constant byte address 0x4 - core index']
  #allocation1 [shape = 'u32[144,128]{1,0:T(1,128)}', space=vmem, size = 0x12000, scoped, tag = 'internal scratch']
  %s0 = inlined_call_operand.vmem [shape: bf16[128,288], index: 0, kind: input, shape index: {}]
  %s1 = inlined_call_operand.vmem [shape: bf16[288,384], index: 1, kind: input, shape index: {}]
  %s2 = inlined_call_operand.vmem [shape: f32[1,384], index: 2, kind: input, shape index: {}]
  %s3 = inlined_call_operand.vmem [shape: f32[1,384], index: 3, kind: input, shape index: {}]
  %s4 = inlined_call_operand.vmem [shape: f32[128,384], index: 4, kind: output, shape index: {}]
  %s5 = sld [smem:[#allocation0]]
  $region124: #{inception_b_forward.5} parent=0
    _
  %s7 = ssub.s32 1, %s5
  %s8 = scalar_select 0, %s7, %s5
  $region1: #{inception_b_forward.5} parent=0
    #allocation2 [shape = 'u8[147456]{0}', space=vmem, size = 0x24000, scoped, tag = 'input window, operand 1']
    #allocation3 [shape = 'u8[131072]{0}', space=vmem, size = 0x20000, scoped, tag = 'output window, operand 0']
    loop: start=0, step=1, limit=5
    $region2: #{inception_b_forward.5} parent=1 // loop_pre_header
      _
    $region3: #{inception_b_forward.5} parent=1 // loop_header
      %s10 = sphi 0, %s14
      %p11 = scmp.ge.s32.totalorder %s10, 5
      %s17 = sphi 0, %s29
      %s18 = sphi 0, %s25
      %s19 = sphi 0, %s17
      %s20 = sphi 0, %s18
      %s21 = sphi 0, %s19
      %s22 = sphi 0, %s20
      %s32 = sphi 0, %s34
      %s35 = sphi 0, %s32
      %s36 = sphi 0, %s35
      %s52 = sphi 0, %s36
      %s58 = sphi 0, %s60
      %s61 = sphi 0, %s58
      %s62 = sphi 0, %s61
      %s78 = sphi 0, %s62
      %s84 = sphi 0, %s86
      %s87 = sphi 0, %s84
      %s88 = sphi 0, %s87
      %s104 = sphi 0, %s88
      %s110 = sphi 0, %s112
      %s113 = sphi 0, %s110
      %s114 = sphi 0, %s113
      %s130 = sphi 0, %s114
      %s138 = sphi 0, %s140
      %s141 = sphi 0, %s138
      %s142 = sphi 0, %s141
      %s158 = sphi 0, %s142
    $region4: #{inception_b_forward.5} parent=1 // loop_header_branch
      %13 = sbr.rel (%p11) target = $region8
    $region5: #{inception_b_forward.5} parent=1 // loop_body
      %s15 = ssub.s32 %s10, 1
      %s16 = ssub.s32 %s10, 2
      %s23 = sadd.s32 1, %s18
      %p24 = scmp.ge.s32.totalorder %s23, 3
      %s25 = scalar_select %p24, 0, %s23
      %s26 = sadd.s32 1, %s17
      %s27 = scalar_select %p24, %s26, %s17
      %p28 = scmp.ge.s32.totalorder %s27, 1
      %s29 = scalar_select %p28, 0, %s27
      %s30 = ssub.s32 %s17, %s29
      %p31 = scmp.eq.s32.totalorder %s30, 0
      %s33 = sadd.s32 %s32, 1
      %s34 = scalar_select %p31, %s32, %s33
      %p37 = pneg %p31
      %p38 = scmp.eq.s32.totalorder %s10, 2
      %p39 = por %p37, %p38
      %p40 = scmp.ne.s32.totalorder %s32, %s35
      %p41 = scmp.eq.s32.totalorder %s10, 0
      %p42 = por %p40, %p41
      %p43 = scmp.ne.s32.totalorder %s32, %s35
      %p44 = scmp.eq.s32.totalorder %s15, 2
      %p45 = por %p43, %p44
      %p46 = scmp.ne.s32.totalorder %s35, %s36
      %p47 = scmp.eq.s32.totalorder %s15, 0
      %p48 = por %p46, %p47
      %p49 = scmp.ne.s32.totalorder %s35, %s36
      %p50 = scmp.eq.s32.totalorder %s16, 2
      %p51 = por %p49, %p50
      %p53 = scmp.ne.s32.totalorder %s36, %s52
      %p54 = scmp.eq.s32.totalorder %s16, 0
      %p55 = por %p53, %p54
      %s56 = ssub.s32 %s18, %s25
      %p57 = scmp.eq.s32.totalorder %s56, 0
      %s59 = sadd.s32 %s58, 1
      %s60 = scalar_select %p57, %s58, %s59
      %p63 = pneg %p57
      %p64 = scmp.eq.s32.totalorder %s10, 2
      %p65 = por %p63, %p64
      %p66 = scmp.ne.s32.totalorder %s58, %s61
      %p67 = scmp.eq.s32.totalorder %s10, 0
      %p68 = por %p66, %p67
      %p69 = scmp.ne.s32.totalorder %s58, %s61
      %p70 = scmp.eq.s32.totalorder %s15, 2
      %p71 = por %p69, %p70
      %p72 = scmp.ne.s32.totalorder %s61, %s62
      %p73 = scmp.eq.s32.totalorder %s15, 0
      %p74 = por %p72, %p73
      %p75 = scmp.ne.s32.totalorder %s61, %s62
      %p76 = scmp.eq.s32.totalorder %s16, 2
      %p77 = por %p75, %p76
      %p79 = scmp.ne.s32.totalorder %s62, %s78
      %p80 = scmp.eq.s32.totalorder %s16, 0
      %p81 = por %p79, %p80
      %s82 = ssub.s32 %s18, %s25
      %p83 = scmp.eq.s32.totalorder %s82, 0
      %s85 = sadd.s32 %s84, 1
      %s86 = scalar_select %p83, %s84, %s85
      %p89 = pneg %p83
      %p90 = scmp.eq.s32.totalorder %s10, 2
      %p91 = por %p89, %p90
      %p92 = scmp.ne.s32.totalorder %s84, %s87
      %p93 = scmp.eq.s32.totalorder %s10, 0
      %p94 = por %p92, %p93
      %p95 = scmp.ne.s32.totalorder %s84, %s87
      %p96 = scmp.eq.s32.totalorder %s15, 2
      %p97 = por %p95, %p96
      %p98 = scmp.ne.s32.totalorder %s87, %s88
      %p99 = scmp.eq.s32.totalorder %s15, 0
      %p100 = por %p98, %p99
      %p101 = scmp.ne.s32.totalorder %s87, %s88
      %p102 = scmp.eq.s32.totalorder %s16, 2
      %p103 = por %p101, %p102
      %p105 = scmp.ne.s32.totalorder %s88, %s104
      %p106 = scmp.eq.s32.totalorder %s16, 0
      %p107 = por %p105, %p106
      %s108 = ssub.s32 %s18, %s25
      %p109 = scmp.eq.s32.totalorder %s108, 0
      %s111 = sadd.s32 %s110, 1
      %s112 = scalar_select %p109, %s110, %s111
      %p115 = pneg %p109
      %p116 = scmp.eq.s32.totalorder %s10, 2
      %p117 = por %p115, %p116
      %p118 = scmp.ne.s32.totalorder %s110, %s113
      %p119 = scmp.eq.s32.totalorder %s10, 0
      %p120 = por %p118, %p119
      %p121 = scmp.ne.s32.totalorder %s110, %s113
      %p122 = scmp.eq.s32.totalorder %s15, 2
      %p123 = por %p121, %p122
      %p124 = scmp.ne.s32.totalorder %s113, %s114
      %p125 = scmp.eq.s32.totalorder %s15, 0
      %p126 = por %p124, %p125
      %p127 = scmp.ne.s32.totalorder %s113, %s114
      %p128 = scmp.eq.s32.totalorder %s16, 2
      %p129 = por %p127, %p128
      %p131 = scmp.ne.s32.totalorder %s114, %s130
      %p132 = scmp.eq.s32.totalorder %s16, 0
      %p133 = por %p131, %p132
      %s134 = ssub.s32 %s17, %s29
      %s135 = ssub.s32 %s18, %s25
      %s136 = sor.u32 %s134, %s135
      %p137 = scmp.eq.s32.totalorder %s136, 0
      %s139 = sadd.s32 %s138, 1
      %s140 = scalar_select %p137, %s138, %s139
      %p143 = pneg %p137
      %p144 = scmp.eq.s32.totalorder %s10, 2
      %p145 = por %p143, %p144
      %p146 = scmp.ne.s32.totalorder %s138, %s141
      %p147 = scmp.eq.s32.totalorder %s10, 0
      %p148 = por %p146, %p147
      %p149 = scmp.ne.s32.totalorder %s138, %s141
      %p150 = scmp.eq.s32.totalorder %s15, 2
      %p151 = por %p149, %p150
      %p152 = scmp.ne.s32.totalorder %s141, %s142
      %p153 = scmp.eq.s32.totalorder %s15, 0
      %p154 = por %p152, %p153
      %p155 = scmp.ne.s32.totalorder %s141, %s142
      %p156 = scmp.eq.s32.totalorder %s16, 2
      %p157 = por %p155, %p156
      %p159 = scmp.ne.s32.totalorder %s142, %s158
      %p160 = scmp.eq.s32.totalorder %s16, 0
      %p161 = por %p159, %p160
      %p162 = scmp.le.s32.totalorder 1, %s10
      %p163 = scmp.lt.s32.totalorder %s10, 4
      %p164 = pnand %p162, %p163
      %p165 = pneg %p164
      // Predicated region
      $region9: #{inception_b_forward.5} parent=5 // pred_check
        _
      $region10: #{inception_b_forward.5} parent=5 // pred_check_branch
        %167 = sbr.rel (%p164) target = $region12
      $region11: #{inception_b_forward.5} parent=5 // pred_region
        %s168 = ssub.s32 %s10, 1
        // Predicated region
        $region13: #{inception_b_forward.5} parent=11 // pred_check
          %p169 = pneg %p48
        $region14: #{inception_b_forward.5} parent=11 // pred_check_branch
          %171 = sbr.rel (%p169) target = $region16
        $region15: #{inception_b_forward.5} parent=11 // pred_region
          %s172 = smul.u32 16, %s19
          %p173 = scmp.lt.s32.totalorder %s172, 15
          %s174 = scalar_select %p173, %s172, 15
          %s175 = smul.addr %s174, 3
          %s176 = smul.addr %s175, 4
          %s177 = scalar_lea.vmem %s0, %s176
          %s178 = smul.u32 16, %s19
        $region16: #{inception_b_forward.5} parent=11 // pred_fallthru
          _
      $region12: #{inception_b_forward.5} parent=5 // pred_fallthru
        _
      %p179 = scmp.lt.s32.totalorder %s10, 3
      // Predicated region
      $region17: #{inception_b_forward.5} parent=5 // pred_check
        %p180 = pneg %p179
      $region18: #{inception_b_forward.5} parent=5 // pred_check_branch
        %182 = sbr.rel (%p180) target = $region20
      $region19: #{inception_b_forward.5} parent=5 // pred_region
        // Predicated region
        $region21: #{inception_b_forward.5} parent=19 // pred_check
          %p183 = pneg %p68
        $region22: #{inception_b_forward.5} parent=19 // pred_check_branch
          %185 = sbr.rel (%p183) target = $region24
        $region23: #{inception_b_forward.5} parent=19 // pred_region
          %s186 = sand.u32 %s58, 1
          %s187 = sand.u32 %s58, 1
          %s188 = smul.addr %s187, 144
          %s189 = scalar_lea.vmem [#allocation2], %s188
          %s190 = smul.addr %s18, 4
          %s191 = scalar_lea.vmem %s1, %s190
          // Predicated region
          $region25: #{inception_b_forward.5} parent=23 // pred_check
            _
          $region26: #{inception_b_forward.5} parent=23 // pred_check_branch
            %193 = sbr.rel (0) target = $region28
          $region27: #{inception_b_forward.5} parent=23 // pred_region
            // Predicated region
            $region29: #{inception_b_forward.5} parent=27 // pred_check
              _
            $region30: #{inception_b_forward.5} parent=27 // pred_check_branch
              %195 = sbr.rel target = $region32
            $region31: #{inception_b_forward.5} parent=27 // pred_region
              // Predicated region
              $region44: #{inception_b_forward.5} parent=31 // pred_check
                _
              $region45: #{inception_b_forward.5} parent=31 // pred_check_branch
                %280 = sbr.rel (0) target = $region47
              $region46: #{inception_b_forward.5} parent=31 // pred_region
                loop: start=0, step=1, limit=1
                $region48: #{inception_b_forward.5} parent=46 // loop_pre_header
                  _
                $region49: #{inception_b_forward.5} parent=46 // loop_header
                  %s282 = sphi 0, %s286
                  %p283 = scmp.ge.s32.totalorder %s282, 1
                  %s287 = sphi %s191, %s191
                  %s288 = sphi %s189, %s189
                $region50: #{inception_b_forward.5} parent=46 // loop_header_branch
                  %285 = sbr.rel (%p283) target = $region54
                $region51: #{inception_b_forward.5} parent=46 // loop_body
                  _
                $region52: #{inception_b_forward.5} parent=46 // loop_footer
                  %s286 = sadd.s32 1, %s282
                $region53: #{inception_b_forward.5} parent=46 // loop_footer_branch
                  %281 = sbr.rel target = $region49
                $region54: #{inception_b_forward.5} parent=46 // loop_exit
                  _
                loop: start=0, step=1, limit=1
                $region55: #{inception_b_forward.5} parent=46 // loop_pre_header
                  _
                $region56: #{inception_b_forward.5} parent=46 // loop_header
                  %s291 = sphi 0, %s295
                  %p292 = scmp.ge.s32.totalorder %s291, 1
                  %s296 = sphi %s191, %s191
                  %s297 = sphi %s189, %s189
                $region57: #{inception_b_forward.5} parent=46 // loop_header_branch
                  %294 = sbr.rel (%p292) target = $region61
                $region58: #{inception_b_forward.5} parent=46 // loop_body
                  %v298 = vld [vmem:[%s296] sm:$0xf]
                  %299 = vst [vmem:[%s297] sm:$0xf] %v298
                  %v300 = vld [vmem:[%s296 + $0xc] sm:$0xf]
                  %301 = vst [vmem:[%s297 + $0x4] sm:$0xf] %v300
                  %v302 = vld [vmem:[%s296 + $0x18] sm:$0xf]
                  %303 = vst [vmem:[%s297 + $0x8] sm:$0xf] %v302
                  %v304 = vld [vmem:[%s296 + $0x24] sm:$0xf]
                  %305 = vst [vmem:[%s297 + $0xc] sm:$0xf] %v304
                  %v306 = vld [vmem:[%s296 + $0x30] sm:$0xf]
                  %307 = vst [vmem:[%s297 + $0x10] sm:$0xf] %v306
                  %v308 = vld [vmem:[%s296 + $0x3c] sm:$0xf]
                  %309 = vst [vmem:[%s297 + $0x14] sm:$0xf] %v308
                  %v310 = vld [vmem:[%s296 + $0x48] sm:$0xf]
                  %311 = vst [vmem:[%s297 + $0x18] sm:$0xf] %v310
                  %v312 = vld [vmem:[%s296 + $0x54] sm:$0xf]
                  %313 = vst [vmem:[%s297 + $0x1c] sm:$0xf] %v312
                  %v314 = vld [vmem:[%s296 + $0x60] sm:$0xf]
                  %315 = vst [vmem:[%s297 + $0x20] sm:$0xf] %v314
                  %v316 = vld [vmem:[%s296 + $0x6c] sm:$0xf]
                  %317 = vst [vmem:[%s297 + $0x24] sm:$0xf] %v316
                  %v318 = vld [vmem:[%s296 + $0x78] sm:$0xf]
                  %319 = vst [vmem:[%s297 + $0x28] sm:$0xf] %v318
                  %v320 = vld [vmem:[%s296 + $0x84] sm:$0xf]
                  %321 = vst [vmem:[%s297 + $0x2c] sm:$0xf] %v320
                  %v322 = vld [vmem:[%s296 + $0x90] sm:$0xf]
                  %323 = vst [vmem:[%s297 + $0x30] sm:$0xf] %v322
                  %v324 = vld [vmem:[%s296 + $0x9c] sm:$0xf]
                  %325 = vst [vmem:[%s297 + $0x34] sm:$0xf] %v324
                  %v326 = vld [vmem:[%s296 + $0xa8] sm:$0xf]
                  %327 = vst [vmem:[%s297 + $0x38] sm:$0xf] %v326
                  %v328 = vld [vmem:[%s296 + $0xb4] sm:$0xf]
                  %329 = vst [vmem:[%s297 + $0x3c] sm:$0xf] %v328
                  %v330 = vld [vmem:[%s296 + $0xc0] sm:$0xf]
                  %331 = vst [vmem:[%s297 + $0x40] sm:$0xf] %v330
                  %v332 = vld [vmem:[%s296 + $0xcc] sm:$0xf]
                  %333 = vst [vmem:[%s297 + $0x44] sm:$0xf] %v332
                  %v334 = vld [vmem:[%s296 + $0xd8] sm:$0xf]
                  %335 = vst [vmem:[%s297 + $0x48] sm:$0xf] %v334
                  %v336 = vld [vmem:[%s296 + $0xe4] sm:$0xf]
                  %337 = vst [vmem:[%s297 + $0x4c] sm:$0xf] %v336
                  %v338 = vld [vmem:[%s296 + $0xf0] sm:$0xf]
                  %339 = vst [vmem:[%s297 + $0x50] sm:$0xf] %v338
                  %v340 = vld [vmem:[%s296 + $0xfc] sm:$0xf]
                  %341 = vst [vmem:[%s297 + $0x54] sm:$0xf] %v340
                  %v342 = vld [vmem:[%s296 + $0x108] sm:$0xf]
                  %343 = vst [vmem:[%s297 + $0x58] sm:$0xf] %v342
                  %v344 = vld [vmem:[%s296 + $0x114] sm:$0xf]
                  %345 = vst [vmem:[%s297 + $0x5c] sm:$0xf] %v344
                  %v346 = vld [vmem:[%s296 + $0x120] sm:$0xf]
                  %347 = vst [vmem:[%s297 + $0x60] sm:$0xf] %v346
                  %v348 = vld [vmem:[%s296 + $0x12c] sm:$0xf]
                  %349 = vst [vmem:[%s297 + $0x64] sm:$0xf] %v348
                  %v350 = vld [vmem:[%s296 + $0x138] sm:$0xf]
                  %351 = vst [vmem:[%s297 + $0x68] sm:$0xf] %v350
                  %v352 = vld [vmem:[%s296 + $0x144] sm:$0xf]
                  %353 = vst [vmem:[%s297 + $0x6c] sm:$0xf] %v352
                  %v354 = vld [vmem:[%s296 + $0x150] sm:$0xf]
                  %355 = vst [vmem:[%s297 + $0x70] sm:$0xf] %v354
                  %v356 = vld [vmem:[%s296 + $0x15c] sm:$0xf]
                  %357 = vst [vmem:[%s297 + $0x74] sm:$0xf] %v356
                  %v358 = vld [vmem:[%s296 + $0x168] sm:$0xf]
                  %359 = vst [vmem:[%s297 + $0x78] sm:$0xf] %v358
                  %v360 = vld [vmem:[%s296 + $0x174] sm:$0xf]
                  %361 = vst [vmem:[%s297 + $0x7c] sm:$0xf] %v360
                  %v362 = vld [vmem:[%s296 + $0x180] sm:$0xf]
                  %363 = vst [vmem:[%s297 + $0x80] sm:$0xf] %v362
                  %v364 = vld [vmem:[%s296 + $0x18c] sm:$0xf]
                  %365 = vst [vmem:[%s297 + $0x84] sm:$0xf] %v364
                  %v366 = vld [vmem:[%s296 + $0x198] sm:$0xf]
                  %367 = vst [vmem:[%s297 + $0x88] sm:$0xf] %v366
                  %v368 = vld [vmem:[%s296 + $0x1a4] sm:$0xf]
                  %369 = vst [vmem:[%s297 + $0x8c] sm:$0xf] %v368
                $region59: #{inception_b_forward.5} parent=46 // loop_footer
                  %s295 = sadd.s32 1, %s291
                $region60: #{inception_b_forward.5} parent=46 // loop_footer_branch
                  %290 = sbr.rel target = $region56
                $region61: #{inception_b_forward.5} parent=46 // loop_exit
                  _
              $region47: #{inception_b_forward.5} parent=31 // pred_fallthru
                _
            $region32: #{inception_b_forward.5} parent=27 // pred_fallthru
              _
            // Predicated region
            $region33: #{inception_b_forward.5} parent=27 // pred_check
              _
            $region34: #{inception_b_forward.5} parent=27 // pred_check_branch
              %197 = sbr.rel (0) target = $region36
            $region35: #{inception_b_forward.5} parent=27 // pred_region
              loop: start=0, step=1, limit=1
              $region37: #{inception_b_forward.5} parent=35 // loop_pre_header
                _
              $region38: #{inception_b_forward.5} parent=35 // loop_header
                %s200 = sphi 0, %s204
                %p201 = scmp.ge.s32.totalorder %s200, 1
                %s205 = sphi %s191, %s191
                %s206 = sphi %s189, %s189
              $region39: #{inception_b_forward.5} parent=35 // loop_header_branch
                %203 = sbr.rel (%p201) target = $region43
              $region40: #{inception_b_forward.5} parent=35 // loop_body
                %v207 = vld [vmem:[%s205] sm:$0xf]
                %208 = vst [vmem:[%s206] sm:$0xf] %v207
                %v209 = vld [vmem:[%s205 + $0xc] sm:$0xf]
                %210 = vst [vmem:[%s206 + $0x4] sm:$0xf] %v209
                %v211 = vld [vmem:[%s205 + $0x18] sm:$0xf]
                %212 = vst [vmem:[%s206 + $0x8] sm:$0xf] %v211
                %v213 = vld [vmem:[%s205 + $0x24] sm:$0xf]
                %214 = vst [vmem:[%s206 + $0xc] sm:$0xf] %v213
                %v215 = vld [vmem:[%s205 + $0x30] sm:$0xf]
                %216 = vst [vmem:[%s206 + $0x10] sm:$0xf] %v215
                %v217 = vld [vmem:[%s205 + $0x3c] sm:$0xf]
                %218 = vst [vmem:[%s206 + $0x14] sm:$0xf] %v217
                %v219 = vld [vmem:[%s205 + $0x48] sm:$0xf]
                %220 = vst [vmem:[%s206 + $0x18] sm:$0xf] %v219
                %v221 = vld [vmem:[%s205 + $0x54] sm:$0xf]
                %222 = vst [vmem:[%s206 + $0x1c] sm:$0xf] %v221
                %v223 = vld [vmem:[%s205 + $0x60] sm:$0xf]
                %224 = vst [vmem:[%s206 + $0x20] sm:$0xf] %v223
                %v225 = vld [vmem:[%s205 + $0x6c] sm:$0xf]
                %226 = vst [vmem:[%s206 + $0x24] sm:$0xf] %v225
                %v227 = vld [vmem:[%s205 + $0x78] sm:$0xf]
                %228 = vst [vmem:[%s206 + $0x28] sm:$0xf] %v227
                %v229 = vld [vmem:[%s205 + $0x84] sm:$0xf]
                %230 = vst [vmem:[%s206 + $0x2c] sm:$0xf] %v229
                %v231 = vld [vmem:[%s205 + $0x90] sm:$0xf]
                %232 = vst [vmem:[%s206 + $0x30] sm:$0xf] %v231
                %v233 = vld [vmem:[%s205 + $0x9c] sm:$0xf]
                %234 = vst [vmem:[%s206 + $0x34] sm:$0xf] %v233
                %v235 = vld [vmem:[%s205 + $0xa8] sm:$0xf]
                %236 = vst [vmem:[%s206 + $0x38] sm:$0xf] %v235
                %v237 = vld [vmem:[%s205 + $0xb4] sm:$0xf]
                %238 = vst [vmem:[%s206 + $0x3c] sm:$0xf] %v237
                %v239 = vld [vmem:[%s205 + $0xc0] sm:$0xf]
                %240 = vst [vmem:[%s206 + $0x40] sm:$0xf] %v239
                %v241 = vld [vmem:[%s205 + $0xcc] sm:$0xf]
                %242 = vst [vmem:[%s206 + $0x44] sm:$0xf] %v241
                %v243 = vld [vmem:[%s205 + $0xd8] sm:$0xf]
                %244 = vst [vmem:[%s206 + $0x48] sm:$0xf] %v243
                %v245 = vld [vmem:[%s205 + $0xe4] sm:$0xf]
                %246 = vst [vmem:[%s206 + $0x4c] sm:$0xf] %v245
                %v247 = vld [vmem:[%s205 + $0xf0] sm:$0xf]
                %248 = vst [vmem:[%s206 + $0x50] sm:$0xf] %v247
                %v249 = vld [vmem:[%s205 + $0xfc] sm:$0xf]
                %250 = vst [vmem:[%s206 + $0x54] sm:$0xf] %v249
                %v251 = vld [vmem:[%s205 + $0x108] sm:$0xf]
                %252 = vst [vmem:[%s206 + $0x58] sm:$0xf] %v251
                %v253 = vld [vmem:[%s205 + $0x114] sm:$0xf]
                %254 = vst [vmem:[%s206 + $0x5c] sm:$0xf] %v253
                %v255 = vld [vmem:[%s205 + $0x120] sm:$0xf]
                %256 = vst [vmem:[%s206 + $0x60] sm:$0xf] %v255
                %v257 = vld [vmem:[%s205 + $0x12c] sm:$0xf]
                %258 = vst [vmem:[%s206 + $0x64] sm:$0xf] %v257
                %v259 = vld [vmem:[%s205 + $0x138] sm:$0xf]
                %260 = vst [vmem:[%s206 + $0x68] sm:$0xf] %v259
                %v261 = vld [vmem:[%s205 + $0x144] sm:$0xf]
                %262 = vst [vmem:[%s206 + $0x6c] sm:$0xf] %v261
                %v263 = vld [vmem:[%s205 + $0x150] sm:$0xf]
                %264 = vst [vmem:[%s206 + $0x70] sm:$0xf] %v263
                %v265 = vld [vmem:[%s205 + $0x15c] sm:$0xf]
                %266 = vst [vmem:[%s206 + $0x74] sm:$0xf] %v265
                %v267 = vld [vmem:[%s205 + $0x168] sm:$0xf]
                %268 = vst [vmem:[%s206 + $0x78] sm:$0xf] %v267
                %v269 = vld [vmem:[%s205 + $0x174] sm:$0xf]
                %270 = vst [vmem:[%s206 + $0x7c] sm:$0xf] %v269
                %v271 = vld [vmem:[%s205 + $0x180] sm:$0xf]
                %272 = vst [vmem:[%s206 + $0x80] sm:$0xf] %v271
                %v273 = vld [vmem:[%s205 + $0x18c] sm:$0xf]
                %274 = vst [vmem:[%s206 + $0x84] sm:$0xf] %v273
                %v275 = vld [vmem:[%s205 + $0x198] sm:$0xf]
                %276 = vst [vmem:[%s206 + $0x88] sm:$0xf] %v275
                %v277 = vld [vmem:[%s205 + $0x1a4] sm:$0xf]
                %278 = vst [vmem:[%s206 + $0x8c] sm:$0xf] %v277
              $region41: #{inception_b_forward.5} parent=35 // loop_footer
                %s204 = sadd.s32 1, %s200
              $region42: #{inception_b_forward.5} parent=35 // loop_footer_branch
                %199 = sbr.rel target = $region38
              $region43: #{inception_b_forward.5} parent=35 // loop_exit
                _
            $region36: #{inception_b_forward.5} parent=27 // pred_fallthru
              _
          $region28: #{inception_b_forward.5} parent=23 // pred_fallthru
            _
          %370 = vnop
        $region24: #{inception_b_forward.5} parent=19 // pred_fallthru
          _
        // Predicated region
        $region62: #{inception_b_forward.5} parent=19 // pred_check
          %p371 = pneg %p94
        $region63: #{inception_b_forward.5} parent=19 // pred_check_branch
          %373 = sbr.rel (%p371) target = $region65
        $region64: #{inception_b_forward.5} parent=19 // pred_region
          %p374 = scmp.lt.s32.totalorder %s18, 2
          %s375 = scalar_select %p374, %s18, 2
          %s376 = scalar_lea.vmem %s2, %s375
        $region65: #{inception_b_forward.5} parent=19 // pred_fallthru
          _
        // Predicated region
        $region66: #{inception_b_forward.5} parent=19 // pred_check
          %p377 = pneg %p120
        $region67: #{inception_b_forward.5} parent=19 // pred_check_branch
          %379 = sbr.rel (%p377) target = $region69
        $region68: #{inception_b_forward.5} parent=19 // pred_region
          %p380 = scmp.lt.s32.totalorder %s18, 2
          %s381 = scalar_select %p380, %s18, 2
          %s382 = scalar_lea.vmem %s3, %s381
        $region69: #{inception_b_forward.5} parent=19 // pred_fallthru
          _
      $region20: #{inception_b_forward.5} parent=5 // pred_fallthru
        _
      %p383 = scmp.le.s32.totalorder 1, %s10
      %p384 = scmp.lt.s32.totalorder %s10, 4
      %p385 = pnand %p383, %p384
      %p386 = pneg %p385
      // Predicated region
      $region70: #{inception_b_forward.5} parent=5 // pred_check
        _
      $region71: #{inception_b_forward.5} parent=5 // pred_check_branch
        %388 = sbr.rel (%p385) target = $region73
      $region72: #{inception_b_forward.5} parent=5 // pred_region
        %s389 = ssub.s32 %s10, 1
        %s390 = sand.u32 %s61, 1
        %s391 = sand.u32 %s61, 1
        %s392 = smul.addr %s391, 144
        %s393 = scalar_lea.vmem [#allocation2], %s392
        // Predicated region
        $region74: #{inception_b_forward.5} parent=72 // pred_check
          %p394 = pneg %p74
        $region75: #{inception_b_forward.5} parent=72 // pred_check_branch
          %396 = sbr.rel (%p394) target = $region77
        $region76: #{inception_b_forward.5} parent=72 // pred_region
          _
        $region77: #{inception_b_forward.5} parent=72 // pred_fallthru
          _
        %s397 = smul.u32 16, %s19
        %p398 = scmp.lt.s32.totalorder %s397, 15
        %s399 = scalar_select %p398, %s397, 15
        %s400 = smul.addr %s399, 3
        %s401 = smul.addr %s400, 4
        %s402 = scalar_lea.vmem %s0, %s401
        %p403 = pneg %p48
        %p404 = pneg %p45
        %s405 = sand.u32 %s61, 1
        %s406 = sand.u32 %s61, 1
        %s407 = smul.addr %s406, 144
        %s408 = scalar_lea.vmem [#allocation2], %s407
        %p409 = pneg %p74
        %p410 = pneg %p71
        %p411 = scmp.lt.s32.totalorder %s20, 2
        %s412 = scalar_select %p411, %s20, 2
        %s413 = scalar_lea.vmem %s2, %s412
        %p414 = pneg %p100
        %p415 = pneg %p97
        %p416 = scmp.lt.s32.totalorder %s20, 2
        %s417 = scalar_select %p416, %s20, 2
        %s418 = scalar_lea.vmem %s3, %s417
        %p419 = pneg %p126
        %p420 = pneg %p123
        %p421 = pneg %p154
        %p422 = pneg %p151
        %s423 = sand.u32 %s141, 1
        %s424 = sand.u32 %s141, 1
        %s425 = smul.addr %s424, 128
        %s426 = scalar_lea.vmem [#allocation3], %s425
        %s427 = smul.u32 16, %s19
        %p428 = scmp.lt.s32.totalorder %s427, 15
        %s429 = scalar_select %p428, %s427, 15
        %s430 = smul.addr %s429, 3
        %s431 = smul.addr %s430, 4
        %s432 = scalar_lea.vmem %s0, %s431
        %s433 = smul.u32 16, %s19
        %p434 = scmp.lt.s32.totalorder %s20, 2
        %s435 = scalar_select %p434, %s20, 2
        %s436 = scalar_lea.vmem %s2, %s435
        %p437 = scmp.lt.s32.totalorder %s20, 2
        %s438 = scalar_select %p437, %s20, 2
        %s439 = scalar_lea.vmem %s3, %s438
        %s440 = smul.u32 16, %s19
        %v442 = vld [vmem:[%s432] sm:$0xff]
        %v443 = vld [vmem:[%s432 + $0x8] sm:$0xf]
        %v444 = vld [vmem:[%s432 + $0xc] sm:$0xff]
        %v445 = vld [vmem:[%s432 + $0x14] sm:$0xf]
        %v446 = vld [vmem:[%s432 + $0x18] sm:$0xff]
        %v447 = vld [vmem:[%s432 + $0x20] sm:$0xf]
        %v448 = vld [vmem:[%s432 + $0x24] sm:$0xff]
        %v449 = vld [vmem:[%s432 + $0x2c] sm:$0xf]
        %v450 = vld [vmem:[%s432 + $0x30] sm:$0xff]
        %v451 = vld [vmem:[%s432 + $0x38] sm:$0xf]
        %v452 = vld [vmem:[%s432 + $0x3c] sm:$0xff]
        %v453 = vld [vmem:[%s432 + $0x44] sm:$0xf]
        %v454 = vld [vmem:[%s432 + $0x48] sm:$0xff]
        %v455 = vld [vmem:[%s432 + $0x50] sm:$0xf]
        %v456 = vld [vmem:[%s432 + $0x54] sm:$0xff]
        %v457 = vld [vmem:[%s432 + $0x5c] sm:$0xf]
        %v458 = vld [vmem:[%s432 + $0x60] sm:$0xff]
        %v459 = vld [vmem:[%s432 + $0x68] sm:$0xf]
        %v460 = vld [vmem:[%s432 + $0x6c] sm:$0xff]
        %v461 = vld [vmem:[%s432 + $0x74] sm:$0xf]
        %v462 = vld [vmem:[%s432 + $0x78] sm:$0xff]
        %v463 = vld [vmem:[%s432 + $0x80] sm:$0xf]
        %v464 = vld [vmem:[%s432 + $0x84] sm:$0xff]
        %v465 = vld [vmem:[%s432 + $0x8c] sm:$0xf]
        %v466 = vld [vmem:[%s432 + $0x90] sm:$0xff]
        %v467 = vld [vmem:[%s432 + $0x98] sm:$0xf]
        %v468 = vld [vmem:[%s432 + $0x9c] sm:$0xff]
        %v469 = vld [vmem:[%s432 + $0xa4] sm:$0xf]
        %v470 = vld [vmem:[%s432 + $0xa8] sm:$0xff]
        %v471 = vld [vmem:[%s432 + $0xb0] sm:$0xf]
        %v472 = vld [vmem:[%s432 + $0xb4] sm:$0xff]
        %v473 = vld [vmem:[%s432 + $0xbc] sm:$0xf]
        %v474 = vld [vmem:[%s393] sm:$0xf]
        %v475 = vld [vmem:[%s393 + $0x4] sm:$0xf]
        %v476 = vld [vmem:[%s393 + $0x8] sm:$0xf]
        %v477 = vld [vmem:[%s393 + $0xc] sm:$0xf]
        %v478 = vld [vmem:[%s393 + $0x10] sm:$0xf]
        %v479 = vld [vmem:[%s393 + $0x14] sm:$0xf]
        %v480 = vld [vmem:[%s393 + $0x18] sm:$0xf]
        %v481 = vld [vmem:[%s393 + $0x1c] sm:$0xf]
        %v482 = vld [vmem:[%s393 + $0x20] sm:$0xf]
        %v483 = vld [vmem:[%s393 + $0x24] sm:$0xf]
        %v484 = vld [vmem:[%s393 + $0x28] sm:$0xf]
        %v485 = vld [vmem:[%s393 + $0x2c] sm:$0xf]
        %v486 = vld [vmem:[%s393 + $0x30] sm:$0xf]
        %v487 = vld [vmem:[%s393 + $0x34] sm:$0xf]
        %v488 = vld [vmem:[%s393 + $0x38] sm:$0xf]
        %v489 = vld [vmem:[%s393 + $0x3c] sm:$0xf]
        %v490 = vld [vmem:[%s393 + $0x40] sm:$0xf]
        %v491 = vld [vmem:[%s393 + $0x44] sm:$0xf]
        %v492 = vld [vmem:[%s393 + $0x48] sm:$0xf]
        %v493 = vld [vmem:[%s393 + $0x4c] sm:$0xf]
        %v494 = vld [vmem:[%s393 + $0x50] sm:$0xf]
        %v495 = vld [vmem:[%s393 + $0x54] sm:$0xf]
        %v496 = vld [vmem:[%s393 + $0x58] sm:$0xf]
        %v497 = vld [vmem:[%s393 + $0x5c] sm:$0xf]
        %v498 = vld [vmem:[%s393 + $0x60] sm:$0xf]
        %v499 = vld [vmem:[%s393 + $0x64] sm:$0xf]
        %v500 = vld [vmem:[%s393 + $0x68] sm:$0xf]
        %v501 = vld [vmem:[%s393 + $0x6c] sm:$0xf]
        %v502 = vld [vmem:[%s393 + $0x70] sm:$0xf]
        %v503 = vld [vmem:[%s393 + $0x74] sm:$0xf]
        %v504 = vld [vmem:[%s393 + $0x78] sm:$0xf]
        %v505 = vld [vmem:[%s393 + $0x7c] sm:$0xf]
        %v506 = vld [vmem:[%s393 + $0x80] sm:$0xf]
        %v507 = vld [vmem:[%s393 + $0x84] sm:$0xf]
        %v508 = vld [vmem:[%s393 + $0x88] sm:$0xf]
        %v509 = vld [vmem:[%s393 + $0x8c] sm:$0xf]
        %v542 = vunpack.c.l.b16 %v442
        %v543 = vunpack.c.h.b16 %v442
        %v544 = vunpack.c.l.b16 %v443
        %v545 = vunpack.c.l.b16 %v444
        %v546 = vunpack.c.h.b16 %v444
        %v547 = vunpack.c.l.b16 %v445
        %v548 = vunpack.c.l.b16 %v446
        %v549 = vunpack.c.h.b16 %v446
        %v550 = vunpack.c.l.b16 %v447
        %v551 = vunpack.c.l.b16 %v448
        %v552 = vunpack.c.h.b16 %v448
        %v553 = vunpack.c.l.b16 %v449
        %v554 = vunpack.c.l.b16 %v450
        %v555 = vunpack.c.h.b16 %v450
        %v556 = vunpack.c.l.b16 %v451
        %v557 = vunpack.c.l.b16 %v452
        %v558 = vunpack.c.h.b16 %v452
        %v559 = vunpack.c.l.b16 %v453
        %v560 = vunpack.c.l.b16 %v454
        %v561 = vunpack.c.h.b16 %v454
        %v562 = vunpack.c.l.b16 %v455
        %v563 = vunpack.c.l.b16 %v456
        %v564 = vunpack.c.h.b16 %v456
        %v565 = vunpack.c.l.b16 %v457
        %v566 = vunpack.c.l.b16 %v458
        %v567 = vunpack.c.h.b16 %v458
        %v568 = vunpack.c.l.b16 %v459
        %v569 = vunpack.c.l.b16 %v460
        %v570 = vunpack.c.h.b16 %v460
        %v571 = vunpack.c.l.b16 %v461
        %v572 = vunpack.c.l.b16 %v462
        %v573 = vunpack.c.h.b16 %v462
        %v574 = vunpack.c.l.b16 %v463
        %v575 = vunpack.c.l.b16 %v464
        %v576 = vunpack.c.h.b16 %v464
        %v577 = vunpack.c.l.b16 %v465
        %v578 = vunpack.c.l.b16 %v466
        %v579 = vunpack.c.h.b16 %v466
        %v580 = vunpack.c.l.b16 %v467
        %v581 = vunpack.c.l.b16 %v468
        %v582 = vunpack.c.h.b16 %v468
        %v583 = vunpack.c.l.b16 %v469
        %v584 = vunpack.c.l.b16 %v470
        %v585 = vunpack.c.h.b16 %v470
        %v586 = vunpack.c.l.b16 %v471
        %v587 = vunpack.c.l.b16 %v472
        %v588 = vunpack.c.h.b16 %v472
        %v589 = vunpack.c.l.b16 %v473
        %v590 = vpack.c.b16 %v545, %v542
        %v591 = vpack.c.b16 %v546, %v543
        %v592 = vpack.c.b16 %v547, %v544
        %v593 = vpack.c.b16 %v551, %v548
        %v594 = vpack.c.b16 %v552, %v549
        %v595 = vpack.c.b16 %v553, %v550
        %v596 = vpack.c.b16 %v557, %v554
        %v597 = vpack.c.b16 %v558, %v555
        %v598 = vpack.c.b16 %v559, %v556
        %v599 = vpack.c.b16 %v563, %v560
        %v600 = vpack.c.b16 %v564, %v561
        %v601 = vpack.c.b16 %v565, %v562
        %v602 = vpack.c.b16 %v569, %v566
        %v603 = vpack.c.b16 %v570, %v567
        %v604 = vpack.c.b16 %v571, %v568
        %v605 = vpack.c.b16 %v575, %v572
        %v606 = vpack.c.b16 %v576, %v573
        %v607 = vpack.c.b16 %v577, %v574
        %v608 = vpack.c.b16 %v581, %v578
        %v609 = vpack.c.b16 %v582, %v579
        %v610 = vpack.c.b16 %v583, %v580
        %v611 = vpack.c.b16 %v587, %v584
        %v612 = vpack.c.b16 %v588, %v585
        %v613 = vpack.c.b16 %v589, %v586
        %v666 = vunpack.c.l.b16 %v474
        %v667 = vunpack.c.l.b16 %v475
        %v668 = vunpack.c.l.b16 %v476
        %v669 = vunpack.c.l.b16 %v477
        %v670 = vunpack.c.l.b16 %v478
        %v671 = vunpack.c.l.b16 %v479
        %v672 = vunpack.c.l.b16 %v480
        %v673 = vunpack.c.l.b16 %v481
        %v674 = vunpack.c.l.b16 %v482
        %v675 = vunpack.c.l.b16 %v483
        %v676 = vunpack.c.l.b16 %v484
        %v677 = vunpack.c.l.b16 %v485
        %v678 = vunpack.c.l.b16 %v486
        %v679 = vunpack.c.l.b16 %v487
        %v680 = vunpack.c.l.b16 %v488
        %v681 = vunpack.c.l.b16 %v489
        %v682 = vunpack.c.l.b16 %v490
        %v683 = vunpack.c.l.b16 %v491
        %v684 = vunpack.c.l.b16 %v492
        %v685 = vunpack.c.l.b16 %v493
        %v686 = vunpack.c.l.b16 %v494
        %v687 = vunpack.c.l.b16 %v495
        %v688 = vunpack.c.l.b16 %v496
        %v689 = vunpack.c.l.b16 %v497
        %v690 = vunpack.c.l.b16 %v498
        %v691 = vunpack.c.l.b16 %v499
        %v692 = vunpack.c.l.b16 %v500
        %v693 = vunpack.c.l.b16 %v501
        %v694 = vunpack.c.l.b16 %v502
        %v695 = vunpack.c.l.b16 %v503
        %v696 = vunpack.c.l.b16 %v504
        %v697 = vunpack.c.l.b16 %v505
        %v698 = vunpack.c.l.b16 %v506
        %v699 = vunpack.c.l.b16 %v507
        %v700 = vunpack.c.l.b16 %v508
        %v701 = vunpack.c.l.b16 %v509
        %v702 = vpack.c.b16 %v667, %v666
        %v703 = vpack.c.b16 %v669, %v668
        %v704 = vpack.c.b16 %v671, %v670
        %v705 = vpack.c.b16 %v673, %v672
        %v706 = vpack.c.b16 %v675, %v674
        %v707 = vpack.c.b16 %v677, %v676
        %v708 = vpack.c.b16 %v679, %v678
        %v709 = vpack.c.b16 %v681, %v680
        %v710 = vpack.c.b16 %v683, %v682
        %v711 = vpack.c.b16 %v685, %v684
        %v712 = vpack.c.b16 %v687, %v686
        %v713 = vpack.c.b16 %v689, %v688
        %v714 = vpack.c.b16 %v691, %v690
        %v715 = vpack.c.b16 %v693, %v692
        %v716 = vpack.c.b16 %v695, %v694
        %v717 = vpack.c.b16 %v697, %v696
        %v718 = vpack.c.b16 %v699, %v698
        %v719 = vpack.c.b16 %v701, %v700
        %vm738 = vcmask 261120
        %v740 = vsel %vm738, %v592, 0
        %v743 = vsel %vm738, %v595, 0
        %v746 = vsel %vm738, %v598, 0
        %v749 = vsel %vm738, %v601, 0
        %v752 = vsel %vm738, %v604, 0
        %v755 = vsel %vm738, %v607, 0
        %v758 = vsel %vm738, %v610, 0
        %v761 = vsel %vm738, %v613, 0
        %763 = vmatprep.subr.bf16.mxu0 0
        %764 = vmatpush1.bf16.msra.mxu0 %v702
        %765 = vmatprep.subr.bf16.mxu0 0
        %766 = vmatpush1.bf16.msra.mxu0 %v703
        %767 = vmatprep.subr.bf16.mxu0 0
        %768 = vmatpush1.bf16.msra.mxu0 %v704
        %769 = vmatprep.subr.bf16.mxu0 0
        %770 = vmatpush1.bf16.msra.mxu0 %v705
        %771 = vmatprep.subr.bf16.mxu0 0
        %772 = vmatpush1.bf16.msra.mxu0 %v706
        %773 = vmatprep.subr.bf16.mxu0 0
        %774 = vmatpush1.bf16.msra.mxu0 %v707
        %775 = vmatprep.subr.bf16.mxu0 0
        %776 = vmatpush1.bf16.msra.mxu0 %v708
        %777 = vmatprep.subr.bf16.mxu0 0
        %778 = vmatpush1.bf16.msra.mxu0 %v709
        %779 = vmatprep.subr.bf16.mxu0 0
        %780 = vmatpush1.bf16.msra.mxu0 %v710
        %781 = vmatprep.subr.bf16.mxu0 0
        %782 = vmatpush1.bf16.msra.mxu0 %v711
        %783 = vmatprep.subr.bf16.mxu0 0
        %784 = vmatpush1.bf16.msra.mxu0 %v712
        %785 = vmatprep.subr.bf16.mxu0 0
        %786 = vmatpush1.bf16.msra.mxu0 %v713
        %787 = vmatprep.subr.bf16.mxu0 0
        %788 = vmatpush1.bf16.msra.mxu0 %v714
        %789 = vmatprep.subr.bf16.mxu0 0
        %790 = vmatpush1.bf16.msra.mxu0 %v715
        %791 = vmatprep.subr.bf16.mxu0 0
        %792 = vmatpush1.bf16.msra.mxu0 %v716
        %793 = vmatprep.subr.bf16.mxu0 0
        %794 = vmatpush1.bf16.msra.mxu0 %v717
        %795 = vmatprep.mubr.bf16.mxu0 %v591
        %796 = vmatmul.mubr.bf16.gmra.mrb[0].mxu0 %v590
        %v797 = vpop.f32.mrb[0].mxu0
        %v798 = vadd.f32 0.0, %v797
        %v799 = vpop.f32.mrb[0].mxu0
        %v800 = vpop.f32.mrb[0].mxu0
        %v801 = vadd.f32 0.0, %v800
        %v802 = vpop.f32.mrb[0].mxu0
        %803 = vmatprep.mubr.bf16.mxu0 %v594
        %804 = vmatmul.mubr.bf16.gmra.mrb[0].mxu0 %v593
        %v805 = vpop.f32.mrb[0].mxu0
        %v806 = vadd.f32 0.0, %v805
        %v807 = vpop.f32.mrb[0].mxu0
        %v808 = vpop.f32.mrb[0].mxu0
        %v809 = vadd.f32 0.0, %v808
        %v810 = vpop.f32.mrb[0].mxu0
        %811 = vmatprep.mubr.bf16.mxu0 %v597
        %812 = vmatmul.mubr.bf16.gmra.mrb[0].mxu0 %v596
        %v813 = vpop.f32.mrb[0].mxu0
        %v814 = vadd.f32 0.0, %v813
        %v815 = vpop.f32.mrb[0].mxu0
        %v816 = vpop.f32.mrb[0].mxu0
        %v817 = vadd.f32 0.0, %v816
        %v818 = vpop.f32.mrb[0].mxu0
        %819 = vmatprep.mubr.bf16.mxu0 %v600
        %820 = vmatmul.mubr.bf16.gmra.mrb[0].mxu0 %v599
        %v821 = vpop.f32.mrb[0].mxu0
        %v822 = vadd.f32 0.0, %v821
        %v823 = vpop.f32.mrb[0].mxu0
        %v824 = vpop.f32.mrb[0].mxu0
        %v825 = vadd.f32 0.0, %v824
        %v826 = vpop.f32.mrb[0].mxu0
        %827 = vmatprep.mubr.bf16.mxu0 %v603
        %828 = vmatmul.mubr.bf16.gmra.mrb[0].mxu0 %v602
        %v829 = vpop.f32.mrb[0].mxu0
        %v830 = vadd.f32 0.0, %v829
        %v831 = vpop.f32.mrb[0].mxu0
        %v832 = vpop.f32.mrb[0].mxu0
        %v833 = vadd.f32 0.0, %v832
        %v834 = vpop.f32.mrb[0].mxu0
        %835 = vmatprep.mubr.bf16.mxu0 %v606
        %836 = vmatmul.mubr.bf16.gmra.mrb[0].mxu0 %v605
        %v837 = vpop.f32.mrb[0].mxu0
        %v838 = vadd.f32 0.0, %v837
        %v839 = vpop.f32.mrb[0].mxu0
        %v840 = vpop.f32.mrb[0].mxu0
        %v841 = vadd.f32 0.0, %v840
        %v842 = vpop.f32.mrb[0].mxu0
        %843 = vmatprep.mubr.bf16.mxu0 %v609
        %844 = vmatmul.mubr.bf16.gmra.mrb[0].mxu0 %v608
        %v845 = vpop.f32.mrb[0].mxu0
        %v846 = vadd.f32 0.0, %v845
        %v847 = vpop.f32.mrb[0].mxu0
        %v848 = vpop.f32.mrb[0].mxu0
        %v849 = vadd.f32 0.0, %v848
        %v850 = vpop.f32.mrb[0].mxu0
        %851 = vmatprep.mubr.bf16.mxu0 %v612
        %852 = vmatmul.mubr.bf16.gmra.mrb[0].mxu0 %v611
        %v853 = vpop.f32.mrb[0].mxu0
        %v854 = vadd.f32 0.0, %v853
        %v855 = vpop.f32.mrb[0].mxu0
        %v856 = vpop.f32.mrb[0].mxu0
        %v857 = vadd.f32 0.0, %v856
        %v858 = vpop.f32.mrb[0].mxu0
        %859 = vdwg.mxu0
        %860 = vmatprep.subr.bf16.mxu0 0
        %861 = vmatpush1.bf16.msra.mxu0 %v718
        %862 = vmatprep.subr.bf16.mxu0 0
        %863 = vmatpush1.bf16.msra.mxu0 %v719
        %864 = vmatprep.subr.bf16.mxu0 0
        %865 = vmatpush1.bf16.msra.mxu0 0
        %866 = vmatprep.subr.bf16.mxu0 0
        %867 = vmatpush1.bf16.msra.mxu0 0
        %868 = vmatprep.subr.bf16.mxu0 0
        %869 = vmatpush1.bf16.msra.mxu0 0
        %870 = vmatprep.subr.bf16.mxu0 0
        %871 = vmatpush1.bf16.msra.mxu0 0
        %872 = vmatprep.subr.bf16.mxu0 0
        %873 = vmatpush1.bf16.msra.mxu0 0
        %874 = vmatprep.subr.bf16.mxu0 0
        %875 = vmatpush1.bf16.msra.mxu0 0
        %876 = vmatprep.subr.bf16.mxu0 0
        %877 = vmatpush1.bf16.msra.mxu0 0
        %878 = vmatprep.subr.bf16.mxu0 0
        %879 = vmatpush1.bf16.msra.mxu0 0
        %880 = vmatprep.subr.bf16.mxu0 0
        %881 = vmatpush1.bf16.msra.mxu0 0
        %882 = vmatprep.subr.bf16.mxu0 0
        %883 = vmatpush1.bf16.msra.mxu0 0
        %884 = vmatprep.subr.bf16.mxu0 0
        %885 = vmatpush1.bf16.msra.mxu0 0
        %886 = vmatprep.subr.bf16.mxu0 0
        %887 = vmatpush1.bf16.msra.mxu0 0
        %888 = vmatprep.subr.bf16.mxu0 0
        %889 = vmatpush1.bf16.msra.mxu0 0
        %890 = vmatprep.subr.bf16.mxu0 0
        %891 = vmatpush1.bf16.msra.mxu0 0
        %892 = vmatprep.mubr.bf16.mxu0 0
        %893 = vmatmul.mubr.bf16.gmra.mrb[0].mxu0 %v740
        %v894 = vpop.f32.mrb[0].mxu0
        %v895 = vadd.f32 %v798, %v894
        %v896 = vpop.f32.mrb[0].mxu0
        %v897 = vpop.f32.mrb[0].mxu0
        %v898 = vadd.f32 %v801, %v897
        %v899 = vpop.f32.mrb[0].mxu0
        %900 = vmatprep.mubr.bf16.mxu0 0
        %901 = vmatmul.mubr.bf16.gmra.mrb[0].mxu0 %v743
        %v902 = vpop.f32.mrb[0].mxu0
        %v903 = vadd.f32 %v806, %v902
        %v904 = vpop.f32.mrb[0].mxu0
        %v905 = vpop.f32.mrb[0].mxu0
        %v906 = vadd.f32 %v809, %v905
        %v907 = vpop.f32.mrb[0].mxu0
        %908 = vmatprep.mubr.bf16.mxu0 0
        %909 = vmatmul.mubr.bf16.gmra.mrb[0].mxu0 %v746
        %v910 = vpop.f32.mrb[0].mxu0
        %v911 = vadd.f32 %v814, %v910
        %v912 = vpop.f32.mrb[0].mxu0
        %v913 = vpop.f32.mrb[0].mxu0
        %v914 = vadd.f32 %v817, %v913
        %v915 = vpop.f32.mrb[0].mxu0
        %916 = vmatprep.mubr.bf16.mxu0 0
        %917 = vmatmul.mubr.bf16.gmra.mrb[0].mxu0 %v749
        %v918 = vpop.f32.mrb[0].mxu0
        %v919 = vadd.f32 %v822, %v918
        %v920 = vpop.f32.mrb[0].mxu0
        %v921 = vpop.f32.mrb[0].mxu0
        %v922 = vadd.f32 %v825, %v921
        %v923 = vpop.f32.mrb[0].mxu0
        %924 = vmatprep.mubr.bf16.mxu0 0
        %925 = vmatmul.mubr.bf16.gmra.mrb[0].mxu0 %v752
        %v926 = vpop.f32.mrb[0].mxu0
        %v927 = vadd.f32 %v830, %v926
        %v928 = vpop.f32.mrb[0].mxu0
        %v929 = vpop.f32.mrb[0].mxu0
        %v930 = vadd.f32 %v833, %v929
        %v931 = vpop.f32.mrb[0].mxu0
        %932 = vmatprep.mubr.bf16.mxu0 0
        %933 = vmatmul.mubr.bf16.gmra.mrb[0].mxu0 %v755
        %v934 = vpop.f32.mrb[0].mxu0
        %v935 = vadd.f32 %v838, %v934
        %v936 = vpop.f32.mrb[0].mxu0
        %v937 = vpop.f32.mrb[0].mxu0
        %v938 = vadd.f32 %v841, %v937
        %v939 = vpop.f32.mrb[0].mxu0
        %940 = vmatprep.mubr.bf16.mxu0 0
        %941 = vmatmul.mubr.bf16.gmra.mrb[0].mxu0 %v758
        %v942 = vpop.f32.mrb[0].mxu0
        %v943 = vadd.f32 %v846, %v942
        %v944 = vpop.f32.mrb[0].mxu0
        %v945 = vpop.f32.mrb[0].mxu0
        %v946 = vadd.f32 %v849, %v945
        %v947 = vpop.f32.mrb[0].mxu0
        %948 = vmatprep.mubr.bf16.mxu0 0
        %949 = vmatmul.mubr.bf16.gmra.mrb[0].mxu0 %v761
        %v950 = vpop.f32.mrb[0].mxu0
        %v951 = vadd.f32 %v854, %v950
        %v952 = vpop.f32.mrb[0].mxu0
        %v953 = vpop.f32.mrb[0].mxu0
        %v954 = vadd.f32 %v857, %v953
        %v955 = vpop.f32.mrb[0].mxu0
        %956 = vdwg.mxu0
        %v957 = vld [vmem:[%s436] sm:$0x1]
        %v959 = vlaneseq
        %v960 = vshrl.u32 %v959, 7
        %v961 = vsub.s32 0, %v960
        %v962 = vrot.slane %v957, %v961
        %v964 = vmul.f32 %v895, %v962
        %v965 = vmul.f32 %v898, %v962
        %v966 = vmul.f32 %v903, %v962
        %v967 = vmul.f32 %v906, %v962
        %v968 = vmul.f32 %v911, %v962
        %v969 = vmul.f32 %v914, %v962
        %v970 = vmul.f32 %v919, %v962
        %v971 = vmul.f32 %v922, %v962
        %v972 = vmul.f32 %v927, %v962
        %v973 = vmul.f32 %v930, %v962
        %v974 = vmul.f32 %v935, %v962
        %v975 = vmul.f32 %v938, %v962
        %v976 = vmul.f32 %v943, %v962
        %v977 = vmul.f32 %v946, %v962
        %v978 = vmul.f32 %v951, %v962
        %v979 = vmul.f32 %v954, %v962
        %v980 = vld [vmem:[%s439] sm:$0x1]
        %v982 = vlaneseq
        %v983 = vshrl.u32 %v982, 7
        %v984 = vsub.s32 0, %v983
        %v985 = vrot.slane %v980, %v984
        %v987 = vadd.f32 %v964, %v985
        %v988 = vadd.f32 %v965, %v985
        %v989 = vadd.f32 %v966, %v985
        %v990 = vadd.f32 %v967, %v985
        %v991 = vadd.f32 %v968, %v985
        %v992 = vadd.f32 %v969, %v985
        %v993 = vadd.f32 %v970, %v985
        %v994 = vadd.f32 %v971, %v985
        %v995 = vadd.f32 %v972, %v985
        %v996 = vadd.f32 %v973, %v985
        %v997 = vadd.f32 %v974, %v985
        %v998 = vadd.f32 %v975, %v985
        %v999 = vadd.f32 %v976, %v985
        %v1000 = vadd.f32 %v977, %v985
        %v1001 = vadd.f32 %v978, %v985
        %v1002 = vadd.f32 %v979, %v985
        %v1003 = vmax.f32 %v987, 0.0
        %v1004 = vmax.f32 %v988, 0.0
        %v1005 = vmax.f32 %v989, 0.0
        %v1006 = vmax.f32 %v990, 0.0
        %v1007 = vmax.f32 %v991, 0.0
        %v1008 = vmax.f32 %v992, 0.0
        %v1009 = vmax.f32 %v993, 0.0
        %v1010 = vmax.f32 %v994, 0.0
        %v1011 = vmax.f32 %v995, 0.0
        %v1012 = vmax.f32 %v996, 0.0
        %v1013 = vmax.f32 %v997, 0.0
        %v1014 = vmax.f32 %v998, 0.0
        %v1015 = vmax.f32 %v999, 0.0
        %v1016 = vmax.f32 %v1000, 0.0
        %v1017 = vmax.f32 %v1001, 0.0
        %v1018 = vmax.f32 %v1002, 0.0
        %1019 = vst [vmem:[%s426] sm:$0xff] %v1003
        %1020 = vst [vmem:[%s426 + $0x8] sm:$0xff] %v1004
        %1021 = vst [vmem:[%s426 + $0x10] sm:$0xff] %v1005
        %1022 = vst [vmem:[%s426 + $0x18] sm:$0xff] %v1006
        %1023 = vst [vmem:[%s426 + $0x20] sm:$0xff] %v1007
        %1024 = vst [vmem:[%s426 + $0x28] sm:$0xff] %v1008
        %1025 = vst [vmem:[%s426 + $0x30] sm:$0xff] %v1009
        %1026 = vst [vmem:[%s426 + $0x38] sm:$0xff] %v1010
        %1027 = vst [vmem:[%s426 + $0x40] sm:$0xff] %v1011
        %1028 = vst [vmem:[%s426 + $0x48] sm:$0xff] %v1012
        %1029 = vst [vmem:[%s426 + $0x50] sm:$0xff] %v1013
        %1030 = vst [vmem:[%s426 + $0x58] sm:$0xff] %v1014
        %1031 = vst [vmem:[%s426 + $0x60] sm:$0xff] %v1015
        %1032 = vst [vmem:[%s426 + $0x68] sm:$0xff] %v1016
        %1033 = vst [vmem:[%s426 + $0x70] sm:$0xff] %v1017
        %1034 = vst [vmem:[%s426 + $0x78] sm:$0xff] %v1018
        %s1035 = sand.u32 %s141, 1
        %s1036 = sand.u32 %s141, 1
        %s1037 = smul.addr %s1036, 128
        %s1038 = scalar_lea.vmem [#allocation3], %s1037
        // Predicated region
        $region78: #{inception_b_forward.5} parent=72 // pred_check
          %p1039 = pneg %p151
        $region79: #{inception_b_forward.5} parent=72 // pred_check_branch
          %1041 = sbr.rel (%p1039) target = $region81
        $region80: #{inception_b_forward.5} parent=72 // pred_region
          %s1042 = smul.u32 16, %s19
          %s1043 = smul.addr %s1042, 3
          %s1044 = sadd.s32 %s20, %s1043
          %s1045 = smul.addr %s1044, 8
          %s1046 = scalar_lea.vmem %s4, %s1045
          // Predicated region
          $region82: #{inception_b_forward.5} parent=80 // pred_check
            _
          $region83: #{inception_b_forward.5} parent=80 // pred_check_branch
            %1048 = sbr.rel (0) target = $region85
          $region84: #{inception_b_forward.5} parent=80 // pred_region
            // Predicated region
            $region86: #{inception_b_forward.5} parent=84 // pred_check
              _
            $region87: #{inception_b_forward.5} parent=84 // pred_check_branch
              %1050 = sbr.rel (0) target = $region89
            $region88: #{inception_b_forward.5} parent=84 // pred_region
              // Predicated region
              $region101: #{inception_b_forward.5} parent=88 // pred_check
                _
              $region102: #{inception_b_forward.5} parent=88 // pred_check_branch
                %1095 = sbr.rel (0) target = $region104
              $region103: #{inception_b_forward.5} parent=88 // pred_region
                loop: start=0, step=1, limit=1
                $region105: #{inception_b_forward.5} parent=103 // loop_pre_header
                  _
                $region106: #{inception_b_forward.5} parent=103 // loop_header
                  %s1097 = sphi 0, %s1101
                  %p1098 = scmp.ge.s32.totalorder %s1097, 1
                  %s1102 = sphi %s1038, %s1038
                  %s1103 = sphi %s1046, %s1046
                $region107: #{inception_b_forward.5} parent=103 // loop_header_branch
                  %1100 = sbr.rel (%p1098) target = $region111
                $region108: #{inception_b_forward.5} parent=103 // loop_body
                  %v1104 = vld [vmem:[%s1102] sm:$0xff]
                  %1105 = vst [vmem:[%s1103] sm:$0xff] %v1104
                  %v1106 = vld [vmem:[%s1102 + $0x8] sm:$0xff]
                  %1107 = vst [vmem:[%s1103 + $0x18] sm:$0xff] %v1106
                  %v1108 = vld [vmem:[%s1102 + $0x10] sm:$0xff]
                  %1109 = vst [vmem:[%s1103 + $0x30] sm:$0xff] %v1108
                  %v1110 = vld [vmem:[%s1102 + $0x18] sm:$0xff]
                  %1111 = vst [vmem:[%s1103 + $0x48] sm:$0xff] %v1110
                  %v1112 = vld [vmem:[%s1102 + $0x20] sm:$0xff]
                  %1113 = vst [vmem:[%s1103 + $0x60] sm:$0xff] %v1112
                  %v1114 = vld [vmem:[%s1102 + $0x28] sm:$0xff]
                  %1115 = vst [vmem:[%s1103 + $0x78] sm:$0xff] %v1114
                  %v1116 = vld [vmem:[%s1102 + $0x30] sm:$0xff]
                  %1117 = vst [vmem:[%s1103 + $0x90] sm:$0xff] %v1116
                  %v1118 = vld [vmem:[%s1102 + $0x38] sm:$0xff]
                  %1119 = vst [vmem:[%s1103 + $0xa8] sm:$0xff] %v1118
                  %v1120 = vld [vmem:[%s1102 + $0x40] sm:$0xff]
                  %1121 = vst [vmem:[%s1103 + $0xc0] sm:$0xff] %v1120
                  %v1122 = vld [vmem:[%s1102 + $0x48] sm:$0xff]
                  %1123 = vst [vmem:[%s1103 + $0xd8] sm:$0xff] %v1122
                  %v1124 = vld [vmem:[%s1102 + $0x50] sm:$0xff]
                  %1125 = vst [vmem:[%s1103 + $0xf0] sm:$0xff] %v1124
                  %v1126 = vld [vmem:[%s1102 + $0x58] sm:$0xff]
                  %1127 = vst [vmem:[%s1103 + $0x108] sm:$0xff] %v1126
                  %v1128 = vld [vmem:[%s1102 + $0x60] sm:$0xff]
                  %1129 = vst [vmem:[%s1103 + $0x120] sm:$0xff] %v1128
                  %v1130 = vld [vmem:[%s1102 + $0x68] sm:$0xff]
                  %1131 = vst [vmem:[%s1103 + $0x138] sm:$0xff] %v1130
                  %v1132 = vld [vmem:[%s1102 + $0x70] sm:$0xff]
                  %1133 = vst [vmem:[%s1103 + $0x150] sm:$0xff] %v1132
                  %v1134 = vld [vmem:[%s1102 + $0x78] sm:$0xff]
                  %1135 = vst [vmem:[%s1103 + $0x168] sm:$0xff] %v1134
                $region109: #{inception_b_forward.5} parent=103 // loop_footer
                  %s1101 = sadd.s32 1, %s1097
                $region110: #{inception_b_forward.5} parent=103 // loop_footer_branch
                  %1096 = sbr.rel target = $region106
                $region111: #{inception_b_forward.5} parent=103 // loop_exit
                  _
              $region104: #{inception_b_forward.5} parent=88 // pred_fallthru
                _
              // Predicated region
              $region112: #{inception_b_forward.5} parent=88 // pred_check
                _
              $region113: #{inception_b_forward.5} parent=88 // pred_check_branch
                %1137 = sbr.rel target = $region115
              $region114: #{inception_b_forward.5} parent=88 // pred_region
                _
              $region115: #{inception_b_forward.5} parent=88 // pred_fallthru
                _
            $region89: #{inception_b_forward.5} parent=84 // pred_fallthru
              _
            // Predicated region
            $region90: #{inception_b_forward.5} parent=84 // pred_check
              _
            $region91: #{inception_b_forward.5} parent=84 // pred_check_branch
              %1052 = sbr.rel target = $region93
            $region92: #{inception_b_forward.5} parent=84 // pred_region
              loop: start=0, step=1, limit=1
              $region94: #{inception_b_forward.5} parent=92 // loop_pre_header
                _
              $region95: #{inception_b_forward.5} parent=92 // loop_header
                %s1055 = sphi 0, %s1059
                %p1056 = scmp.ge.s32.totalorder %s1055, 1
                %s1060 = sphi %s1038, %s1038
                %s1061 = sphi %s1046, %s1046
              $region96: #{inception_b_forward.5} parent=92 // loop_header_branch
                %1058 = sbr.rel (%p1056) target = $region100
              $region97: #{inception_b_forward.5} parent=92 // loop_body
                %v1062 = vld [vmem:[%s1060] sm:$0xff]
                %1063 = vst [vmem:[%s1061] sm:$0xff] %v1062
                %v1064 = vld [vmem:[%s1060 + $0x8] sm:$0xff]
                %1065 = vst [vmem:[%s1061 + $0x18] sm:$0xff] %v1064
                %v1066 = vld [vmem:[%s1060 + $0x10] sm:$0xff]
                %1067 = vst [vmem:[%s1061 + $0x30] sm:$0xff] %v1066
                %v1068 = vld [vmem:[%s1060 + $0x18] sm:$0xff]
                %1069 = vst [vmem:[%s1061 + $0x48] sm:$0xff] %v1068
                %v1070 = vld [vmem:[%s1060 + $0x20] sm:$0xff]
                %1071 = vst [vmem:[%s1061 + $0x60] sm:$0xff] %v1070
                %v1072 = vld [vmem:[%s1060 + $0x28] sm:$0xff]
                %1073 = vst [vmem:[%s1061 + $0x78] sm:$0xff] %v1072
                %v1074 = vld [vmem:[%s1060 + $0x30] sm:$0xff]
                %1075 = vst [vmem:[%s1061 + $0x90] sm:$0xff] %v1074
                %v1076 = vld [vmem:[%s1060 + $0x38] sm:$0xff]
                %1077 = vst [vmem:[%s1061 + $0xa8] sm:$0xff] %v1076
                %v1078 = vld [vmem:[%s1060 + $0x40] sm:$0xff]
                %1079 = vst [vmem:[%s1061 + $0xc0] sm:$0xff] %v1078
                %v1080 = vld [vmem:[%s1060 + $0x48] sm:$0xff]
                %1081 = vst [vmem:[%s1061 + $0xd8] sm:$0xff] %v1080
                %v1082 = vld [vmem:[%s1060 + $0x50] sm:$0xff]
                %1083 = vst [vmem:[%s1061 + $0xf0] sm:$0xff] %v1082
                %v1084 = vld [vmem:[%s1060 + $0x58] sm:$0xff]
                %1085 = vst [vmem:[%s1061 + $0x108] sm:$0xff] %v1084
                %v1086 = vld [vmem:[%s1060 + $0x60] sm:$0xff]
                %1087 = vst [vmem:[%s1061 + $0x120] sm:$0xff] %v1086
                %v1088 = vld [vmem:[%s1060 + $0x68] sm:$0xff]
                %1089 = vst [vmem:[%s1061 + $0x138] sm:$0xff] %v1088
                %v1090 = vld [vmem:[%s1060 + $0x70] sm:$0xff]
                %1091 = vst [vmem:[%s1061 + $0x150] sm:$0xff] %v1090
                %v1092 = vld [vmem:[%s1060 + $0x78] sm:$0xff]
                %1093 = vst [vmem:[%s1061 + $0x168] sm:$0xff] %v1092
              $region98: #{inception_b_forward.5} parent=92 // loop_footer
                %s1059 = sadd.s32 1, %s1055
              $region99: #{inception_b_forward.5} parent=92 // loop_footer_branch
                %1054 = sbr.rel target = $region95
              $region100: #{inception_b_forward.5} parent=92 // loop_exit
                _
            $region93: #{inception_b_forward.5} parent=84 // pred_fallthru
              _
          $region85: #{inception_b_forward.5} parent=80 // pred_fallthru
            _
          %1138 = vnop
        $region81: #{inception_b_forward.5} parent=72 // pred_fallthru
          _
      $region73: #{inception_b_forward.5} parent=5 // pred_fallthru
        _
      %p1139 = scmp.le.s32.totalorder 2, %s10
      // Predicated region
      $region116: #{inception_b_forward.5} parent=5 // pred_check
        %p1140 = pneg %p1139
      $region117: #{inception_b_forward.5} parent=5 // pred_check_branch
        %1142 = sbr.rel (%p1140) target = $region119
      $region118: #{inception_b_forward.5} parent=5 // pred_region
        %s1143 = ssub.s32 %s10, 2
        // Predicated region
        $region120: #{inception_b_forward.5} parent=118 // pred_check
          %p1144 = pneg %p157
        $region121: #{inception_b_forward.5} parent=118 // pred_check_branch
          %1146 = sbr.rel (%p1144) target = $region123
        $region122: #{inception_b_forward.5} parent=118 // pred_region
          %s1147 = sand.u32 %s142, 1
          %s1148 = sand.u32 %s142, 1
          %s1149 = smul.addr %s1148, 128
          %s1150 = scalar_lea.vmem [#allocation3], %s1149
        $region123: #{inception_b_forward.5} parent=118 // pred_fallthru
          _
      $region119: #{inception_b_forward.5} parent=5 // pred_fallthru
        _
    $region6: #{inception_b_forward.5} parent=1 // loop_footer
      %s14 = sadd.s32 1, %s10
    $region7: #{inception_b_forward.5} parent=1 // loop_footer_branch
      %9 = sbr.rel target = $region3
    $region8: #{inception_b_forward.5} parent=1 // loop_exit
      _

// kernel: inception_b_forward.9
$region0: #{inception_b_forward.9}
  #allocation0 [shape = 'u32[]', space=smem, size = 0x4, offset = 0x4, fixed_abs, tag = 'smem constant byte address 0x4 - core index']
  #allocation1 [shape = 'u32[144,128]{1,0:T(1,128)}', space=vmem, size = 0x12000, scoped, tag = 'internal scratch']
  %s0 = inlined_call_operand.vmem [shape: f32[2,9,9,32], index: 0, kind: input, shape index: {}]
  %s1 = inlined_call_operand.vmem [shape: f32[2,9,8,32], index: 1, kind: input, shape index: {}]
  %s2 = inlined_call_operand.vmem [shape: f32[2,8,9,32], index: 2, kind: input, shape index: {}]
  %s3 = inlined_call_operand.vmem [shape: f32[2,8,8,32], index: 3, kind: input, shape index: {}]
  %s4 = inlined_call_operand.vmem [shape: f32[2,8,8,32], index: 4, kind: output, shape index: {}]
  %s5 = sld [smem:[#allocation0]]
  $region49: #{inception_b_forward.9} parent=0
    _
  %s7 = ssub.s32 1, %s5
  %s8 = scalar_select 0, %s7, %s5
  loop: start=0, step=1, limit=4
  $region2: #{inception_b_forward.9} parent=0 // loop_pre_header
    _
  $region3: #{inception_b_forward.9} parent=0 // loop_header
    %s10 = sphi 0, %s14
    %p11 = scmp.ge.s32.totalorder %s10, 4
    %s20 = sphi 0, %s22
    %s23 = sphi 0, %s20
    %s24 = sphi 0, %s23
    %s40 = sphi 0, %s24
    %s46 = sphi 0, %s48
    %s49 = sphi 0, %s46
    %s50 = sphi 0, %s49
    %s66 = sphi 0, %s50
    %s72 = sphi 0, %s74
    %s75 = sphi 0, %s72
    %s76 = sphi 0, %s75
    %s92 = sphi 0, %s76
    %s98 = sphi 0, %s100
    %s101 = sphi 0, %s98
    %s102 = sphi 0, %s101
    %s118 = sphi 0, %s102
    %s124 = sphi 0, %s126
    %s127 = sphi 0, %s124
    %s128 = sphi 0, %s127
    %s144 = sphi 0, %s128
  $region4: #{inception_b_forward.9} parent=0 // loop_header_branch
    %13 = sbr.rel (%p11) target = $region8
  $region5: #{inception_b_forward.9} parent=0 // loop_body
    %s15 = ssub.s32 %s10, 1
    %s16 = ssub.s32 %s10, 2
    %s17 = sadd.s32 %s10, 1
    %s18 = ssub.s32 %s10, %s17
    %p19 = scmp.eq.s32.totalorder %s18, 0
    %s21 = sadd.s32 %s20, 1
    %s22 = scalar_select %p19, %s20, %s21
    %p25 = pneg %p19
    %p26 = scmp.eq.s32.totalorder %s10, 1
    %p27 = por %p25, %p26
    %p28 = scmp.ne.s32.totalorder %s20, %s23
    %p29 = scmp.eq.s32.totalorder %s10, 0
    %p30 = por %p28, %p29
    %p31 = scmp.ne.s32.totalorder %s20, %s23
    %p32 = scmp.eq.s32.totalorder %s15, 1
    %p33 = por %p31, %p32
    %p34 = scmp.ne.s32.totalorder %s23, %s24
    %p35 = scmp.eq.s32.totalorder %s15, 0
    %p36 = por %p34, %p35
    %p37 = scmp.ne.s32.totalorder %s23, %s24
    %p38 = scmp.eq.s32.totalorder %s16, 1
    %p39 = por %p37, %p38
    %p41 = scmp.ne.s32.totalorder %s24, %s40
    %p42 = scmp.eq.s32.totalorder %s16, 0
    %p43 = por %p41, %p42
    %s44 = ssub.s32 %s10, %s17
    %p45 = scmp.eq.s32.totalorder %s44, 0
    %s47 = sadd.s32 %s46, 1
    %s48 = scalar_select %p45, %s46, %s47
    %p51 = pneg %p45
    %p52 = scmp.eq.s32.totalorder %s10, 1
    %p53 = por %p51, %p52
    %p54 = scmp.ne.s32.totalorder %s46, %s49
    %p55 = scmp.eq.s32.totalorder %s10, 0
    %p56 = por %p54, %p55
    %p57 = scmp.ne.s32.totalorder %s46, %s49
    %p58 = scmp.eq.s32.totalorder %s15, 1
    %p59 = por %p57, %p58
    %p60 = scmp.ne.s32.totalorder %s49, %s50
    %p61 = scmp.eq.s32.totalorder %s15, 0
    %p62 = por %p60, %p61
    %p63 = scmp.ne.s32.totalorder %s49, %s50
    %p64 = scmp.eq.s32.totalorder %s16, 1
    %p65 = por %p63, %p64
    %p67 = scmp.ne.s32.totalorder %s50, %s66
    %p68 = scmp.eq.s32.totalorder %s16, 0
    %p69 = por %p67, %p68
    %s70 = ssub.s32 %s10, %s17
    %p71 = scmp.eq.s32.totalorder %s70, 0
    %s73 = sadd.s32 %s72, 1
    %s74 = scalar_select %p71, %s72, %s73
    %p77 = pneg %p71
    %p78 = scmp.eq.s32.totalorder %s10, 1
    %p79 = por %p77, %p78
    %p80 = scmp.ne.s32.totalorder %s72, %s75
    %p81 = scmp.eq.s32.totalorder %s10, 0
    %p82 = por %p80, %p81
    %p83 = scmp.ne.s32.totalorder %s72, %s75
    %p84 = scmp.eq.s32.totalorder %s15, 1
    %p85 = por %p83, %p84
    %p86 = scmp.ne.s32.totalorder %s75, %s76
    %p87 = scmp.eq.s32.totalorder %s15, 0
    %p88 = por %p86, %p87
    %p89 = scmp.ne.s32.totalorder %s75, %s76
    %p90 = scmp.eq.s32.totalorder %s16, 1
    %p91 = por %p89, %p90
    %p93 = scmp.ne.s32.totalorder %s76, %s92
    %p94 = scmp.eq.s32.totalorder %s16, 0
    %p95 = por %p93, %p94
    %s96 = ssub.s32 %s10, %s17
    %p97 = scmp.eq.s32.totalorder %s96, 0
    %s99 = sadd.s32 %s98, 1
    %s100 = scalar_select %p97, %s98, %s99
    %p103 = pneg %p97
    %p104 = scmp.eq.s32.totalorder %s10, 1
    %p105 = por %p103, %p104
    %p106 = scmp.ne.s32.totalorder %s98, %s101
    %p107 = scmp.eq.s32.totalorder %s10, 0
    %p108 = por %p106, %p107
    %p109 = scmp.ne.s32.totalorder %s98, %s101
    %p110 = scmp.eq.s32.totalorder %s15, 1
    %p111 = por %p109, %p110
    %p112 = scmp.ne.s32.totalorder %s101, %s102
    %p113 = scmp.eq.s32.totalorder %s15, 0
    %p114 = por %p112, %p113
    %p115 = scmp.ne.s32.totalorder %s101, %s102
    %p116 = scmp.eq.s32.totalorder %s16, 1
    %p117 = por %p115, %p116
    %p119 = scmp.ne.s32.totalorder %s102, %s118
    %p120 = scmp.eq.s32.totalorder %s16, 0
    %p121 = por %p119, %p120
    %s122 = ssub.s32 %s10, %s17
    %p123 = scmp.eq.s32.totalorder %s122, 0
    %s125 = sadd.s32 %s124, 1
    %s126 = scalar_select %p123, %s124, %s125
    %p129 = pneg %p123
    %p130 = scmp.eq.s32.totalorder %s10, 1
    %p131 = por %p129, %p130
    %p132 = scmp.ne.s32.totalorder %s124, %s127
    %p133 = scmp.eq.s32.totalorder %s10, 0
    %p134 = por %p132, %p133
    %p135 = scmp.ne.s32.totalorder %s124, %s127
    %p136 = scmp.eq.s32.totalorder %s15, 1
    %p137 = por %p135, %p136
    %p138 = scmp.ne.s32.totalorder %s127, %s128
    %p139 = scmp.eq.s32.totalorder %s15, 0
    %p140 = por %p138, %p139
    %p141 = scmp.ne.s32.totalorder %s127, %s128
    %p142 = scmp.eq.s32.totalorder %s16, 1
    %p143 = por %p141, %p142
    %p145 = scmp.ne.s32.totalorder %s128, %s144
    %p146 = scmp.eq.s32.totalorder %s16, 0
    %p147 = por %p145, %p146
    %p148 = scmp.le.s32.totalorder 1, %s10
    %p149 = scmp.lt.s32.totalorder %s10, 3
    %p150 = pnand %p148, %p149
    %p151 = pneg %p150
    // Predicated region
    $region9: #{inception_b_forward.9} parent=5 // pred_check
      _
    $region10: #{inception_b_forward.9} parent=5 // pred_check_branch
      %153 = sbr.rel (%p150) target = $region12
    $region11: #{inception_b_forward.9} parent=5 // pred_region
      %s154 = ssub.s32 %s10, 1
    $region12: #{inception_b_forward.9} parent=5 // pred_fallthru
      _
    %p155 = scmp.lt.s32.totalorder %s10, 2
    // Predicated region
    $region13: #{inception_b_forward.9} parent=5 // pred_check
      %p156 = pneg %p155
    $region14: #{inception_b_forward.9} parent=5 // pred_check_branch
      %158 = sbr.rel (%p156) target = $region16
    $region15: #{inception_b_forward.9} parent=5 // pred_region
      // Predicated region
      $region17: #{inception_b_forward.9} parent=15 // pred_check
        %p159 = pneg %p30
      $region18: #{inception_b_forward.9} parent=15 // pred_check_branch
        %161 = sbr.rel (%p159) target = $region20
      $region19: #{inception_b_forward.9} parent=15 // pred_region
        %p162 = scmp.lt.s32.totalorder %s10, 1
        %s163 = scalar_select %p162, %s10, 1
        %s164 = smul.addr %s163, 18
        %s165 = smul.addr %s164, 8
        %s166 = scalar_lea.vmem %s0, %s165
      $region20: #{inception_b_forward.9} parent=15 // pred_fallthru
        _
      // Predicated region
      $region21: #{inception_b_forward.9} parent=15 // pred_check
        %p167 = pneg %p56
      $region22: #{inception_b_forward.9} parent=15 // pred_check_branch
        %169 = sbr.rel (%p167) target = $region24
      $region23: #{inception_b_forward.9} parent=15 // pred_region
        %p170 = scmp.lt.s32.totalorder %s10, 1
        %s171 = scalar_select %p170, %s10, 1
        %s172 = smul.addr %s171, 9
        %s173 = smul.addr %s172, 8
        %s174 = scalar_lea.vmem %s1, %s173
      $region24: #{inception_b_forward.9} parent=15 // pred_fallthru
        _
      // Predicated region
      $region25: #{inception_b_forward.9} parent=15 // pred_check
        %p175 = pneg %p82
      $region26: #{inception_b_forward.9} parent=15 // pred_check_branch
        %177 = sbr.rel (%p175) target = $region28
      $region27: #{inception_b_forward.9} parent=15 // pred_region
        %p178 = scmp.lt.s32.totalorder %s10, 1
        %s179 = scalar_select %p178, %s10, 1
        %s180 = smul.addr %s179, 16
        %s181 = smul.addr %s180, 8
        %s182 = scalar_lea.vmem %s2, %s181
      $region28: #{inception_b_forward.9} parent=15 // pred_fallthru
        _
      // Predicated region
      $region29: #{inception_b_forward.9} parent=15 // pred_check
        %p183 = pneg %p108
      $region30: #{inception_b_forward.9} parent=15 // pred_check_branch
        %185 = sbr.rel (%p183) target = $region32
      $region31: #{inception_b_forward.9} parent=15 // pred_region
        %p186 = scmp.lt.s32.totalorder %s10, 1
        %s187 = scalar_select %p186, %s10, 1
        %s188 = smul.addr %s187, 8
        %s189 = smul.addr %s188, 8
        %s190 = scalar_lea.vmem %s3, %s189
      $region32: #{inception_b_forward.9} parent=15 // pred_fallthru
        _
    $region16: #{inception_b_forward.9} parent=5 // pred_fallthru
      _
    %p191 = scmp.le.s32.totalorder 1, %s10
    %p192 = scmp.lt.s32.totalorder %s10, 3
    %p193 = pnand %p191, %p192
    %p194 = pneg %p193
    // Predicated region
    $region33: #{inception_b_forward.9} parent=5 // pred_check
      _
    $region34: #{inception_b_forward.9} parent=5 // pred_check_branch
      %196 = sbr.rel (%p193) target = $region36
    $region35: #{inception_b_forward.9} parent=5 // pred_region
      %s197 = ssub.s32 %s10, 1
      %p198 = scmp.lt.s32.totalorder %s15, 1
      %s199 = scalar_select %p198, %s15, 1
      %s200 = smul.addr %s199, 18
      %s201 = smul.addr %s200, 8
      %s202 = scalar_lea.vmem %s0, %s201
      %p203 = pneg %p36
      %p204 = pneg %p33
      %p205 = scmp.lt.s32.totalorder %s15, 1
      %s206 = scalar_select %p205, %s15, 1
      %s207 = smul.addr %s206, 9
      %s208 = smul.addr %s207, 8
      %s209 = scalar_lea.vmem %s1, %s208
      %p210 = pneg %p62
      %p211 = pneg %p59
      %p212 = scmp.lt.s32.totalorder %s15, 1
      %s213 = scalar_select %p212, %s15, 1
      %s214 = smul.addr %s213, 16
      %s215 = smul.addr %s214, 8
      %s216 = scalar_lea.vmem %s2, %s215
      %p217 = pneg %p88
      %p218 = pneg %p85
      %p219 = scmp.lt.s32.totalorder %s15, 1
      %s220 = scalar_select %p219, %s15, 1
      %s221 = smul.addr %s220, 8
      %s222 = smul.addr %s221, 8
      %s223 = scalar_lea.vmem %s3, %s222
      %p224 = pneg %p114
      %p225 = pneg %p111
      %p226 = pneg %p140
      %p227 = pneg %p137
      %p228 = scmp.lt.s32.totalorder %s15, 1
      %s229 = scalar_select %p228, %s15, 1
      %s230 = smul.addr %s229, 8
      %s231 = smul.addr %s230, 8
      %s232 = scalar_lea.vmem %s4, %s231
      %p233 = scmp.lt.s32.totalorder %s15, 1
      %s234 = scalar_select %p233, %s15, 1
      %s235 = smul.addr %s234, 18
      %s236 = smul.addr %s235, 8
      %s237 = scalar_lea.vmem %s0, %s236
      %p238 = scmp.lt.s32.totalorder %s15, 1
      %s239 = scalar_select %p238, %s15, 1
      %s240 = smul.addr %s239, 9
      %s241 = smul.addr %s240, 8
      %s242 = scalar_lea.vmem %s1, %s241
      %p243 = scmp.lt.s32.totalorder %s15, 1
      %s244 = scalar_select %p243, %s15, 1
      %s245 = smul.addr %s244, 16
      %s246 = smul.addr %s245, 8
      %s247 = scalar_lea.vmem %s2, %s246
      %p248 = scmp.lt.s32.totalorder %s15, 1
      %s249 = scalar_select %p248, %s15, 1
      %s250 = smul.addr %s249, 8
      %s251 = smul.addr %s250, 8
      %s252 = scalar_lea.vmem %s3, %s251
      %p253 = scmp.lt.s32.totalorder %s15, 1
      %s254 = scalar_select %p253, %s15, 1
      %s255 = smul.addr %s254, 8
      %s256 = smul.addr %s255, 8
      %s257 = scalar_lea.vmem %s4, %s256
      %v258 = vld [vmem:[%s237] sm:$0xff]
      %v259 = vld [vmem:[%s237 + $0x8] sm:$0x1]
      %v260 = vld [vmem:[%s237 + $0x10] sm:$0xff]
      %v261 = vld [vmem:[%s237 + $0x18] sm:$0x1]
      %v262 = vld [vmem:[%s237 + $0x20] sm:$0xff]
      %v263 = vld [vmem:[%s237 + $0x28] sm:$0x1]
      %v264 = vld [vmem:[%s237 + $0x30] sm:$0xff]
      %v265 = vld [vmem:[%s237 + $0x38] sm:$0x1]
      %v266 = vld [vmem:[%s237 + $0x40] sm:$0xff]
      %v267 = vld [vmem:[%s237 + $0x48] sm:$0x1]
      %v268 = vld [vmem:[%s237 + $0x50] sm:$0xff]
      %v269 = vld [vmem:[%s237 + $0x58] sm:$0x1]
      %v270 = vld [vmem:[%s237 + $0x60] sm:$0xff]
      %v271 = vld [vmem:[%s237 + $0x68] sm:$0x1]
      %v272 = vld [vmem:[%s237 + $0x70] sm:$0xff]
      %v273 = vld [vmem:[%s237 + $0x78] sm:$0x1]
      %v274 = vld [vmem:[%s237 + $0x80] sm:$0xff]
      %v275 = vld [vmem:[%s237 + $0x88] sm:$0x1]
      %v276 = vld [vmem:[%s242] sm:$0xff]
      %v277 = vld [vmem:[%s242 + $0x8] sm:$0xff]
      %v278 = vld [vmem:[%s242 + $0x10] sm:$0xff]
      %v279 = vld [vmem:[%s242 + $0x18] sm:$0xff]
      %v280 = vld [vmem:[%s242 + $0x20] sm:$0xff]
      %v281 = vld [vmem:[%s242 + $0x28] sm:$0xff]
      %v282 = vld [vmem:[%s242 + $0x30] sm:$0xff]
      %v283 = vld [vmem:[%s242 + $0x38] sm:$0xff]
      %v284 = vld [vmem:[%s242 + $0x40] sm:$0xff]
      %v285 = vld [vmem:[%s247] sm:$0xff]
      %v286 = vld [vmem:[%s247 + $0x8] sm:$0x1]
      %v287 = vld [vmem:[%s247 + $0x10] sm:$0xff]
      %v288 = vld [vmem:[%s247 + $0x18] sm:$0x1]
      %v289 = vld [vmem:[%s247 + $0x20] sm:$0xff]
      %v290 = vld [vmem:[%s247 + $0x28] sm:$0x1]
      %v291 = vld [vmem:[%s247 + $0x30] sm:$0xff]
      %v292 = vld [vmem:[%s247 + $0x38] sm:$0x1]
      %v293 = vld [vmem:[%s247 + $0x40] sm:$0xff]
      %v294 = vld [vmem:[%s247 + $0x48] sm:$0x1]
      %v295 = vld [vmem:[%s247 + $0x50] sm:$0xff]
      %v296 = vld [vmem:[%s247 + $0x58] sm:$0x1]
      %v297 = vld [vmem:[%s247 + $0x60] sm:$0xff]
      %v298 = vld [vmem:[%s247 + $0x68] sm:$0x1]
      %v299 = vld [vmem:[%s247 + $0x70] sm:$0xff]
      %v300 = vld [vmem:[%s247 + $0x78] sm:$0x1]
      %v301 = vld [vmem:[%s252] sm:$0xff]
      %v302 = vld [vmem:[%s252 + $0x8] sm:$0xff]
      %v303 = vld [vmem:[%s252 + $0x10] sm:$0xff]
      %v304 = vld [vmem:[%s252 + $0x18] sm:$0xff]
      %v305 = vld [vmem:[%s252 + $0x20] sm:$0xff]
      %v306 = vld [vmem:[%s252 + $0x28] sm:$0xff]
      %v307 = vld [vmem:[%s252 + $0x30] sm:$0xff]
      %v308 = vld [vmem:[%s252 + $0x38] sm:$0xff]
      %v309 = vmax.f32 %v301, %v276
      %v310 = vmax.f32 %v302, %v277
      %v311 = vmax.f32 %v303, %v278
      %v312 = vmax.f32 %v304, %v279
      %v313 = vmax.f32 %v305, %v280
      %v314 = vmax.f32 %v306, %v281
      %v315 = vmax.f32 %v307, %v282
      %v316 = vmax.f32 %v308, %v283
      %v317 = vmax.f32 %v309, %v277
      %v318 = vmax.f32 %v310, %v278
      %v319 = vmax.f32 %v311, %v279
      %v320 = vmax.f32 %v312, %v280
      %v321 = vmax.f32 %v313, %v281
      %v322 = vmax.f32 %v314, %v282
      %v323 = vmax.f32 %v315, %v283
      %v324 = vmax.f32 %v316, %v284
      %v325 = vmax.f32 %v317, %v285
      %v326 = vmax.f32 %v318, %v287
      %v327 = vmax.f32 %v319, %v289
      %v328 = vmax.f32 %v320, %v291
      %v329 = vmax.f32 %v321, %v293
      %v330 = vmax.f32 %v322, %v295
      %v331 = vmax.f32 %v323, %v297
      %v332 = vmax.f32 %v324, %v299
      %vm349 = vcmask 1046528
      %v350 = vrot.slane %v285, 1
      %v351 = vrot.slane %v286, 1
      %v352 = vsel %vm349, %v350, %v351
      %v353 = vrot.slane %v287, 1
      %v354 = vrot.slane %v288, 1
      %v355 = vsel %vm349, %v353, %v354
      %v356 = vrot.slane %v289, 1
      %v357 = vrot.slane %v290, 1
      %v358 = vsel %vm349, %v356, %v357
      %v359 = vrot.slane %v291, 1
      %v360 = vrot.slane %v292, 1
      %v361 = vsel %vm349, %v359, %v360
      %v362 = vrot.slane %v293, 1
      %v363 = vrot.slane %v294, 1
      %v364 = vsel %vm349, %v362, %v363
      %v365 = vrot.slane %v295, 1
      %v366 = vrot.slane %v296, 1
      %v367 = vsel %vm349, %v365, %v366
      %v368 = vrot.slane %v297, 1
      %v369 = vrot.slane %v298, 1
      %v370 = vsel %vm349, %v368, %v369
      %v371 = vrot.slane %v299, 1
      %v372 = vrot.slane %v300, 1
      %v373 = vsel %vm349, %v371, %v372
      %v382 = vmax.f32 %v325, %v352
      %v383 = vmax.f32 %v326, %v355
      %v384 = vmax.f32 %v327, %v358
      %v385 = vmax.f32 %v328, %v361
      %v386 = vmax.f32 %v329, %v364
      %v387 = vmax.f32 %v330, %v367
      %v388 = vmax.f32 %v331, %v370
      %v389 = vmax.f32 %v332, %v373
      %v390 = vmax.f32 %v382, %v258
      %v391 = vmax.f32 %v383, %v260
      %v392 = vmax.f32 %v384, %v262
      %v393 = vmax.f32 %v385, %v264
      %v394 = vmax.f32 %v386, %v266
      %v395 = vmax.f32 %v387, %v268
      %v396 = vmax.f32 %v388, %v270
      %v397 = vmax.f32 %v389, %v272
      %v414 = vrot.slane %v258, 1
      %v415 = vrot.slane %v259, 1
      %v416 = vsel %vm349, %v414, %v415
      %v417 = vrot.slane %v260, 1
      %v418 = vrot.slane %v261, 1
      %v419 = vsel %vm349, %v417, %v418
      %v420 = vrot.slane %v262, 1
      %v421 = vrot.slane %v263, 1
      %v422 = vsel %vm349, %v420, %v421
      %v423 = vrot.slane %v264, 1
      %v424 = vrot.slane %v265, 1
      %v425 = vsel %vm349, %v423, %v424
      %v426 = vrot.slane %v266, 1
      %v427 = vrot.slane %v267, 1
      %v428 = vsel %vm349, %v426, %v427
      %v429 = vrot.slane %v268, 1
      %v430 = vrot.slane %v269, 1
      %v431 = vsel %vm349, %v429, %v430
      %v432 = vrot.slane %v270, 1
      %v433 = vrot.slane %v271, 1
      %v434 = vsel %vm349, %v432, %v433
      %v435 = vrot.slane %v272, 1
      %v436 = vrot.slane %v273, 1
      %v437 = vsel %vm349, %v435, %v436
      %v446 = vmax.f32 %v390, %v416
      %v447 = vmax.f32 %v391, %v419
      %v448 = vmax.f32 %v392, %v422
      %v449 = vmax.f32 %v393, %v425
      %v450 = vmax.f32 %v394, %v428
      %v451 = vmax.f32 %v395, %v431
      %v452 = vmax.f32 %v396, %v434
      %v453 = vmax.f32 %v397, %v437
      %v454 = vmax.f32 %v446, %v260
      %v455 = vmax.f32 %v447, %v262
      %v456 = vmax.f32 %v448, %v264
      %v457 = vmax.f32 %v449, %v266
      %v458 = vmax.f32 %v450, %v268
      %v459 = vmax.f32 %v451, %v270
      %v460 = vmax.f32 %v452, %v272
      %v461 = vmax.f32 %v453, %v274
      %v464 = vrot.slane %v274, 1
      %v465 = vrot.slane %v275, 1
      %v466 = vsel %vm349, %v464, %v465
      %v468 = vmax.f32 %v454, %v419
      %v469 = vmax.f32 %v455, %v422
      %v470 = vmax.f32 %v456, %v425
      %v471 = vmax.f32 %v457, %v428
      %v472 = vmax.f32 %v458, %v431
      %v473 = vmax.f32 %v459, %v434
      %v474 = vmax.f32 %v460, %v437
      %v475 = vmax.f32 %v461, %v466
      %vm476 = vcmask 261120
      %477 = vst.msk [vmem:[%s257] sm:$0xff] %vm476, %v468
      %478 = vst.msk [vmem:[%s257 + $0x8] sm:$0xff] %vm476, %v469
      %479 = vst.msk [vmem:[%s257 + $0x10] sm:$0xff] %vm476, %v470
      %480 = vst.msk [vmem:[%s257 + $0x18] sm:$0xff] %vm476, %v471
      %481 = vst.msk [vmem:[%s257 + $0x20] sm:$0xff] %vm476, %v472
      %482 = vst.msk [vmem:[%s257 + $0x28] sm:$0xff] %vm476, %v473
      %483 = vst.msk [vmem:[%s257 + $0x30] sm:$0xff] %vm476, %v474
      %484 = vst.msk [vmem:[%s257 + $0x38] sm:$0xff] %vm476, %v475
      %p485 = scmp.lt.s32.totalorder %s15, 1
      %s486 = scalar_select %p485, %s15, 1
      %s487 = smul.addr %s486, 8
      %s488 = smul.addr %s487, 8
      %s489 = scalar_lea.vmem %s4, %s488
      // Predicated region
      $region37: #{inception_b_forward.9} parent=35 // pred_check
        %p490 = pneg %p137
      $region38: #{inception_b_forward.9} parent=35 // pred_check_branch
        %492 = sbr.rel (%p490) target = $region40
      $region39: #{inception_b_forward.9} parent=35 // pred_region
        _
      $region40: #{inception_b_forward.9} parent=35 // pred_fallthru
        _
    $region36: #{inception_b_forward.9} parent=5 // pred_fallthru
      _
    %p493 = scmp.le.s32.totalorder 2, %s10
    // Predicated region
    $region41: #{inception_b_forward.9} parent=5 // pred_check
      %p494 = pneg %p493
    $region42: #{inception_b_forward.9} parent=5 // pred_check_branch
      %496 = sbr.rel (%p494) target = $region44
    $region43: #{inception_b_forward.9} parent=5 // pred_region
      %s497 = ssub.s32 %s10, 2
      // Predicated region
      $region45: #{inception_b_forward.9} parent=43 // pred_check
        %p498 = pneg %p143
      $region46: #{inception_b_forward.9} parent=43 // pred_check_branch
        %500 = sbr.rel (%p498) target = $region48
      $region47: #{inception_b_forward.9} parent=43 // pred_region
        %p501 = scmp.lt.s32.totalorder %s16, 1
        %s502 = scalar_select %p501, %s16, 1
        %s503 = smul.addr %s502, 8
        %s504 = smul.addr %s503, 8
        %s505 = scalar_lea.vmem %s4, %s504
      $region48: #{inception_b_forward.9} parent=43 // pred_fallthru
        _
    $region44: #{inception_b_forward.9} parent=5 // pred_fallthru
      _
  $region6: #{inception_b_forward.9} parent=0 // loop_footer
    %s14 = sadd.s32 1, %s10
  $region7: #{inception_b_forward.9} parent=0 // loop_footer_branch
    %9 = sbr.rel target = $region3
  $region8: #{inception_b_forward.9} parent=0 // loop_exit
    _

</llo_original>
